<compile_context>
chip_gen: v7x
topology: tpu7x:2x2x1
jax: 0.10.0
libtpu: 0.0.40
codegen_flags: <defaults>
</compile_context>

<pallas_src>
import jax
import jax.numpy as jnp
from jax.experimental import pallas as pl
from jax.experimental.pallas import tpu as pltpu


# ----------------------------------------------------------------------------
# Fused encoder + decoder + FC kernel (no grid: one invocation, all in VMEM).
# ----------------------------------------------------------------------------
def make_encdec_kernel(num_layers, hidden_size, out_len):
    H = hidden_size
    L = num_layers

    def kernel(*refs):
        idx = 0
        x_ref = refs[idx]; idx += 1
        enc = [(refs[idx + 2 * l], refs[idx + 2 * l + 1]) for l in range(L)]
        idx += 2 * L
        dec = [(refs[idx + 2 * l], refs[idx + 2 * l + 1]) for l in range(L)]
        idx += 2 * L
        fc_w_ref, fc_b_ref = refs[idx], refs[idx + 1]; idx += 2
        out_ref = refs[idx]

        B, S, _ = x_ref.shape
        x_all = x_ref[...]                                   # (B, S, D), ~1 KB

        def cell(x_in, h_prev, c_prev, w_ref, b_ref):
            # One MXU matmul per cell: [x | h] @ [W_ih.T ; W_hh.T] + (b_ih+b_hh)
            xh = jnp.concatenate([x_in, h_prev], axis=-1)    # (B, Din+H)
            gates = (jnp.dot(xh, w_ref[...],
                             preferred_element_type=jnp.float32)
                     + b_ref[...])                           # (B, 4H) = 128 lanes
            sg = jax.nn.sigmoid(gates)                       # full-width, EUP
            th = jnp.tanh(gates)                             # full-width, EUP
            i_g = sg[:, 0:H]
            f_g = sg[:, H:2 * H]
            g_g = th[:, 2 * H:3 * H]
            o_g = sg[:, 3 * H:4 * H]
            c_new = f_g * c_prev + i_g * g_g
            h_new = o_g * jnp.tanh(c_new)
            return h_new, c_new

        def run(layers, h, c, collect):
            ys = []
            for t in range(S):                               # fully unrolled
                x_in = x_all[:, t, :]
                for l in range(L):
                    h[l], c[l] = cell(x_in, h[l], c[l], *layers[l])
                    x_in = h[l]
                if collect:
                    ys.append(x_in)
            return ys, h, c

        def zeros():
            return [jnp.zeros((B, H), jnp.float32) for _ in range(L)]

        # Encoder: zero initial state; only its final (h, c) per layer is kept
        # (it stays in-register / VMEM — never written to HBM).
        _, h_st, c_st = run(enc, zeros(), zeros(), collect=False)
        # Decoder: re-consumes x starting from the encoder state.
        ys, _, _ = run(dec, h_st, c_st, collect=True)

        # FC head fused into the epilogue: only the last `out_len` steps matter.
        y_last = jnp.stack(ys[S - out_len:], axis=1)         # (B, Lout, H)
        y2d = y_last.reshape(B * out_len, H)
        out = (jnp.dot(y2d, fc_w_ref[...],
                       preferred_element_type=jnp.float32)
               + fc_b_ref[...])                              # (B*Lout, O)
        out_ref[...] = out.reshape(out_ref.shape)

    return kernel


def encoder_decoder_forward(x, enc_params, dec_params, fc_wT, fc_b, out_len):
    """x: (B, S, D).  *_params[l] = (W_cat (Din+H, 4H), bias (1, 4H))."""
    B, _, _ = x.shape
    L = len(enc_params)
    H = enc_params[0][0].shape[1] // 4
    O = fc_wT.shape[1]

    inputs = [x]
    for (w, b) in list(enc_params) + list(dec_params):
        inputs += [w, b]
    inputs += [fc_wT, fc_b]

    vmem = pl.BlockSpec(memory_space=pltpu.MemorySpace.VMEM)
    return pl.pallas_call(
        make_encdec_kernel(L, H, out_len),
        out_shape=jax.ShapeDtypeStruct((B, out_len, O), jnp.float32),
        in_specs=[vmem] * len(inputs),
        out_specs=vmem,
    )(*inputs)


# ----------------------------------------------------------------------------
# Parameter init (PyTorch-style uniform(-1/sqrt(H), 1/sqrt(H)); weights packed)
# ----------------------------------------------------------------------------
def init_lstm_params(key, input_size, hidden_size, num_layers):
    bound = 1.0 / (hidden_size ** 0.5)
    params = []
    for l in range(num_layers):
        in_sz = input_size if l == 0 else hidden_size
        key, k1, k2, k3, k4 = jax.random.split(key, 5)
        w_ih = jax.random.uniform(k1, (4 * hidden_size, in_sz),
                                  minval=-bound, maxval=bound, dtype=jnp.float32)
        w_hh = jax.random.uniform(k2, (4 * hidden_size, hidden_size),
                                  minval=-bound, maxval=bound, dtype=jnp.float32)
        b_ih = jax.random.uniform(k3, (4 * hidden_size,),
                                  minval=-bound, maxval=bound, dtype=jnp.float32)
        b_hh = jax.random.uniform(k4, (4 * hidden_size,),
                                  minval=-bound, maxval=bound, dtype=jnp.float32)
        w_cat = jnp.concatenate([w_ih.T, w_hh.T], axis=0)     # (in+H, 4H)
        params.append((w_cat, (b_ih + b_hh)[None, :]))
    return params, key


# ----------------------------------------------------------------------------
# Pure-JAX reference (matches PyTorch nn.LSTM gate order i, f, g, o)
# ----------------------------------------------------------------------------
def lstm_ref(x, params, h0, c0):
    B, S, _ = x.shape
    L = len(params)
    H = h0.shape[-1]
    h = [h0[l] for l in range(L)]
    c = [c0[l] for l in range(L)]
    ys = []
    for t in range(S):
        x_in = x[:, t, :]
        for l in range(L):
            w_cat, b = params[l]
            gates = jnp.concatenate([x_in, h[l]], axis=-1) @ w_cat + b
            i = jax.nn.sigmoid(gates[:, :H])
            f = jax.nn.sigmoid(gates[:, H:2 * H])
            g = jnp.tanh(gates[:, 2 * H:3 * H])
            o = jax.nn.sigmoid(gates[:, 3 * H:4 * H])
            c[l] = f * c[l] + i * g
            h[l] = o * jnp.tanh(c[l])
            x_in = h[l]
        ys.append(x_in)
    return jnp.stack(ys, axis=1), jnp.stack(h), jnp.stack(c)


def encoder_decoder_ref(x, enc_params, dec_params, fc_wT, fc_b, out_len):
    B, _, _ = x.shape
    L = len(enc_params)
    H = enc_params[0][0].shape[1] // 4
    z = jnp.zeros((L, B, H), jnp.float32)
    _, hN, cN = lstm_ref(x, enc_params, z, z)
    y, _, _ = lstm_ref(x, dec_params, hN, cN)
    return y[:, -out_len:, :] @ fc_wT + fc_b


if __name__ == "__main__":
    # Shapes implied by the module
    batch = 2
    seq = 8
    input_size = 16
    hidden_size = 32
    num_layers = 2
    output_size = 8
    output_sequence_length = 4

    key = jax.random.PRNGKey(0)
    enc_params, key = init_lstm_params(key, input_size, hidden_size, num_layers)
    dec_params, key = init_lstm_params(key, input_size, hidden_size, num_layers)
    key, kw, kb, kx = jax.random.split(key, 4)
    bound = 1.0 / (hidden_size ** 0.5)
    fc_w = jax.random.uniform(kw, (output_size, hidden_size),
                              minval=-bound, maxval=bound, dtype=jnp.float32)
    fc_b = jax.random.uniform(kb, (output_size,),
                              minval=-bound, maxval=bound, dtype=jnp.float32)
    fc_wT = fc_w.T                                            # (H, O)
    fc_b2d = fc_b[None, :]                                    # (1, O)

    x = jax.random.normal(kx, (batch, seq, input_size), dtype=jnp.float32)

    out = encoder_decoder_forward(x, enc_params, dec_params, fc_wT, fc_b2d,
                                  output_sequence_length)
    out = jax.block_until_ready(out)

    ref = encoder_decoder_ref(x, enc_params, dec_params, fc_wT, fc_b2d,
                              output_sequence_length)
    assert out.shape == (batch, output_sequence_length, output_size)
    assert jnp.allclose(out, ref, atol=1e-4, rtol=1e-4), "mismatch vs reference"

    print("KERNEL_OK")
</pallas_src>

<mosaic_0001>
module attributes {stable_mosaic.version = 11 : i64} {
  func.func @kernel(%arg0: memref<2x8x16xf32, #tpu.memory_space<vmem>>, %arg1: memref<48x128xf32, #tpu.memory_space<vmem>>, %arg2: memref<1x128xf32, #tpu.memory_space<vmem>>, %arg3: memref<64x128xf32, #tpu.memory_space<vmem>>, %arg4: memref<1x128xf32, #tpu.memory_space<vmem>>, %arg5: memref<48x128xf32, #tpu.memory_space<vmem>>, %arg6: memref<1x128xf32, #tpu.memory_space<vmem>>, %arg7: memref<64x128xf32, #tpu.memory_space<vmem>>, %arg8: memref<1x128xf32, #tpu.memory_space<vmem>>, %arg9: memref<32x8xf32, #tpu.memory_space<vmem>>, %arg10: memref<1x8xf32, #tpu.memory_space<vmem>>, %arg11: memref<2x4x8xf32, #tpu.memory_space<vmem>>) attributes {dimension_semantics = [], scalar_prefetch = 0 : i64, scratch_operands = 0 : i64, tpu.core_type = #tpu.core_type<tc>} {
    %c0 = arith.constant 0 : index
    %c0_0 = arith.constant 0 : index
    %c0_1 = arith.constant 0 : index
    %0 = vector.load %arg0[%c0, %c0_0, %c0_1] : memref<2x8x16xf32, #tpu.memory_space<vmem>>, vector<2x8x16xf32>
    %cst = arith.constant 0.000000e+00 : f32
    %1 = vector.broadcast %cst : f32 to vector<2x32xf32>
    %cst_2 = arith.constant 0.000000e+00 : f32
    %2 = vector.broadcast %cst_2 : f32 to vector<2x32xf32>
    %cst_3 = arith.constant 0.000000e+00 : f32
    %3 = vector.broadcast %cst_3 : f32 to vector<2x32xf32>
    %cst_4 = arith.constant 0.000000e+00 : f32
    %4 = vector.broadcast %cst_4 : f32 to vector<2x32xf32>
    %5 = vector.extract_strided_slice %0 {offsets = [0, 0, 0], sizes = [2, 1, 16], strides = [1, 1, 1]} : vector<2x8x16xf32> to vector<2x1x16xf32>
    %6 = vector.shape_cast %5 : vector<2x1x16xf32> to vector<2x16xf32>
    %7 = tpu.concatenate %6, %1 in 1 : vector<2x16xf32>, vector<2x32xf32> -> vector<2x48xf32>
    %c0_5 = arith.constant 0 : index
    %c0_6 = arith.constant 0 : index
    %8 = vector.load %arg1[%c0_5, %c0_6] : memref<48x128xf32, #tpu.memory_space<vmem>>, vector<48x128xf32>
    %cst_7 = arith.constant dense<0.000000e+00> : vector<2x128xf32>
    %9 = tpu.matmul %7, %8, %cst_7 {dimension_numbers = #tpu.dot_dimension_numbers<[1], [0], [0], [1], [0, 0, 1, 1], [], []>} : vector<2x48xf32>, vector<48x128xf32>, vector<2x128xf32> -> vector<2x128xf32>
    %c0_8 = arith.constant 0 : index
    %c0_9 = arith.constant 0 : index
    %10 = vector.load %arg2[%c0_8, %c0_9] : memref<1x128xf32, #tpu.memory_space<vmem>>, vector<1x128xf32>
    %11 = vector.broadcast %10 : vector<1x128xf32> to vector<2x128xf32>
    %12 = arith.addf %9, %11 : vector<2x128xf32>
    %13 = arith.negf %12 : vector<2x128xf32>
    %14 = math.exp %13 : vector<2x128xf32>
    %cst_10 = arith.constant 1.000000e+00 : f32
    %15 = vector.broadcast %cst_10 : f32 to vector<2x128xf32>
    %16 = arith.addf %15, %14 : vector<2x128xf32>
    %17 = arith.divf %15, %16 : vector<2x128xf32>
    %18 = math.tanh %12 : vector<2x128xf32>
    %19 = vector.extract_strided_slice %17 {offsets = [0, 0], sizes = [2, 32], strides = [1, 1]} : vector<2x128xf32> to vector<2x32xf32>
    %20 = vector.extract_strided_slice %17 {offsets = [0, 32], sizes = [2, 32], strides = [1, 1]} : vector<2x128xf32> to vector<2x32xf32>
    %21 = vector.extract_strided_slice %18 {offsets = [0, 64], sizes = [2, 32], strides = [1, 1]} : vector<2x128xf32> to vector<2x32xf32>
    %22 = vector.extract_strided_slice %17 {offsets = [0, 96], sizes = [2, 32], strides = [1, 1]} : vector<2x128xf32> to vector<2x32xf32>
    %23 = arith.mulf %20, %3 : vector<2x32xf32>
    %24 = arith.mulf %19, %21 : vector<2x32xf32>
    %25 = arith.addf %23, %24 : vector<2x32xf32>
    %26 = math.tanh %25 : vector<2x32xf32>
    %27 = arith.mulf %22, %26 : vector<2x32xf32>
    %28 = tpu.concatenate %27, %2 in 1 : vector<2x32xf32>, vector<2x32xf32> -> vector<2x64xf32>
    %c0_11 = arith.constant 0 : index
    %c0_12 = arith.constant 0 : index
    %29 = vector.load %arg3[%c0_11, %c0_12] : memref<64x128xf32, #tpu.memory_space<vmem>>, vector<64x128xf32>
    %cst_13 = arith.constant dense<0.000000e+00> : vector<2x128xf32>
    %30 = tpu.matmul %28, %29, %cst_13 {dimension_numbers = #tpu.dot_dimension_numbers<[1], [0], [0], [1], [0, 0, 1, 1], [], []>} : vector<2x64xf32>, vector<64x128xf32>, vector<2x128xf32> -> vector<2x128xf32>
    %c0_14 = arith.constant 0 : index
    %c0_15 = arith.constant 0 : index
    %31 = vector.load %arg4[%c0_14, %c0_15] : memref<1x128xf32, #tpu.memory_space<vmem>>, vector<1x128xf32>
    %32 = vector.broadcast %31 : vector<1x128xf32> to vector<2x128xf32>
    %33 = arith.addf %30, %32 : vector<2x128xf32>
    %34 = arith.negf %33 : vector<2x128xf32>
    %35 = math.exp %34 : vector<2x128xf32>
    %cst_16 = arith.constant 1.000000e+00 : f32
    %36 = vector.broadcast %cst_16 : f32 to vector<2x128xf32>
    %37 = arith.addf %36, %35 : vector<2x128xf32>
    %38 = arith.divf %36, %37 : vector<2x128xf32>
    %39 = math.tanh %33 : vector<2x128xf32>
    %40 = vector.extract_strided_slice %38 {offsets = [0, 0], sizes = [2, 32], strides = [1, 1]} : vector<2x128xf32> to vector<2x32xf32>
    %41 = vector.extract_strided_slice %38 {offsets = [0, 32], sizes = [2, 32], strides = [1, 1]} : vector<2x128xf32> to vector<2x32xf32>
    %42 = vector.extract_strided_slice %39 {offsets = [0, 64], sizes = [2, 32], strides = [1, 1]} : vector<2x128xf32> to vector<2x32xf32>
    %43 = vector.extract_strided_slice %38 {offsets = [0, 96], sizes = [2, 32], strides = [1, 1]} : vector<2x128xf32> to vector<2x32xf32>
    %44 = arith.mulf %41, %4 : vector<2x32xf32>
    %45 = arith.mulf %40, %42 : vector<2x32xf32>
    %46 = arith.addf %44, %45 : vector<2x32xf32>
    %47 = math.tanh %46 : vector<2x32xf32>
    %48 = arith.mulf %43, %47 : vector<2x32xf32>
    %49 = vector.extract_strided_slice %0 {offsets = [0, 1, 0], sizes = [2, 1, 16], strides = [1, 1, 1]} : vector<2x8x16xf32> to vector<2x1x16xf32>
    %50 = vector.shape_cast %49 : vector<2x1x16xf32> to vector<2x16xf32>
    %51 = tpu.concatenate %50, %27 in 1 : vector<2x16xf32>, vector<2x32xf32> -> vector<2x48xf32>
    %c0_17 = arith.constant 0 : index
    %c0_18 = arith.constant 0 : index
    %52 = vector.load %arg1[%c0_17, %c0_18] : memref<48x128xf32, #tpu.memory_space<vmem>>, vector<48x128xf32>
    %cst_19 = arith.constant dense<0.000000e+00> : vector<2x128xf32>
    %53 = tpu.matmul %51, %52, %cst_19 {dimension_numbers = #tpu.dot_dimension_numbers<[1], [0], [0], [1], [0, 0, 1, 1], [], []>} : vector<2x48xf32>, vector<48x128xf32>, vector<2x128xf32> -> vector<2x128xf32>
    %c0_20 = arith.constant 0 : index
    %c0_21 = arith.constant 0 : index
    %54 = vector.load %arg2[%c0_20, %c0_21] : memref<1x128xf32, #tpu.memory_space<vmem>>, vector<1x128xf32>
    %55 = vector.broadcast %54 : vector<1x128xf32> to vector<2x128xf32>
    %56 = arith.addf %53, %55 : vector<2x128xf32>
    %57 = arith.negf %56 : vector<2x128xf32>
    %58 = math.exp %57 : vector<2x128xf32>
    %cst_22 = arith.constant 1.000000e+00 : f32
    %59 = vector.broadcast %cst_22 : f32 to vector<2x128xf32>
    %60 = arith.addf %59, %58 : vector<2x128xf32>
    %61 = arith.divf %59, %60 : vector<2x128xf32>
    %62 = math.tanh %56 : vector<2x128xf32>
    %63 = vector.extract_strided_slice %61 {offsets = [0, 0], sizes = [2, 32], strides = [1, 1]} : vector<2x128xf32> to vector<2x32xf32>
    %64 = vector.extract_strided_slice %61 {offsets = [0, 32], sizes = [2, 32], strides = [1, 1]} : vector<2x128xf32> to vector<2x32xf32>
    %65 = vector.extract_strided_slice %62 {offsets = [0, 64], sizes = [2, 32], strides = [1, 1]} : vector<2x128xf32> to vector<2x32xf32>
    %66 = vector.extract_strided_slice %61 {offsets = [0, 96], sizes = [2, 32], strides = [1, 1]} : vector<2x128xf32> to vector<2x32xf32>
    %67 = arith.mulf %64, %25 : vector<2x32xf32>
    %68 = arith.mulf %63, %65 : vector<2x32xf32>
    %69 = arith.addf %67, %68 : vector<2x32xf32>
    %70 = math.tanh %69 : vector<2x32xf32>
    %71 = arith.mulf %66, %70 : vector<2x32xf32>
    %72 = tpu.concatenate %71, %48 in 1 : vector<2x32xf32>, vector<2x32xf32> -> vector<2x64xf32>
    %c0_23 = arith.constant 0 : index
    %c0_24 = arith.constant 0 : index
    %73 = vector.load %arg3[%c0_23, %c0_24] : memref<64x128xf32, #tpu.memory_space<vmem>>, vector<64x128xf32>
    %cst_25 = arith.constant dense<0.000000e+00> : vector<2x128xf32>
    %74 = tpu.matmul %72, %73, %cst_25 {dimension_numbers = #tpu.dot_dimension_numbers<[1], [0], [0], [1], [0, 0, 1, 1], [], []>} : vector<2x64xf32>, vector<64x128xf32>, vector<2x128xf32> -> vector<2x128xf32>
    %c0_26 = arith.constant 0 : index
    %c0_27 = arith.constant 0 : index
    %75 = vector.load %arg4[%c0_26, %c0_27] : memref<1x128xf32, #tpu.memory_space<vmem>>, vector<1x128xf32>
    %76 = vector.broadcast %75 : vector<1x128xf32> to vector<2x128xf32>
    %77 = arith.addf %74, %76 : vector<2x128xf32>
    %78 = arith.negf %77 : vector<2x128xf32>
    %79 = math.exp %78 : vector<2x128xf32>
    %cst_28 = arith.constant 1.000000e+00 : f32
    %80 = vector.broadcast %cst_28 : f32 to vector<2x128xf32>
    %81 = arith.addf %80, %79 : vector<2x128xf32>
    %82 = arith.divf %80, %81 : vector<2x128xf32>
    %83 = math.tanh %77 : vector<2x128xf32>
    %84 = vector.extract_strided_slice %82 {offsets = [0, 0], sizes = [2, 32], strides = [1, 1]} : vector<2x128xf32> to vector<2x32xf32>
    %85 = vector.extract_strided_slice %82 {offsets = [0, 32], sizes = [2, 32], strides = [1, 1]} : vector<2x128xf32> to vector<2x32xf32>
    %86 = vector.extract_strided_slice %83 {offsets = [0, 64], sizes = [2, 32], strides = [1, 1]} : vector<2x128xf32> to vector<2x32xf32>
    %87 = vector.extract_strided_slice %82 {offsets = [0, 96], sizes = [2, 32], strides = [1, 1]} : vector<2x128xf32> to vector<2x32xf32>
    %88 = arith.mulf %85, %46 : vector<2x32xf32>
    %89 = arith.mulf %84, %86 : vector<2x32xf32>
    %90 = arith.addf %88, %89 : vector<2x32xf32>
    %91 = math.tanh %90 : vector<2x32xf32>
    %92 = arith.mulf %87, %91 : vector<2x32xf32>
    %93 = vector.extract_strided_slice %0 {offsets = [0, 2, 0], sizes = [2, 1, 16], strides = [1, 1, 1]} : vector<2x8x16xf32> to vector<2x1x16xf32>
    %94 = vector.shape_cast %93 : vector<2x1x16xf32> to vector<2x16xf32>
    %95 = tpu.concatenate %94, %71 in 1 : vector<2x16xf32>, vector<2x32xf32> -> vector<2x48xf32>
    %c0_29 = arith.constant 0 : index
    %c0_30 = arith.constant 0 : index
    %96 = vector.load %arg1[%c0_29, %c0_30] : memref<48x128xf32, #tpu.memory_space<vmem>>, vector<48x128xf32>
    %cst_31 = arith.constant dense<0.000000e+00> : vector<2x128xf32>
    %97 = tpu.matmul %95, %96, %cst_31 {dimension_numbers = #tpu.dot_dimension_numbers<[1], [0], [0], [1], [0, 0, 1, 1], [], []>} : vector<2x48xf32>, vector<48x128xf32>, vector<2x128xf32> -> vector<2x128xf32>
    %c0_32 = arith.constant 0 : index
    %c0_33 = arith.constant 0 : index
    %98 = vector.load %arg2[%c0_32, %c0_33] : memref<1x128xf32, #tpu.memory_space<vmem>>, vector<1x128xf32>
    %99 = vector.broadcast %98 : vector<1x128xf32> to vector<2x128xf32>
    %100 = arith.addf %97, %99 : vector<2x128xf32>
    %101 = arith.negf %100 : vector<2x128xf32>
    %102 = math.exp %101 : vector<2x128xf32>
    %cst_34 = arith.constant 1.000000e+00 : f32
    %103 = vector.broadcast %cst_34 : f32 to vector<2x128xf32>
    %104 = arith.addf %103, %102 : vector<2x128xf32>
    %105 = arith.divf %103, %104 : vector<2x128xf32>
    %106 = math.tanh %100 : vector<2x128xf32>
    %107 = vector.extract_strided_slice %105 {offsets = [0, 0], sizes = [2, 32], strides = [1, 1]} : vector<2x128xf32> to vector<2x32xf32>
    %108 = vector.extract_strided_slice %105 {offsets = [0, 32], sizes = [2, 32], strides = [1, 1]} : vector<2x128xf32> to vector<2x32xf32>
    %109 = vector.extract_strided_slice %106 {offsets = [0, 64], sizes = [2, 32], strides = [1, 1]} : vector<2x128xf32> to vector<2x32xf32>
    %110 = vector.extract_strided_slice %105 {offsets = [0, 96], sizes = [2, 32], strides = [1, 1]} : vector<2x128xf32> to vector<2x32xf32>
    %111 = arith.mulf %108, %69 : vector<2x32xf32>
    %112 = arith.mulf %107, %109 : vector<2x32xf32>
    %113 = arith.addf %111, %112 : vector<2x32xf32>
    %114 = math.tanh %113 : vector<2x32xf32>
    %115 = arith.mulf %110, %114 : vector<2x32xf32>
    %116 = tpu.concatenate %115, %92 in 1 : vector<2x32xf32>, vector<2x32xf32> -> vector<2x64xf32>
    %c0_35 = arith.constant 0 : index
    %c0_36 = arith.constant 0 : index
    %117 = vector.load %arg3[%c0_35, %c0_36] : memref<64x128xf32, #tpu.memory_space<vmem>>, vector<64x128xf32>
    %cst_37 = arith.constant dense<0.000000e+00> : vector<2x128xf32>
    %118 = tpu.matmul %116, %117, %cst_37 {dimension_numbers = #tpu.dot_dimension_numbers<[1], [0], [0], [1], [0, 0, 1, 1], [], []>} : vector<2x64xf32>, vector<64x128xf32>, vector<2x128xf32> -> vector<2x128xf32>
    %c0_38 = arith.constant 0 : index
    %c0_39 = arith.constant 0 : index
    %119 = vector.load %arg4[%c0_38, %c0_39] : memref<1x128xf32, #tpu.memory_space<vmem>>, vector<1x128xf32>
    %120 = vector.broadcast %119 : vector<1x128xf32> to vector<2x128xf32>
    %121 = arith.addf %118, %120 : vector<2x128xf32>
    %122 = arith.negf %121 : vector<2x128xf32>
    %123 = math.exp %122 : vector<2x128xf32>
    %cst_40 = arith.constant 1.000000e+00 : f32
    %124 = vector.broadcast %cst_40 : f32 to vector<2x128xf32>
    %125 = arith.addf %124, %123 : vector<2x128xf32>
    %126 = arith.divf %124, %125 : vector<2x128xf32>
    %127 = math.tanh %121 : vector<2x128xf32>
    %128 = vector.extract_strided_slice %126 {offsets = [0, 0], sizes = [2, 32], strides = [1, 1]} : vector<2x128xf32> to vector<2x32xf32>
    %129 = vector.extract_strided_slice %126 {offsets = [0, 32], sizes = [2, 32], strides = [1, 1]} : vector<2x128xf32> to vector<2x32xf32>
    %130 = vector.extract_strided_slice %127 {offsets = [0, 64], sizes = [2, 32], strides = [1, 1]} : vector<2x128xf32> to vector<2x32xf32>
    %131 = vector.extract_strided_slice %126 {offsets = [0, 96], sizes = [2, 32], strides = [1, 1]} : vector<2x128xf32> to vector<2x32xf32>
    %132 = arith.mulf %129, %90 : vector<2x32xf32>
    %133 = arith.mulf %128, %130 : vector<2x32xf32>
    %134 = arith.addf %132, %133 : vector<2x32xf32>
    %135 = math.tanh %134 : vector<2x32xf32>
    %136 = arith.mulf %131, %135 : vector<2x32xf32>
    %137 = vector.extract_strided_slice %0 {offsets = [0, 3, 0], sizes = [2, 1, 16], strides = [1, 1, 1]} : vector<2x8x16xf32> to vector<2x1x16xf32>
    %138 = vector.shape_cast %137 : vector<2x1x16xf32> to vector<2x16xf32>
    %139 = tpu.concatenate %138, %115 in 1 : vector<2x16xf32>, vector<2x32xf32> -> vector<2x48xf32>
    %c0_41 = arith.constant 0 : index
    %c0_42 = arith.constant 0 : index
    %140 = vector.load %arg1[%c0_41, %c0_42] : memref<48x128xf32, #tpu.memory_space<vmem>>, vector<48x128xf32>
    %cst_43 = arith.constant dense<0.000000e+00> : vector<2x128xf32>
    %141 = tpu.matmul %139, %140, %cst_43 {dimension_numbers = #tpu.dot_dimension_numbers<[1], [0], [0], [1], [0, 0, 1, 1], [], []>} : vector<2x48xf32>, vector<48x128xf32>, vector<2x128xf32> -> vector<2x128xf32>
    %c0_44 = arith.constant 0 : index
    %c0_45 = arith.constant 0 : index
    %142 = vector.load %arg2[%c0_44, %c0_45] : memref<1x128xf32, #tpu.memory_space<vmem>>, vector<1x128xf32>
    %143 = vector.broadcast %142 : vector<1x128xf32> to vector<2x128xf32>
    %144 = arith.addf %141, %143 : vector<2x128xf32>
    %145 = arith.negf %144 : vector<2x128xf32>
    %146 = math.exp %145 : vector<2x128xf32>
    %cst_46 = arith.constant 1.000000e+00 : f32
    %147 = vector.broadcast %cst_46 : f32 to vector<2x128xf32>
    %148 = arith.addf %147, %146 : vector<2x128xf32>
    %149 = arith.divf %147, %148 : vector<2x128xf32>
    %150 = math.tanh %144 : vector<2x128xf32>
    %151 = vector.extract_strided_slice %149 {offsets = [0, 0], sizes = [2, 32], strides = [1, 1]} : vector<2x128xf32> to vector<2x32xf32>
    %152 = vector.extract_strided_slice %149 {offsets = [0, 32], sizes = [2, 32], strides = [1, 1]} : vector<2x128xf32> to vector<2x32xf32>
    %153 = vector.extract_strided_slice %150 {offsets = [0, 64], sizes = [2, 32], strides = [1, 1]} : vector<2x128xf32> to vector<2x32xf32>
    %154 = vector.extract_strided_slice %149 {offsets = [0, 96], sizes = [2, 32], strides = [1, 1]} : vector<2x128xf32> to vector<2x32xf32>
    %155 = arith.mulf %152, %113 : vector<2x32xf32>
    %156 = arith.mulf %151, %153 : vector<2x32xf32>
    %157 = arith.addf %155, %156 : vector<2x32xf32>
    %158 = math.tanh %157 : vector<2x32xf32>
    %159 = arith.mulf %154, %158 : vector<2x32xf32>
    %160 = tpu.concatenate %159, %136 in 1 : vector<2x32xf32>, vector<2x32xf32> -> vector<2x64xf32>
    %c0_47 = arith.constant 0 : index
    %c0_48 = arith.constant 0 : index
    %161 = vector.load %arg3[%c0_47, %c0_48] : memref<64x128xf32, #tpu.memory_space<vmem>>, vector<64x128xf32>
    %cst_49 = arith.constant dense<0.000000e+00> : vector<2x128xf32>
    %162 = tpu.matmul %160, %161, %cst_49 {dimension_numbers = #tpu.dot_dimension_numbers<[1], [0], [0], [1], [0, 0, 1, 1], [], []>} : vector<2x64xf32>, vector<64x128xf32>, vector<2x128xf32> -> vector<2x128xf32>
    %c0_50 = arith.constant 0 : index
    %c0_51 = arith.constant 0 : index
    %163 = vector.load %arg4[%c0_50, %c0_51] : memref<1x128xf32, #tpu.memory_space<vmem>>, vector<1x128xf32>
    %164 = vector.broadcast %163 : vector<1x128xf32> to vector<2x128xf32>
    %165 = arith.addf %162, %164 : vector<2x128xf32>
    %166 = arith.negf %165 : vector<2x128xf32>
    %167 = math.exp %166 : vector<2x128xf32>
    %cst_52 = arith.constant 1.000000e+00 : f32
    %168 = vector.broadcast %cst_52 : f32 to vector<2x128xf32>
    %169 = arith.addf %168, %167 : vector<2x128xf32>
    %170 = arith.divf %168, %169 : vector<2x128xf32>
    %171 = math.tanh %165 : vector<2x128xf32>
    %172 = vector.extract_strided_slice %170 {offsets = [0, 0], sizes = [2, 32], strides = [1, 1]} : vector<2x128xf32> to vector<2x32xf32>
    %173 = vector.extract_strided_slice %170 {offsets = [0, 32], sizes = [2, 32], strides = [1, 1]} : vector<2x128xf32> to vector<2x32xf32>
    %174 = vector.extract_strided_slice %171 {offsets = [0, 64], sizes = [2, 32], strides = [1, 1]} : vector<2x128xf32> to vector<2x32xf32>
    %175 = vector.extract_strided_slice %170 {offsets = [0, 96], sizes = [2, 32], strides = [1, 1]} : vector<2x128xf32> to vector<2x32xf32>
    %176 = arith.mulf %173, %134 : vector<2x32xf32>
    %177 = arith.mulf %172, %174 : vector<2x32xf32>
    %178 = arith.addf %176, %177 : vector<2x32xf32>
    %179 = math.tanh %178 : vector<2x32xf32>
    %180 = arith.mulf %175, %179 : vector<2x32xf32>
    %181 = vector.extract_strided_slice %0 {offsets = [0, 4, 0], sizes = [2, 1, 16], strides = [1, 1, 1]} : vector<2x8x16xf32> to vector<2x1x16xf32>
    %182 = vector.shape_cast %181 : vector<2x1x16xf32> to vector<2x16xf32>
    %183 = tpu.concatenate %182, %159 in 1 : vector<2x16xf32>, vector<2x32xf32> -> vector<2x48xf32>
    %c0_53 = arith.constant 0 : index
    %c0_54 = arith.constant 0 : index
    %184 = vector.load %arg1[%c0_53, %c0_54] : memref<48x128xf32, #tpu.memory_space<vmem>>, vector<48x128xf32>
    %cst_55 = arith.constant dense<0.000000e+00> : vector<2x128xf32>
    %185 = tpu.matmul %183, %184, %cst_55 {dimension_numbers = #tpu.dot_dimension_numbers<[1], [0], [0], [1], [0, 0, 1, 1], [], []>} : vector<2x48xf32>, vector<48x128xf32>, vector<2x128xf32> -> vector<2x128xf32>
    %c0_56 = arith.constant 0 : index
    %c0_57 = arith.constant 0 : index
    %186 = vector.load %arg2[%c0_56, %c0_57] : memref<1x128xf32, #tpu.memory_space<vmem>>, vector<1x128xf32>
    %187 = vector.broadcast %186 : vector<1x128xf32> to vector<2x128xf32>
    %188 = arith.addf %185, %187 : vector<2x128xf32>
    %189 = arith.negf %188 : vector<2x128xf32>
    %190 = math.exp %189 : vector<2x128xf32>
    %cst_58 = arith.constant 1.000000e+00 : f32
    %191 = vector.broadcast %cst_58 : f32 to vector<2x128xf32>
    %192 = arith.addf %191, %190 : vector<2x128xf32>
    %193 = arith.divf %191, %192 : vector<2x128xf32>
    %194 = math.tanh %188 : vector<2x128xf32>
    %195 = vector.extract_strided_slice %193 {offsets = [0, 0], sizes = [2, 32], strides = [1, 1]} : vector<2x128xf32> to vector<2x32xf32>
    %196 = vector.extract_strided_slice %193 {offsets = [0, 32], sizes = [2, 32], strides = [1, 1]} : vector<2x128xf32> to vector<2x32xf32>
    %197 = vector.extract_strided_slice %194 {offsets = [0, 64], sizes = [2, 32], strides = [1, 1]} : vector<2x128xf32> to vector<2x32xf32>
    %198 = vector.extract_strided_slice %193 {offsets = [0, 96], sizes = [2, 32], strides = [1, 1]} : vector<2x128xf32> to vector<2x32xf32>
    %199 = arith.mulf %196, %157 : vector<2x32xf32>
    %200 = arith.mulf %195, %197 : vector<2x32xf32>
    %201 = arith.addf %199, %200 : vector<2x32xf32>
    %202 = math.tanh %201 : vector<2x32xf32>
    %203 = arith.mulf %198, %202 : vector<2x32xf32>
    %204 = tpu.concatenate %203, %180 in 1 : vector<2x32xf32>, vector<2x32xf32> -> vector<2x64xf32>
    %c0_59 = arith.constant 0 : index
    %c0_60 = arith.constant 0 : index
    %205 = vector.load %arg3[%c0_59, %c0_60] : memref<64x128xf32, #tpu.memory_space<vmem>>, vector<64x128xf32>
    %cst_61 = arith.constant dense<0.000000e+00> : vector<2x128xf32>
    %206 = tpu.matmul %204, %205, %cst_61 {dimension_numbers = #tpu.dot_dimension_numbers<[1], [0], [0], [1], [0, 0, 1, 1], [], []>} : vector<2x64xf32>, vector<64x128xf32>, vector<2x128xf32> -> vector<2x128xf32>
    %c0_62 = arith.constant 0 : index
    %c0_63 = arith.constant 0 : index
    %207 = vector.load %arg4[%c0_62, %c0_63] : memref<1x128xf32, #tpu.memory_space<vmem>>, vector<1x128xf32>
    %208 = vector.broadcast %207 : vector<1x128xf32> to vector<2x128xf32>
    %209 = arith.addf %206, %208 : vector<2x128xf32>
    %210 = arith.negf %209 : vector<2x128xf32>
    %211 = math.exp %210 : vector<2x128xf32>
    %cst_64 = arith.constant 1.000000e+00 : f32
    %212 = vector.broadcast %cst_64 : f32 to vector<2x128xf32>
    %213 = arith.addf %212, %211 : vector<2x128xf32>
    %214 = arith.divf %212, %213 : vector<2x128xf32>
    %215 = math.tanh %209 : vector<2x128xf32>
    %216 = vector.extract_strided_slice %214 {offsets = [0, 0], sizes = [2, 32], strides = [1, 1]} : vector<2x128xf32> to vector<2x32xf32>
    %217 = vector.extract_strided_slice %214 {offsets = [0, 32], sizes = [2, 32], strides = [1, 1]} : vector<2x128xf32> to vector<2x32xf32>
    %218 = vector.extract_strided_slice %215 {offsets = [0, 64], sizes = [2, 32], strides = [1, 1]} : vector<2x128xf32> to vector<2x32xf32>
    %219 = vector.extract_strided_slice %214 {offsets = [0, 96], sizes = [2, 32], strides = [1, 1]} : vector<2x128xf32> to vector<2x32xf32>
    %220 = arith.mulf %217, %178 : vector<2x32xf32>
    %221 = arith.mulf %216, %218 : vector<2x32xf32>
    %222 = arith.addf %220, %221 : vector<2x32xf32>
    %223 = math.tanh %222 : vector<2x32xf32>
    %224 = arith.mulf %219, %223 : vector<2x32xf32>
    %225 = vector.extract_strided_slice %0 {offsets = [0, 5, 0], sizes = [2, 1, 16], strides = [1, 1, 1]} : vector<2x8x16xf32> to vector<2x1x16xf32>
    %226 = vector.shape_cast %225 : vector<2x1x16xf32> to vector<2x16xf32>
    %227 = tpu.concatenate %226, %203 in 1 : vector<2x16xf32>, vector<2x32xf32> -> vector<2x48xf32>
    %c0_65 = arith.constant 0 : index
    %c0_66 = arith.constant 0 : index
    %228 = vector.load %arg1[%c0_65, %c0_66] : memref<48x128xf32, #tpu.memory_space<vmem>>, vector<48x128xf32>
    %cst_67 = arith.constant dense<0.000000e+00> : vector<2x128xf32>
    %229 = tpu.matmul %227, %228, %cst_67 {dimension_numbers = #tpu.dot_dimension_numbers<[1], [0], [0], [1], [0, 0, 1, 1], [], []>} : vector<2x48xf32>, vector<48x128xf32>, vector<2x128xf32> -> vector<2x128xf32>
    %c0_68 = arith.constant 0 : index
    %c0_69 = arith.constant 0 : index
    %230 = vector.load %arg2[%c0_68, %c0_69] : memref<1x128xf32, #tpu.memory_space<vmem>>, vector<1x128xf32>
    %231 = vector.broadcast %230 : vector<1x128xf32> to vector<2x128xf32>
    %232 = arith.addf %229, %231 : vector<2x128xf32>
    %233 = arith.negf %232 : vector<2x128xf32>
    %234 = math.exp %233 : vector<2x128xf32>
    %cst_70 = arith.constant 1.000000e+00 : f32
    %235 = vector.broadcast %cst_70 : f32 to vector<2x128xf32>
    %236 = arith.addf %235, %234 : vector<2x128xf32>
    %237 = arith.divf %235, %236 : vector<2x128xf32>
    %238 = math.tanh %232 : vector<2x128xf32>
    %239 = vector.extract_strided_slice %237 {offsets = [0, 0], sizes = [2, 32], strides = [1, 1]} : vector<2x128xf32> to vector<2x32xf32>
    %240 = vector.extract_strided_slice %237 {offsets = [0, 32], sizes = [2, 32], strides = [1, 1]} : vector<2x128xf32> to vector<2x32xf32>
    %241 = vector.extract_strided_slice %238 {offsets = [0, 64], sizes = [2, 32], strides = [1, 1]} : vector<2x128xf32> to vector<2x32xf32>
    %242 = vector.extract_strided_slice %237 {offsets = [0, 96], sizes = [2, 32], strides = [1, 1]} : vector<2x128xf32> to vector<2x32xf32>
    %243 = arith.mulf %240, %201 : vector<2x32xf32>
    %244 = arith.mulf %239, %241 : vector<2x32xf32>
    %245 = arith.addf %243, %244 : vector<2x32xf32>
    %246 = math.tanh %245 : vector<2x32xf32>
    %247 = arith.mulf %242, %246 : vector<2x32xf32>
    %248 = tpu.concatenate %247, %224 in 1 : vector<2x32xf32>, vector<2x32xf32> -> vector<2x64xf32>
    %c0_71 = arith.constant 0 : index
    %c0_72 = arith.constant 0 : index
    %249 = vector.load %arg3[%c0_71, %c0_72] : memref<64x128xf32, #tpu.memory_space<vmem>>, vector<64x128xf32>
    %cst_73 = arith.constant dense<0.000000e+00> : vector<2x128xf32>
    %250 = tpu.matmul %248, %249, %cst_73 {dimension_numbers = #tpu.dot_dimension_numbers<[1], [0], [0], [1], [0, 0, 1, 1], [], []>} : vector<2x64xf32>, vector<64x128xf32>, vector<2x128xf32> -> vector<2x128xf32>
    %c0_74 = arith.constant 0 : index
    %c0_75 = arith.constant 0 : index
    %251 = vector.load %arg4[%c0_74, %c0_75] : memref<1x128xf32, #tpu.memory_space<vmem>>, vector<1x128xf32>
    %252 = vector.broadcast %251 : vector<1x128xf32> to vector<2x128xf32>
    %253 = arith.addf %250, %252 : vector<2x128xf32>
    %254 = arith.negf %253 : vector<2x128xf32>
    %255 = math.exp %254 : vector<2x128xf32>
    %cst_76 = arith.constant 1.000000e+00 : f32
    %256 = vector.broadcast %cst_76 : f32 to vector<2x128xf32>
    %257 = arith.addf %256, %255 : vector<2x128xf32>
    %258 = arith.divf %256, %257 : vector<2x128xf32>
    %259 = math.tanh %253 : vector<2x128xf32>
    %260 = vector.extract_strided_slice %258 {offsets = [0, 0], sizes = [2, 32], strides = [1, 1]} : vector<2x128xf32> to vector<2x32xf32>
    %261 = vector.extract_strided_slice %258 {offsets = [0, 32], sizes = [2, 32], strides = [1, 1]} : vector<2x128xf32> to vector<2x32xf32>
    %262 = vector.extract_strided_slice %259 {offsets = [0, 64], sizes = [2, 32], strides = [1, 1]} : vector<2x128xf32> to vector<2x32xf32>
    %263 = vector.extract_strided_slice %258 {offsets = [0, 96], sizes = [2, 32], strides = [1, 1]} : vector<2x128xf32> to vector<2x32xf32>
    %264 = arith.mulf %261, %222 : vector<2x32xf32>
    %265 = arith.mulf %260, %262 : vector<2x32xf32>
    %266 = arith.addf %264, %265 : vector<2x32xf32>
    %267 = math.tanh %266 : vector<2x32xf32>
    %268 = arith.mulf %263, %267 : vector<2x32xf32>
    %269 = vector.extract_strided_slice %0 {offsets = [0, 6, 0], sizes = [2, 1, 16], strides = [1, 1, 1]} : vector<2x8x16xf32> to vector<2x1x16xf32>
    %270 = vector.shape_cast %269 : vector<2x1x16xf32> to vector<2x16xf32>
    %271 = tpu.concatenate %270, %247 in 1 : vector<2x16xf32>, vector<2x32xf32> -> vector<2x48xf32>
    %c0_77 = arith.constant 0 : index
    %c0_78 = arith.constant 0 : index
    %272 = vector.load %arg1[%c0_77, %c0_78] : memref<48x128xf32, #tpu.memory_space<vmem>>, vector<48x128xf32>
    %cst_79 = arith.constant dense<0.000000e+00> : vector<2x128xf32>
    %273 = tpu.matmul %271, %272, %cst_79 {dimension_numbers = #tpu.dot_dimension_numbers<[1], [0], [0], [1], [0, 0, 1, 1], [], []>} : vector<2x48xf32>, vector<48x128xf32>, vector<2x128xf32> -> vector<2x128xf32>
    %c0_80 = arith.constant 0 : index
    %c0_81 = arith.constant 0 : index
    %274 = vector.load %arg2[%c0_80, %c0_81] : memref<1x128xf32, #tpu.memory_space<vmem>>, vector<1x128xf32>
    %275 = vector.broadcast %274 : vector<1x128xf32> to vector<2x128xf32>
    %276 = arith.addf %273, %275 : vector<2x128xf32>
    %277 = arith.negf %276 : vector<2x128xf32>
    %278 = math.exp %277 : vector<2x128xf32>
    %cst_82 = arith.constant 1.000000e+00 : f32
    %279 = vector.broadcast %cst_82 : f32 to vector<2x128xf32>
    %280 = arith.addf %279, %278 : vector<2x128xf32>
    %281 = arith.divf %279, %280 : vector<2x128xf32>
    %282 = math.tanh %276 : vector<2x128xf32>
    %283 = vector.extract_strided_slice %281 {offsets = [0, 0], sizes = [2, 32], strides = [1, 1]} : vector<2x128xf32> to vector<2x32xf32>
    %284 = vector.extract_strided_slice %281 {offsets = [0, 32], sizes = [2, 32], strides = [1, 1]} : vector<2x128xf32> to vector<2x32xf32>
    %285 = vector.extract_strided_slice %282 {offsets = [0, 64], sizes = [2, 32], strides = [1, 1]} : vector<2x128xf32> to vector<2x32xf32>
    %286 = vector.extract_strided_slice %281 {offsets = [0, 96], sizes = [2, 32], strides = [1, 1]} : vector<2x128xf32> to vector<2x32xf32>
    %287 = arith.mulf %284, %245 : vector<2x32xf32>
    %288 = arith.mulf %283, %285 : vector<2x32xf32>
    %289 = arith.addf %287, %288 : vector<2x32xf32>
    %290 = math.tanh %289 : vector<2x32xf32>
    %291 = arith.mulf %286, %290 : vector<2x32xf32>
    %292 = tpu.concatenate %291, %268 in 1 : vector<2x32xf32>, vector<2x32xf32> -> vector<2x64xf32>
    %c0_83 = arith.constant 0 : index
    %c0_84 = arith.constant 0 : index
    %293 = vector.load %arg3[%c0_83, %c0_84] : memref<64x128xf32, #tpu.memory_space<vmem>>, vector<64x128xf32>
    %cst_85 = arith.constant dense<0.000000e+00> : vector<2x128xf32>
    %294 = tpu.matmul %292, %293, %cst_85 {dimension_numbers = #tpu.dot_dimension_numbers<[1], [0], [0], [1], [0, 0, 1, 1], [], []>} : vector<2x64xf32>, vector<64x128xf32>, vector<2x128xf32> -> vector<2x128xf32>
    %c0_86 = arith.constant 0 : index
    %c0_87 = arith.constant 0 : index
    %295 = vector.load %arg4[%c0_86, %c0_87] : memref<1x128xf32, #tpu.memory_space<vmem>>, vector<1x128xf32>
    %296 = vector.broadcast %295 : vector<1x128xf32> to vector<2x128xf32>
    %297 = arith.addf %294, %296 : vector<2x128xf32>
    %298 = arith.negf %297 : vector<2x128xf32>
    %299 = math.exp %298 : vector<2x128xf32>
    %cst_88 = arith.constant 1.000000e+00 : f32
    %300 = vector.broadcast %cst_88 : f32 to vector<2x128xf32>
    %301 = arith.addf %300, %299 : vector<2x128xf32>
    %302 = arith.divf %300, %301 : vector<2x128xf32>
    %303 = math.tanh %297 : vector<2x128xf32>
    %304 = vector.extract_strided_slice %302 {offsets = [0, 0], sizes = [2, 32], strides = [1, 1]} : vector<2x128xf32> to vector<2x32xf32>
    %305 = vector.extract_strided_slice %302 {offsets = [0, 32], sizes = [2, 32], strides = [1, 1]} : vector<2x128xf32> to vector<2x32xf32>
    %306 = vector.extract_strided_slice %303 {offsets = [0, 64], sizes = [2, 32], strides = [1, 1]} : vector<2x128xf32> to vector<2x32xf32>
    %307 = vector.extract_strided_slice %302 {offsets = [0, 96], sizes = [2, 32], strides = [1, 1]} : vector<2x128xf32> to vector<2x32xf32>
    %308 = arith.mulf %305, %266 : vector<2x32xf32>
    %309 = arith.mulf %304, %306 : vector<2x32xf32>
    %310 = arith.addf %308, %309 : vector<2x32xf32>
    %311 = math.tanh %310 : vector<2x32xf32>
    %312 = arith.mulf %307, %311 : vector<2x32xf32>
    %313 = vector.extract_strided_slice %0 {offsets = [0, 7, 0], sizes = [2, 1, 16], strides = [1, 1, 1]} : vector<2x8x16xf32> to vector<2x1x16xf32>
    %314 = vector.shape_cast %313 : vector<2x1x16xf32> to vector<2x16xf32>
    %315 = tpu.concatenate %314, %291 in 1 : vector<2x16xf32>, vector<2x32xf32> -> vector<2x48xf32>
    %c0_89 = arith.constant 0 : index
    %c0_90 = arith.constant 0 : index
    %316 = vector.load %arg1[%c0_89, %c0_90] : memref<48x128xf32, #tpu.memory_space<vmem>>, vector<48x128xf32>
    %cst_91 = arith.constant dense<0.000000e+00> : vector<2x128xf32>
    %317 = tpu.matmul %315, %316, %cst_91 {dimension_numbers = #tpu.dot_dimension_numbers<[1], [0], [0], [1], [0, 0, 1, 1], [], []>} : vector<2x48xf32>, vector<48x128xf32>, vector<2x128xf32> -> vector<2x128xf32>
    %c0_92 = arith.constant 0 : index
    %c0_93 = arith.constant 0 : index
    %318 = vector.load %arg2[%c0_92, %c0_93] : memref<1x128xf32, #tpu.memory_space<vmem>>, vector<1x128xf32>
    %319 = vector.broadcast %318 : vector<1x128xf32> to vector<2x128xf32>
    %320 = arith.addf %317, %319 : vector<2x128xf32>
    %321 = arith.negf %320 : vector<2x128xf32>
    %322 = math.exp %321 : vector<2x128xf32>
    %cst_94 = arith.constant 1.000000e+00 : f32
    %323 = vector.broadcast %cst_94 : f32 to vector<2x128xf32>
    %324 = arith.addf %323, %322 : vector<2x128xf32>
    %325 = arith.divf %323, %324 : vector<2x128xf32>
    %326 = math.tanh %320 : vector<2x128xf32>
    %327 = vector.extract_strided_slice %325 {offsets = [0, 0], sizes = [2, 32], strides = [1, 1]} : vector<2x128xf32> to vector<2x32xf32>
    %328 = vector.extract_strided_slice %325 {offsets = [0, 32], sizes = [2, 32], strides = [1, 1]} : vector<2x128xf32> to vector<2x32xf32>
    %329 = vector.extract_strided_slice %326 {offsets = [0, 64], sizes = [2, 32], strides = [1, 1]} : vector<2x128xf32> to vector<2x32xf32>
    %330 = vector.extract_strided_slice %325 {offsets = [0, 96], sizes = [2, 32], strides = [1, 1]} : vector<2x128xf32> to vector<2x32xf32>
    %331 = arith.mulf %328, %289 : vector<2x32xf32>
    %332 = arith.mulf %327, %329 : vector<2x32xf32>
    %333 = arith.addf %331, %332 : vector<2x32xf32>
    %334 = math.tanh %333 : vector<2x32xf32>
    %335 = arith.mulf %330, %334 : vector<2x32xf32>
    %336 = tpu.concatenate %335, %312 in 1 : vector<2x32xf32>, vector<2x32xf32> -> vector<2x64xf32>
    %c0_95 = arith.constant 0 : index
    %c0_96 = arith.constant 0 : index
    %337 = vector.load %arg3[%c0_95, %c0_96] : memref<64x128xf32, #tpu.memory_space<vmem>>, vector<64x128xf32>
    %cst_97 = arith.constant dense<0.000000e+00> : vector<2x128xf32>
    %338 = tpu.matmul %336, %337, %cst_97 {dimension_numbers = #tpu.dot_dimension_numbers<[1], [0], [0], [1], [0, 0, 1, 1], [], []>} : vector<2x64xf32>, vector<64x128xf32>, vector<2x128xf32> -> vector<2x128xf32>
    %c0_98 = arith.constant 0 : index
    %c0_99 = arith.constant 0 : index
    %339 = vector.load %arg4[%c0_98, %c0_99] : memref<1x128xf32, #tpu.memory_space<vmem>>, vector<1x128xf32>
    %340 = vector.broadcast %339 : vector<1x128xf32> to vector<2x128xf32>
    %341 = arith.addf %338, %340 : vector<2x128xf32>
    %342 = arith.negf %341 : vector<2x128xf32>
    %343 = math.exp %342 : vector<2x128xf32>
    %cst_100 = arith.constant 1.000000e+00 : f32
    %344 = vector.broadcast %cst_100 : f32 to vector<2x128xf32>
    %345 = arith.addf %344, %343 : vector<2x128xf32>
    %346 = arith.divf %344, %345 : vector<2x128xf32>
    %347 = math.tanh %341 : vector<2x128xf32>
    %348 = vector.extract_strided_slice %346 {offsets = [0, 0], sizes = [2, 32], strides = [1, 1]} : vector<2x128xf32> to vector<2x32xf32>
    %349 = vector.extract_strided_slice %346 {offsets = [0, 32], sizes = [2, 32], strides = [1, 1]} : vector<2x128xf32> to vector<2x32xf32>
    %350 = vector.extract_strided_slice %347 {offsets = [0, 64], sizes = [2, 32], strides = [1, 1]} : vector<2x128xf32> to vector<2x32xf32>
    %351 = vector.extract_strided_slice %346 {offsets = [0, 96], sizes = [2, 32], strides = [1, 1]} : vector<2x128xf32> to vector<2x32xf32>
    %352 = arith.mulf %349, %310 : vector<2x32xf32>
    %353 = arith.mulf %348, %350 : vector<2x32xf32>
    %354 = arith.addf %352, %353 : vector<2x32xf32>
    %355 = math.tanh %354 : vector<2x32xf32>
    %356 = arith.mulf %351, %355 : vector<2x32xf32>
    %357 = vector.extract_strided_slice %0 {offsets = [0, 0, 0], sizes = [2, 1, 16], strides = [1, 1, 1]} : vector<2x8x16xf32> to vector<2x1x16xf32>
    %358 = vector.shape_cast %357 : vector<2x1x16xf32> to vector<2x16xf32>
    %359 = tpu.concatenate %358, %335 in 1 : vector<2x16xf32>, vector<2x32xf32> -> vector<2x48xf32>
    %c0_101 = arith.constant 0 : index
    %c0_102 = arith.constant 0 : index
    %360 = vector.load %arg5[%c0_101, %c0_102] : memref<48x128xf32, #tpu.memory_space<vmem>>, vector<48x128xf32>
    %cst_103 = arith.constant dense<0.000000e+00> : vector<2x128xf32>
    %361 = tpu.matmul %359, %360, %cst_103 {dimension_numbers = #tpu.dot_dimension_numbers<[1], [0], [0], [1], [0, 0, 1, 1], [], []>} : vector<2x48xf32>, vector<48x128xf32>, vector<2x128xf32> -> vector<2x128xf32>
    %c0_104 = arith.constant 0 : index
    %c0_105 = arith.constant 0 : index
    %362 = vector.load %arg6[%c0_104, %c0_105] : memref<1x128xf32, #tpu.memory_space<vmem>>, vector<1x128xf32>
    %363 = vector.broadcast %362 : vector<1x128xf32> to vector<2x128xf32>
    %364 = arith.addf %361, %363 : vector<2x128xf32>
    %365 = arith.negf %364 : vector<2x128xf32>
    %366 = math.exp %365 : vector<2x128xf32>
    %cst_106 = arith.constant 1.000000e+00 : f32
    %367 = vector.broadcast %cst_106 : f32 to vector<2x128xf32>
    %368 = arith.addf %367, %366 : vector<2x128xf32>
    %369 = arith.divf %367, %368 : vector<2x128xf32>
    %370 = math.tanh %364 : vector<2x128xf32>
    %371 = vector.extract_strided_slice %369 {offsets = [0, 0], sizes = [2, 32], strides = [1, 1]} : vector<2x128xf32> to vector<2x32xf32>
    %372 = vector.extract_strided_slice %369 {offsets = [0, 32], sizes = [2, 32], strides = [1, 1]} : vector<2x128xf32> to vector<2x32xf32>
    %373 = vector.extract_strided_slice %370 {offsets = [0, 64], sizes = [2, 32], strides = [1, 1]} : vector<2x128xf32> to vector<2x32xf32>
    %374 = vector.extract_strided_slice %369 {offsets = [0, 96], sizes = [2, 32], strides = [1, 1]} : vector<2x128xf32> to vector<2x32xf32>
    %375 = arith.mulf %372, %333 : vector<2x32xf32>
    %376 = arith.mulf %371, %373 : vector<2x32xf32>
    %377 = arith.addf %375, %376 : vector<2x32xf32>
    %378 = math.tanh %377 : vector<2x32xf32>
    %379 = arith.mulf %374, %378 : vector<2x32xf32>
    %380 = tpu.concatenate %379, %356 in 1 : vector<2x32xf32>, vector<2x32xf32> -> vector<2x64xf32>
    %c0_107 = arith.constant 0 : index
    %c0_108 = arith.constant 0 : index
    %381 = vector.load %arg7[%c0_107, %c0_108] : memref<64x128xf32, #tpu.memory_space<vmem>>, vector<64x128xf32>
    %cst_109 = arith.constant dense<0.000000e+00> : vector<2x128xf32>
    %382 = tpu.matmul %380, %381, %cst_109 {dimension_numbers = #tpu.dot_dimension_numbers<[1], [0], [0], [1], [0, 0, 1, 1], [], []>} : vector<2x64xf32>, vector<64x128xf32>, vector<2x128xf32> -> vector<2x128xf32>
    %c0_110 = arith.constant 0 : index
    %c0_111 = arith.constant 0 : index
    %383 = vector.load %arg8[%c0_110, %c0_111] : memref<1x128xf32, #tpu.memory_space<vmem>>, vector<1x128xf32>
    %384 = vector.broadcast %383 : vector<1x128xf32> to vector<2x128xf32>
    %385 = arith.addf %382, %384 : vector<2x128xf32>
    %386 = arith.negf %385 : vector<2x128xf32>
    %387 = math.exp %386 : vector<2x128xf32>
    %cst_112 = arith.constant 1.000000e+00 : f32
    %388 = vector.broadcast %cst_112 : f32 to vector<2x128xf32>
    %389 = arith.addf %388, %387 : vector<2x128xf32>
    %390 = arith.divf %388, %389 : vector<2x128xf32>
    %391 = math.tanh %385 : vector<2x128xf32>
    %392 = vector.extract_strided_slice %390 {offsets = [0, 0], sizes = [2, 32], strides = [1, 1]} : vector<2x128xf32> to vector<2x32xf32>
    %393 = vector.extract_strided_slice %390 {offsets = [0, 32], sizes = [2, 32], strides = [1, 1]} : vector<2x128xf32> to vector<2x32xf32>
    %394 = vector.extract_strided_slice %391 {offsets = [0, 64], sizes = [2, 32], strides = [1, 1]} : vector<2x128xf32> to vector<2x32xf32>
    %395 = vector.extract_strided_slice %390 {offsets = [0, 96], sizes = [2, 32], strides = [1, 1]} : vector<2x128xf32> to vector<2x32xf32>
    %396 = arith.mulf %393, %354 : vector<2x32xf32>
    %397 = arith.mulf %392, %394 : vector<2x32xf32>
    %398 = arith.addf %396, %397 : vector<2x32xf32>
    %399 = math.tanh %398 : vector<2x32xf32>
    %400 = arith.mulf %395, %399 : vector<2x32xf32>
    %401 = vector.extract_strided_slice %0 {offsets = [0, 1, 0], sizes = [2, 1, 16], strides = [1, 1, 1]} : vector<2x8x16xf32> to vector<2x1x16xf32>
    %402 = vector.shape_cast %401 : vector<2x1x16xf32> to vector<2x16xf32>
    %403 = tpu.concatenate %402, %379 in 1 : vector<2x16xf32>, vector<2x32xf32> -> vector<2x48xf32>
    %c0_113 = arith.constant 0 : index
    %c0_114 = arith.constant 0 : index
    %404 = vector.load %arg5[%c0_113, %c0_114] : memref<48x128xf32, #tpu.memory_space<vmem>>, vector<48x128xf32>
    %cst_115 = arith.constant dense<0.000000e+00> : vector<2x128xf32>
    %405 = tpu.matmul %403, %404, %cst_115 {dimension_numbers = #tpu.dot_dimension_numbers<[1], [0], [0], [1], [0, 0, 1, 1], [], []>} : vector<2x48xf32>, vector<48x128xf32>, vector<2x128xf32> -> vector<2x128xf32>
    %c0_116 = arith.constant 0 : index
    %c0_117 = arith.constant 0 : index
    %406 = vector.load %arg6[%c0_116, %c0_117] : memref<1x128xf32, #tpu.memory_space<vmem>>, vector<1x128xf32>
    %407 = vector.broadcast %406 : vector<1x128xf32> to vector<2x128xf32>
    %408 = arith.addf %405, %407 : vector<2x128xf32>
    %409 = arith.negf %408 : vector<2x128xf32>
    %410 = math.exp %409 : vector<2x128xf32>
    %cst_118 = arith.constant 1.000000e+00 : f32
    %411 = vector.broadcast %cst_118 : f32 to vector<2x128xf32>
    %412 = arith.addf %411, %410 : vector<2x128xf32>
    %413 = arith.divf %411, %412 : vector<2x128xf32>
    %414 = math.tanh %408 : vector<2x128xf32>
    %415 = vector.extract_strided_slice %413 {offsets = [0, 0], sizes = [2, 32], strides = [1, 1]} : vector<2x128xf32> to vector<2x32xf32>
    %416 = vector.extract_strided_slice %413 {offsets = [0, 32], sizes = [2, 32], strides = [1, 1]} : vector<2x128xf32> to vector<2x32xf32>
    %417 = vector.extract_strided_slice %414 {offsets = [0, 64], sizes = [2, 32], strides = [1, 1]} : vector<2x128xf32> to vector<2x32xf32>
    %418 = vector.extract_strided_slice %413 {offsets = [0, 96], sizes = [2, 32], strides = [1, 1]} : vector<2x128xf32> to vector<2x32xf32>
    %419 = arith.mulf %416, %377 : vector<2x32xf32>
    %420 = arith.mulf %415, %417 : vector<2x32xf32>
    %421 = arith.addf %419, %420 : vector<2x32xf32>
    %422 = math.tanh %421 : vector<2x32xf32>
    %423 = arith.mulf %418, %422 : vector<2x32xf32>
    %424 = tpu.concatenate %423, %400 in 1 : vector<2x32xf32>, vector<2x32xf32> -> vector<2x64xf32>
    %c0_119 = arith.constant 0 : index
    %c0_120 = arith.constant 0 : index
    %425 = vector.load %arg7[%c0_119, %c0_120] : memref<64x128xf32, #tpu.memory_space<vmem>>, vector<64x128xf32>
    %cst_121 = arith.constant dense<0.000000e+00> : vector<2x128xf32>
    %426 = tpu.matmul %424, %425, %cst_121 {dimension_numbers = #tpu.dot_dimension_numbers<[1], [0], [0], [1], [0, 0, 1, 1], [], []>} : vector<2x64xf32>, vector<64x128xf32>, vector<2x128xf32> -> vector<2x128xf32>
    %c0_122 = arith.constant 0 : index
    %c0_123 = arith.constant 0 : index
    %427 = vector.load %arg8[%c0_122, %c0_123] : memref<1x128xf32, #tpu.memory_space<vmem>>, vector<1x128xf32>
    %428 = vector.broadcast %427 : vector<1x128xf32> to vector<2x128xf32>
    %429 = arith.addf %426, %428 : vector<2x128xf32>
    %430 = arith.negf %429 : vector<2x128xf32>
    %431 = math.exp %430 : vector<2x128xf32>
    %cst_124 = arith.constant 1.000000e+00 : f32
    %432 = vector.broadcast %cst_124 : f32 to vector<2x128xf32>
    %433 = arith.addf %432, %431 : vector<2x128xf32>
    %434 = arith.divf %432, %433 : vector<2x128xf32>
    %435 = math.tanh %429 : vector<2x128xf32>
    %436 = vector.extract_strided_slice %434 {offsets = [0, 0], sizes = [2, 32], strides = [1, 1]} : vector<2x128xf32> to vector<2x32xf32>
    %437 = vector.extract_strided_slice %434 {offsets = [0, 32], sizes = [2, 32], strides = [1, 1]} : vector<2x128xf32> to vector<2x32xf32>
    %438 = vector.extract_strided_slice %435 {offsets = [0, 64], sizes = [2, 32], strides = [1, 1]} : vector<2x128xf32> to vector<2x32xf32>
    %439 = vector.extract_strided_slice %434 {offsets = [0, 96], sizes = [2, 32], strides = [1, 1]} : vector<2x128xf32> to vector<2x32xf32>
    %440 = arith.mulf %437, %398 : vector<2x32xf32>
    %441 = arith.mulf %436, %438 : vector<2x32xf32>
    %442 = arith.addf %440, %441 : vector<2x32xf32>
    %443 = math.tanh %442 : vector<2x32xf32>
    %444 = arith.mulf %439, %443 : vector<2x32xf32>
    %445 = vector.extract_strided_slice %0 {offsets = [0, 2, 0], sizes = [2, 1, 16], strides = [1, 1, 1]} : vector<2x8x16xf32> to vector<2x1x16xf32>
    %446 = vector.shape_cast %445 : vector<2x1x16xf32> to vector<2x16xf32>
    %447 = tpu.concatenate %446, %423 in 1 : vector<2x16xf32>, vector<2x32xf32> -> vector<2x48xf32>
    %c0_125 = arith.constant 0 : index
    %c0_126 = arith.constant 0 : index
    %448 = vector.load %arg5[%c0_125, %c0_126] : memref<48x128xf32, #tpu.memory_space<vmem>>, vector<48x128xf32>
    %cst_127 = arith.constant dense<0.000000e+00> : vector<2x128xf32>
    %449 = tpu.matmul %447, %448, %cst_127 {dimension_numbers = #tpu.dot_dimension_numbers<[1], [0], [0], [1], [0, 0, 1, 1], [], []>} : vector<2x48xf32>, vector<48x128xf32>, vector<2x128xf32> -> vector<2x128xf32>
    %c0_128 = arith.constant 0 : index
    %c0_129 = arith.constant 0 : index
    %450 = vector.load %arg6[%c0_128, %c0_129] : memref<1x128xf32, #tpu.memory_space<vmem>>, vector<1x128xf32>
    %451 = vector.broadcast %450 : vector<1x128xf32> to vector<2x128xf32>
    %452 = arith.addf %449, %451 : vector<2x128xf32>
    %453 = arith.negf %452 : vector<2x128xf32>
    %454 = math.exp %453 : vector<2x128xf32>
    %cst_130 = arith.constant 1.000000e+00 : f32
    %455 = vector.broadcast %cst_130 : f32 to vector<2x128xf32>
    %456 = arith.addf %455, %454 : vector<2x128xf32>
    %457 = arith.divf %455, %456 : vector<2x128xf32>
    %458 = math.tanh %452 : vector<2x128xf32>
    %459 = vector.extract_strided_slice %457 {offsets = [0, 0], sizes = [2, 32], strides = [1, 1]} : vector<2x128xf32> to vector<2x32xf32>
    %460 = vector.extract_strided_slice %457 {offsets = [0, 32], sizes = [2, 32], strides = [1, 1]} : vector<2x128xf32> to vector<2x32xf32>
    %461 = vector.extract_strided_slice %458 {offsets = [0, 64], sizes = [2, 32], strides = [1, 1]} : vector<2x128xf32> to vector<2x32xf32>
    %462 = vector.extract_strided_slice %457 {offsets = [0, 96], sizes = [2, 32], strides = [1, 1]} : vector<2x128xf32> to vector<2x32xf32>
    %463 = arith.mulf %460, %421 : vector<2x32xf32>
    %464 = arith.mulf %459, %461 : vector<2x32xf32>
    %465 = arith.addf %463, %464 : vector<2x32xf32>
    %466 = math.tanh %465 : vector<2x32xf32>
    %467 = arith.mulf %462, %466 : vector<2x32xf32>
    %468 = tpu.concatenate %467, %444 in 1 : vector<2x32xf32>, vector<2x32xf32> -> vector<2x64xf32>
    %c0_131 = arith.constant 0 : index
    %c0_132 = arith.constant 0 : index
    %469 = vector.load %arg7[%c0_131, %c0_132] : memref<64x128xf32, #tpu.memory_space<vmem>>, vector<64x128xf32>
    %cst_133 = arith.constant dense<0.000000e+00> : vector<2x128xf32>
    %470 = tpu.matmul %468, %469, %cst_133 {dimension_numbers = #tpu.dot_dimension_numbers<[1], [0], [0], [1], [0, 0, 1, 1], [], []>} : vector<2x64xf32>, vector<64x128xf32>, vector<2x128xf32> -> vector<2x128xf32>
    %c0_134 = arith.constant 0 : index
    %c0_135 = arith.constant 0 : index
    %471 = vector.load %arg8[%c0_134, %c0_135] : memref<1x128xf32, #tpu.memory_space<vmem>>, vector<1x128xf32>
    %472 = vector.broadcast %471 : vector<1x128xf32> to vector<2x128xf32>
    %473 = arith.addf %470, %472 : vector<2x128xf32>
    %474 = arith.negf %473 : vector<2x128xf32>
    %475 = math.exp %474 : vector<2x128xf32>
    %cst_136 = arith.constant 1.000000e+00 : f32
    %476 = vector.broadcast %cst_136 : f32 to vector<2x128xf32>
    %477 = arith.addf %476, %475 : vector<2x128xf32>
    %478 = arith.divf %476, %477 : vector<2x128xf32>
    %479 = math.tanh %473 : vector<2x128xf32>
    %480 = vector.extract_strided_slice %478 {offsets = [0, 0], sizes = [2, 32], strides = [1, 1]} : vector<2x128xf32> to vector<2x32xf32>
    %481 = vector.extract_strided_slice %478 {offsets = [0, 32], sizes = [2, 32], strides = [1, 1]} : vector<2x128xf32> to vector<2x32xf32>
    %482 = vector.extract_strided_slice %479 {offsets = [0, 64], sizes = [2, 32], strides = [1, 1]} : vector<2x128xf32> to vector<2x32xf32>
    %483 = vector.extract_strided_slice %478 {offsets = [0, 96], sizes = [2, 32], strides = [1, 1]} : vector<2x128xf32> to vector<2x32xf32>
    %484 = arith.mulf %481, %442 : vector<2x32xf32>
    %485 = arith.mulf %480, %482 : vector<2x32xf32>
    %486 = arith.addf %484, %485 : vector<2x32xf32>
    %487 = math.tanh %486 : vector<2x32xf32>
    %488 = arith.mulf %483, %487 : vector<2x32xf32>
    %489 = vector.extract_strided_slice %0 {offsets = [0, 3, 0], sizes = [2, 1, 16], strides = [1, 1, 1]} : vector<2x8x16xf32> to vector<2x1x16xf32>
    %490 = vector.shape_cast %489 : vector<2x1x16xf32> to vector<2x16xf32>
    %491 = tpu.concatenate %490, %467 in 1 : vector<2x16xf32>, vector<2x32xf32> -> vector<2x48xf32>
    %c0_137 = arith.constant 0 : index
    %c0_138 = arith.constant 0 : index
    %492 = vector.load %arg5[%c0_137, %c0_138] : memref<48x128xf32, #tpu.memory_space<vmem>>, vector<48x128xf32>
    %cst_139 = arith.constant dense<0.000000e+00> : vector<2x128xf32>
    %493 = tpu.matmul %491, %492, %cst_139 {dimension_numbers = #tpu.dot_dimension_numbers<[1], [0], [0], [1], [0, 0, 1, 1], [], []>} : vector<2x48xf32>, vector<48x128xf32>, vector<2x128xf32> -> vector<2x128xf32>
    %c0_140 = arith.constant 0 : index
    %c0_141 = arith.constant 0 : index
    %494 = vector.load %arg6[%c0_140, %c0_141] : memref<1x128xf32, #tpu.memory_space<vmem>>, vector<1x128xf32>
    %495 = vector.broadcast %494 : vector<1x128xf32> to vector<2x128xf32>
    %496 = arith.addf %493, %495 : vector<2x128xf32>
    %497 = arith.negf %496 : vector<2x128xf32>
    %498 = math.exp %497 : vector<2x128xf32>
    %cst_142 = arith.constant 1.000000e+00 : f32
    %499 = vector.broadcast %cst_142 : f32 to vector<2x128xf32>
    %500 = arith.addf %499, %498 : vector<2x128xf32>
    %501 = arith.divf %499, %500 : vector<2x128xf32>
    %502 = math.tanh %496 : vector<2x128xf32>
    %503 = vector.extract_strided_slice %501 {offsets = [0, 0], sizes = [2, 32], strides = [1, 1]} : vector<2x128xf32> to vector<2x32xf32>
    %504 = vector.extract_strided_slice %501 {offsets = [0, 32], sizes = [2, 32], strides = [1, 1]} : vector<2x128xf32> to vector<2x32xf32>
    %505 = vector.extract_strided_slice %502 {offsets = [0, 64], sizes = [2, 32], strides = [1, 1]} : vector<2x128xf32> to vector<2x32xf32>
    %506 = vector.extract_strided_slice %501 {offsets = [0, 96], sizes = [2, 32], strides = [1, 1]} : vector<2x128xf32> to vector<2x32xf32>
    %507 = arith.mulf %504, %465 : vector<2x32xf32>
    %508 = arith.mulf %503, %505 : vector<2x32xf32>
    %509 = arith.addf %507, %508 : vector<2x32xf32>
    %510 = math.tanh %509 : vector<2x32xf32>
    %511 = arith.mulf %506, %510 : vector<2x32xf32>
    %512 = tpu.concatenate %511, %488 in 1 : vector<2x32xf32>, vector<2x32xf32> -> vector<2x64xf32>
    %c0_143 = arith.constant 0 : index
    %c0_144 = arith.constant 0 : index
    %513 = vector.load %arg7[%c0_143, %c0_144] : memref<64x128xf32, #tpu.memory_space<vmem>>, vector<64x128xf32>
    %cst_145 = arith.constant dense<0.000000e+00> : vector<2x128xf32>
    %514 = tpu.matmul %512, %513, %cst_145 {dimension_numbers = #tpu.dot_dimension_numbers<[1], [0], [0], [1], [0, 0, 1, 1], [], []>} : vector<2x64xf32>, vector<64x128xf32>, vector<2x128xf32> -> vector<2x128xf32>
    %c0_146 = arith.constant 0 : index
    %c0_147 = arith.constant 0 : index
    %515 = vector.load %arg8[%c0_146, %c0_147] : memref<1x128xf32, #tpu.memory_space<vmem>>, vector<1x128xf32>
    %516 = vector.broadcast %515 : vector<1x128xf32> to vector<2x128xf32>
    %517 = arith.addf %514, %516 : vector<2x128xf32>
    %518 = arith.negf %517 : vector<2x128xf32>
    %519 = math.exp %518 : vector<2x128xf32>
    %cst_148 = arith.constant 1.000000e+00 : f32
    %520 = vector.broadcast %cst_148 : f32 to vector<2x128xf32>
    %521 = arith.addf %520, %519 : vector<2x128xf32>
    %522 = arith.divf %520, %521 : vector<2x128xf32>
    %523 = math.tanh %517 : vector<2x128xf32>
    %524 = vector.extract_strided_slice %522 {offsets = [0, 0], sizes = [2, 32], strides = [1, 1]} : vector<2x128xf32> to vector<2x32xf32>
    %525 = vector.extract_strided_slice %522 {offsets = [0, 32], sizes = [2, 32], strides = [1, 1]} : vector<2x128xf32> to vector<2x32xf32>
    %526 = vector.extract_strided_slice %523 {offsets = [0, 64], sizes = [2, 32], strides = [1, 1]} : vector<2x128xf32> to vector<2x32xf32>
    %527 = vector.extract_strided_slice %522 {offsets = [0, 96], sizes = [2, 32], strides = [1, 1]} : vector<2x128xf32> to vector<2x32xf32>
    %528 = arith.mulf %525, %486 : vector<2x32xf32>
    %529 = arith.mulf %524, %526 : vector<2x32xf32>
    %530 = arith.addf %528, %529 : vector<2x32xf32>
    %531 = math.tanh %530 : vector<2x32xf32>
    %532 = arith.mulf %527, %531 : vector<2x32xf32>
    %533 = vector.extract_strided_slice %0 {offsets = [0, 4, 0], sizes = [2, 1, 16], strides = [1, 1, 1]} : vector<2x8x16xf32> to vector<2x1x16xf32>
    %534 = vector.shape_cast %533 : vector<2x1x16xf32> to vector<2x16xf32>
    %535 = tpu.concatenate %534, %511 in 1 : vector<2x16xf32>, vector<2x32xf32> -> vector<2x48xf32>
    %c0_149 = arith.constant 0 : index
    %c0_150 = arith.constant 0 : index
    %536 = vector.load %arg5[%c0_149, %c0_150] : memref<48x128xf32, #tpu.memory_space<vmem>>, vector<48x128xf32>
    %cst_151 = arith.constant dense<0.000000e+00> : vector<2x128xf32>
    %537 = tpu.matmul %535, %536, %cst_151 {dimension_numbers = #tpu.dot_dimension_numbers<[1], [0], [0], [1], [0, 0, 1, 1], [], []>} : vector<2x48xf32>, vector<48x128xf32>, vector<2x128xf32> -> vector<2x128xf32>
    %c0_152 = arith.constant 0 : index
    %c0_153 = arith.constant 0 : index
    %538 = vector.load %arg6[%c0_152, %c0_153] : memref<1x128xf32, #tpu.memory_space<vmem>>, vector<1x128xf32>
    %539 = vector.broadcast %538 : vector<1x128xf32> to vector<2x128xf32>
    %540 = arith.addf %537, %539 : vector<2x128xf32>
    %541 = arith.negf %540 : vector<2x128xf32>
    %542 = math.exp %541 : vector<2x128xf32>
    %cst_154 = arith.constant 1.000000e+00 : f32
    %543 = vector.broadcast %cst_154 : f32 to vector<2x128xf32>
    %544 = arith.addf %543, %542 : vector<2x128xf32>
    %545 = arith.divf %543, %544 : vector<2x128xf32>
    %546 = math.tanh %540 : vector<2x128xf32>
    %547 = vector.extract_strided_slice %545 {offsets = [0, 0], sizes = [2, 32], strides = [1, 1]} : vector<2x128xf32> to vector<2x32xf32>
    %548 = vector.extract_strided_slice %545 {offsets = [0, 32], sizes = [2, 32], strides = [1, 1]} : vector<2x128xf32> to vector<2x32xf32>
    %549 = vector.extract_strided_slice %546 {offsets = [0, 64], sizes = [2, 32], strides = [1, 1]} : vector<2x128xf32> to vector<2x32xf32>
    %550 = vector.extract_strided_slice %545 {offsets = [0, 96], sizes = [2, 32], strides = [1, 1]} : vector<2x128xf32> to vector<2x32xf32>
    %551 = arith.mulf %548, %509 : vector<2x32xf32>
    %552 = arith.mulf %547, %549 : vector<2x32xf32>
    %553 = arith.addf %551, %552 : vector<2x32xf32>
    %554 = math.tanh %553 : vector<2x32xf32>
    %555 = arith.mulf %550, %554 : vector<2x32xf32>
    %556 = tpu.concatenate %555, %532 in 1 : vector<2x32xf32>, vector<2x32xf32> -> vector<2x64xf32>
    %c0_155 = arith.constant 0 : index
    %c0_156 = arith.constant 0 : index
    %557 = vector.load %arg7[%c0_155, %c0_156] : memref<64x128xf32, #tpu.memory_space<vmem>>, vector<64x128xf32>
    %cst_157 = arith.constant dense<0.000000e+00> : vector<2x128xf32>
    %558 = tpu.matmul %556, %557, %cst_157 {dimension_numbers = #tpu.dot_dimension_numbers<[1], [0], [0], [1], [0, 0, 1, 1], [], []>} : vector<2x64xf32>, vector<64x128xf32>, vector<2x128xf32> -> vector<2x128xf32>
    %c0_158 = arith.constant 0 : index
    %c0_159 = arith.constant 0 : index
    %559 = vector.load %arg8[%c0_158, %c0_159] : memref<1x128xf32, #tpu.memory_space<vmem>>, vector<1x128xf32>
    %560 = vector.broadcast %559 : vector<1x128xf32> to vector<2x128xf32>
    %561 = arith.addf %558, %560 : vector<2x128xf32>
    %562 = arith.negf %561 : vector<2x128xf32>
    %563 = math.exp %562 : vector<2x128xf32>
    %cst_160 = arith.constant 1.000000e+00 : f32
    %564 = vector.broadcast %cst_160 : f32 to vector<2x128xf32>
    %565 = arith.addf %564, %563 : vector<2x128xf32>
    %566 = arith.divf %564, %565 : vector<2x128xf32>
    %567 = math.tanh %561 : vector<2x128xf32>
    %568 = vector.extract_strided_slice %566 {offsets = [0, 0], sizes = [2, 32], strides = [1, 1]} : vector<2x128xf32> to vector<2x32xf32>
    %569 = vector.extract_strided_slice %566 {offsets = [0, 32], sizes = [2, 32], strides = [1, 1]} : vector<2x128xf32> to vector<2x32xf32>
    %570 = vector.extract_strided_slice %567 {offsets = [0, 64], sizes = [2, 32], strides = [1, 1]} : vector<2x128xf32> to vector<2x32xf32>
    %571 = vector.extract_strided_slice %566 {offsets = [0, 96], sizes = [2, 32], strides = [1, 1]} : vector<2x128xf32> to vector<2x32xf32>
    %572 = arith.mulf %569, %530 : vector<2x32xf32>
    %573 = arith.mulf %568, %570 : vector<2x32xf32>
    %574 = arith.addf %572, %573 : vector<2x32xf32>
    %575 = math.tanh %574 : vector<2x32xf32>
    %576 = arith.mulf %571, %575 : vector<2x32xf32>
    %577 = vector.extract_strided_slice %0 {offsets = [0, 5, 0], sizes = [2, 1, 16], strides = [1, 1, 1]} : vector<2x8x16xf32> to vector<2x1x16xf32>
    %578 = vector.shape_cast %577 : vector<2x1x16xf32> to vector<2x16xf32>
    %579 = tpu.concatenate %578, %555 in 1 : vector<2x16xf32>, vector<2x32xf32> -> vector<2x48xf32>
    %c0_161 = arith.constant 0 : index
    %c0_162 = arith.constant 0 : index
    %580 = vector.load %arg5[%c0_161, %c0_162] : memref<48x128xf32, #tpu.memory_space<vmem>>, vector<48x128xf32>
    %cst_163 = arith.constant dense<0.000000e+00> : vector<2x128xf32>
    %581 = tpu.matmul %579, %580, %cst_163 {dimension_numbers = #tpu.dot_dimension_numbers<[1], [0], [0], [1], [0, 0, 1, 1], [], []>} : vector<2x48xf32>, vector<48x128xf32>, vector<2x128xf32> -> vector<2x128xf32>
    %c0_164 = arith.constant 0 : index
    %c0_165 = arith.constant 0 : index
    %582 = vector.load %arg6[%c0_164, %c0_165] : memref<1x128xf32, #tpu.memory_space<vmem>>, vector<1x128xf32>
    %583 = vector.broadcast %582 : vector<1x128xf32> to vector<2x128xf32>
    %584 = arith.addf %581, %583 : vector<2x128xf32>
    %585 = arith.negf %584 : vector<2x128xf32>
    %586 = math.exp %585 : vector<2x128xf32>
    %cst_166 = arith.constant 1.000000e+00 : f32
    %587 = vector.broadcast %cst_166 : f32 to vector<2x128xf32>
    %588 = arith.addf %587, %586 : vector<2x128xf32>
    %589 = arith.divf %587, %588 : vector<2x128xf32>
    %590 = math.tanh %584 : vector<2x128xf32>
    %591 = vector.extract_strided_slice %589 {offsets = [0, 0], sizes = [2, 32], strides = [1, 1]} : vector<2x128xf32> to vector<2x32xf32>
    %592 = vector.extract_strided_slice %589 {offsets = [0, 32], sizes = [2, 32], strides = [1, 1]} : vector<2x128xf32> to vector<2x32xf32>
    %593 = vector.extract_strided_slice %590 {offsets = [0, 64], sizes = [2, 32], strides = [1, 1]} : vector<2x128xf32> to vector<2x32xf32>
    %594 = vector.extract_strided_slice %589 {offsets = [0, 96], sizes = [2, 32], strides = [1, 1]} : vector<2x128xf32> to vector<2x32xf32>
    %595 = arith.mulf %592, %553 : vector<2x32xf32>
    %596 = arith.mulf %591, %593 : vector<2x32xf32>
    %597 = arith.addf %595, %596 : vector<2x32xf32>
    %598 = math.tanh %597 : vector<2x32xf32>
    %599 = arith.mulf %594, %598 : vector<2x32xf32>
    %600 = tpu.concatenate %599, %576 in 1 : vector<2x32xf32>, vector<2x32xf32> -> vector<2x64xf32>
    %c0_167 = arith.constant 0 : index
    %c0_168 = arith.constant 0 : index
    %601 = vector.load %arg7[%c0_167, %c0_168] : memref<64x128xf32, #tpu.memory_space<vmem>>, vector<64x128xf32>
    %cst_169 = arith.constant dense<0.000000e+00> : vector<2x128xf32>
    %602 = tpu.matmul %600, %601, %cst_169 {dimension_numbers = #tpu.dot_dimension_numbers<[1], [0], [0], [1], [0, 0, 1, 1], [], []>} : vector<2x64xf32>, vector<64x128xf32>, vector<2x128xf32> -> vector<2x128xf32>
    %c0_170 = arith.constant 0 : index
    %c0_171 = arith.constant 0 : index
    %603 = vector.load %arg8[%c0_170, %c0_171] : memref<1x128xf32, #tpu.memory_space<vmem>>, vector<1x128xf32>
    %604 = vector.broadcast %603 : vector<1x128xf32> to vector<2x128xf32>
    %605 = arith.addf %602, %604 : vector<2x128xf32>
    %606 = arith.negf %605 : vector<2x128xf32>
    %607 = math.exp %606 : vector<2x128xf32>
    %cst_172 = arith.constant 1.000000e+00 : f32
    %608 = vector.broadcast %cst_172 : f32 to vector<2x128xf32>
    %609 = arith.addf %608, %607 : vector<2x128xf32>
    %610 = arith.divf %608, %609 : vector<2x128xf32>
    %611 = math.tanh %605 : vector<2x128xf32>
    %612 = vector.extract_strided_slice %610 {offsets = [0, 0], sizes = [2, 32], strides = [1, 1]} : vector<2x128xf32> to vector<2x32xf32>
    %613 = vector.extract_strided_slice %610 {offsets = [0, 32], sizes = [2, 32], strides = [1, 1]} : vector<2x128xf32> to vector<2x32xf32>
    %614 = vector.extract_strided_slice %611 {offsets = [0, 64], sizes = [2, 32], strides = [1, 1]} : vector<2x128xf32> to vector<2x32xf32>
    %615 = vector.extract_strided_slice %610 {offsets = [0, 96], sizes = [2, 32], strides = [1, 1]} : vector<2x128xf32> to vector<2x32xf32>
    %616 = arith.mulf %613, %574 : vector<2x32xf32>
    %617 = arith.mulf %612, %614 : vector<2x32xf32>
    %618 = arith.addf %616, %617 : vector<2x32xf32>
    %619 = math.tanh %618 : vector<2x32xf32>
    %620 = arith.mulf %615, %619 : vector<2x32xf32>
    %621 = vector.extract_strided_slice %0 {offsets = [0, 6, 0], sizes = [2, 1, 16], strides = [1, 1, 1]} : vector<2x8x16xf32> to vector<2x1x16xf32>
    %622 = vector.shape_cast %621 : vector<2x1x16xf32> to vector<2x16xf32>
    %623 = tpu.concatenate %622, %599 in 1 : vector<2x16xf32>, vector<2x32xf32> -> vector<2x48xf32>
    %c0_173 = arith.constant 0 : index
    %c0_174 = arith.constant 0 : index
    %624 = vector.load %arg5[%c0_173, %c0_174] : memref<48x128xf32, #tpu.memory_space<vmem>>, vector<48x128xf32>
    %cst_175 = arith.constant dense<0.000000e+00> : vector<2x128xf32>
    %625 = tpu.matmul %623, %624, %cst_175 {dimension_numbers = #tpu.dot_dimension_numbers<[1], [0], [0], [1], [0, 0, 1, 1], [], []>} : vector<2x48xf32>, vector<48x128xf32>, vector<2x128xf32> -> vector<2x128xf32>
    %c0_176 = arith.constant 0 : index
    %c0_177 = arith.constant 0 : index
    %626 = vector.load %arg6[%c0_176, %c0_177] : memref<1x128xf32, #tpu.memory_space<vmem>>, vector<1x128xf32>
    %627 = vector.broadcast %626 : vector<1x128xf32> to vector<2x128xf32>
    %628 = arith.addf %625, %627 : vector<2x128xf32>
    %629 = arith.negf %628 : vector<2x128xf32>
    %630 = math.exp %629 : vector<2x128xf32>
    %cst_178 = arith.constant 1.000000e+00 : f32
    %631 = vector.broadcast %cst_178 : f32 to vector<2x128xf32>
    %632 = arith.addf %631, %630 : vector<2x128xf32>
    %633 = arith.divf %631, %632 : vector<2x128xf32>
    %634 = math.tanh %628 : vector<2x128xf32>
    %635 = vector.extract_strided_slice %633 {offsets = [0, 0], sizes = [2, 32], strides = [1, 1]} : vector<2x128xf32> to vector<2x32xf32>
    %636 = vector.extract_strided_slice %633 {offsets = [0, 32], sizes = [2, 32], strides = [1, 1]} : vector<2x128xf32> to vector<2x32xf32>
    %637 = vector.extract_strided_slice %634 {offsets = [0, 64], sizes = [2, 32], strides = [1, 1]} : vector<2x128xf32> to vector<2x32xf32>
    %638 = vector.extract_strided_slice %633 {offsets = [0, 96], sizes = [2, 32], strides = [1, 1]} : vector<2x128xf32> to vector<2x32xf32>
    %639 = arith.mulf %636, %597 : vector<2x32xf32>
    %640 = arith.mulf %635, %637 : vector<2x32xf32>
    %641 = arith.addf %639, %640 : vector<2x32xf32>
    %642 = math.tanh %641 : vector<2x32xf32>
    %643 = arith.mulf %638, %642 : vector<2x32xf32>
    %644 = tpu.concatenate %643, %620 in 1 : vector<2x32xf32>, vector<2x32xf32> -> vector<2x64xf32>
    %c0_179 = arith.constant 0 : index
    %c0_180 = arith.constant 0 : index
    %645 = vector.load %arg7[%c0_179, %c0_180] : memref<64x128xf32, #tpu.memory_space<vmem>>, vector<64x128xf32>
    %cst_181 = arith.constant dense<0.000000e+00> : vector<2x128xf32>
    %646 = tpu.matmul %644, %645, %cst_181 {dimension_numbers = #tpu.dot_dimension_numbers<[1], [0], [0], [1], [0, 0, 1, 1], [], []>} : vector<2x64xf32>, vector<64x128xf32>, vector<2x128xf32> -> vector<2x128xf32>
    %c0_182 = arith.constant 0 : index
    %c0_183 = arith.constant 0 : index
    %647 = vector.load %arg8[%c0_182, %c0_183] : memref<1x128xf32, #tpu.memory_space<vmem>>, vector<1x128xf32>
    %648 = vector.broadcast %647 : vector<1x128xf32> to vector<2x128xf32>
    %649 = arith.addf %646, %648 : vector<2x128xf32>
    %650 = arith.negf %649 : vector<2x128xf32>
    %651 = math.exp %650 : vector<2x128xf32>
    %cst_184 = arith.constant 1.000000e+00 : f32
    %652 = vector.broadcast %cst_184 : f32 to vector<2x128xf32>
    %653 = arith.addf %652, %651 : vector<2x128xf32>
    %654 = arith.divf %652, %653 : vector<2x128xf32>
    %655 = math.tanh %649 : vector<2x128xf32>
    %656 = vector.extract_strided_slice %654 {offsets = [0, 0], sizes = [2, 32], strides = [1, 1]} : vector<2x128xf32> to vector<2x32xf32>
    %657 = vector.extract_strided_slice %654 {offsets = [0, 32], sizes = [2, 32], strides = [1, 1]} : vector<2x128xf32> to vector<2x32xf32>
    %658 = vector.extract_strided_slice %655 {offsets = [0, 64], sizes = [2, 32], strides = [1, 1]} : vector<2x128xf32> to vector<2x32xf32>
    %659 = vector.extract_strided_slice %654 {offsets = [0, 96], sizes = [2, 32], strides = [1, 1]} : vector<2x128xf32> to vector<2x32xf32>
    %660 = arith.mulf %657, %618 : vector<2x32xf32>
    %661 = arith.mulf %656, %658 : vector<2x32xf32>
    %662 = arith.addf %660, %661 : vector<2x32xf32>
    %663 = math.tanh %662 : vector<2x32xf32>
    %664 = arith.mulf %659, %663 : vector<2x32xf32>
    %665 = vector.extract_strided_slice %0 {offsets = [0, 7, 0], sizes = [2, 1, 16], strides = [1, 1, 1]} : vector<2x8x16xf32> to vector<2x1x16xf32>
    %666 = vector.shape_cast %665 : vector<2x1x16xf32> to vector<2x16xf32>
    %667 = tpu.concatenate %666, %643 in 1 : vector<2x16xf32>, vector<2x32xf32> -> vector<2x48xf32>
    %c0_185 = arith.constant 0 : index
    %c0_186 = arith.constant 0 : index
    %668 = vector.load %arg5[%c0_185, %c0_186] : memref<48x128xf32, #tpu.memory_space<vmem>>, vector<48x128xf32>
    %cst_187 = arith.constant dense<0.000000e+00> : vector<2x128xf32>
    %669 = tpu.matmul %667, %668, %cst_187 {dimension_numbers = #tpu.dot_dimension_numbers<[1], [0], [0], [1], [0, 0, 1, 1], [], []>} : vector<2x48xf32>, vector<48x128xf32>, vector<2x128xf32> -> vector<2x128xf32>
    %c0_188 = arith.constant 0 : index
    %c0_189 = arith.constant 0 : index
    %670 = vector.load %arg6[%c0_188, %c0_189] : memref<1x128xf32, #tpu.memory_space<vmem>>, vector<1x128xf32>
    %671 = vector.broadcast %670 : vector<1x128xf32> to vector<2x128xf32>
    %672 = arith.addf %669, %671 : vector<2x128xf32>
    %673 = arith.negf %672 : vector<2x128xf32>
    %674 = math.exp %673 : vector<2x128xf32>
    %cst_190 = arith.constant 1.000000e+00 : f32
    %675 = vector.broadcast %cst_190 : f32 to vector<2x128xf32>
    %676 = arith.addf %675, %674 : vector<2x128xf32>
    %677 = arith.divf %675, %676 : vector<2x128xf32>
    %678 = math.tanh %672 : vector<2x128xf32>
    %679 = vector.extract_strided_slice %677 {offsets = [0, 0], sizes = [2, 32], strides = [1, 1]} : vector<2x128xf32> to vector<2x32xf32>
    %680 = vector.extract_strided_slice %677 {offsets = [0, 32], sizes = [2, 32], strides = [1, 1]} : vector<2x128xf32> to vector<2x32xf32>
    %681 = vector.extract_strided_slice %678 {offsets = [0, 64], sizes = [2, 32], strides = [1, 1]} : vector<2x128xf32> to vector<2x32xf32>
    %682 = vector.extract_strided_slice %677 {offsets = [0, 96], sizes = [2, 32], strides = [1, 1]} : vector<2x128xf32> to vector<2x32xf32>
    %683 = arith.mulf %680, %641 : vector<2x32xf32>
    %684 = arith.mulf %679, %681 : vector<2x32xf32>
    %685 = arith.addf %683, %684 : vector<2x32xf32>
    %686 = math.tanh %685 : vector<2x32xf32>
    %687 = arith.mulf %682, %686 : vector<2x32xf32>
    %688 = tpu.concatenate %687, %664 in 1 : vector<2x32xf32>, vector<2x32xf32> -> vector<2x64xf32>
    %c0_191 = arith.constant 0 : index
    %c0_192 = arith.constant 0 : index
    %689 = vector.load %arg7[%c0_191, %c0_192] : memref<64x128xf32, #tpu.memory_space<vmem>>, vector<64x128xf32>
    %cst_193 = arith.constant dense<0.000000e+00> : vector<2x128xf32>
    %690 = tpu.matmul %688, %689, %cst_193 {dimension_numbers = #tpu.dot_dimension_numbers<[1], [0], [0], [1], [0, 0, 1, 1], [], []>} : vector<2x64xf32>, vector<64x128xf32>, vector<2x128xf32> -> vector<2x128xf32>
    %c0_194 = arith.constant 0 : index
    %c0_195 = arith.constant 0 : index
    %691 = vector.load %arg8[%c0_194, %c0_195] : memref<1x128xf32, #tpu.memory_space<vmem>>, vector<1x128xf32>
    %692 = vector.broadcast %691 : vector<1x128xf32> to vector<2x128xf32>
    %693 = arith.addf %690, %692 : vector<2x128xf32>
    %694 = arith.negf %693 : vector<2x128xf32>
    %695 = math.exp %694 : vector<2x128xf32>
    %cst_196 = arith.constant 1.000000e+00 : f32
    %696 = vector.broadcast %cst_196 : f32 to vector<2x128xf32>
    %697 = arith.addf %696, %695 : vector<2x128xf32>
    %698 = arith.divf %696, %697 : vector<2x128xf32>
    %699 = math.tanh %693 : vector<2x128xf32>
    %700 = vector.extract_strided_slice %698 {offsets = [0, 0], sizes = [2, 32], strides = [1, 1]} : vector<2x128xf32> to vector<2x32xf32>
    %701 = vector.extract_strided_slice %698 {offsets = [0, 32], sizes = [2, 32], strides = [1, 1]} : vector<2x128xf32> to vector<2x32xf32>
    %702 = vector.extract_strided_slice %699 {offsets = [0, 64], sizes = [2, 32], strides = [1, 1]} : vector<2x128xf32> to vector<2x32xf32>
    %703 = vector.extract_strided_slice %698 {offsets = [0, 96], sizes = [2, 32], strides = [1, 1]} : vector<2x128xf32> to vector<2x32xf32>
    %704 = arith.mulf %701, %662 : vector<2x32xf32>
    %705 = arith.mulf %700, %702 : vector<2x32xf32>
    %706 = arith.addf %704, %705 : vector<2x32xf32>
    %707 = math.tanh %706 : vector<2x32xf32>
    %708 = arith.mulf %703, %707 : vector<2x32xf32>
    %709 = vector.shape_cast %576 : vector<2x32xf32> to vector<2x1x32xf32>
    %710 = vector.shape_cast %620 : vector<2x32xf32> to vector<2x1x32xf32>
    %711 = vector.shape_cast %664 : vector<2x32xf32> to vector<2x1x32xf32>
    %712 = vector.shape_cast %708 : vector<2x32xf32> to vector<2x1x32xf32>
    %713 = tpu.concatenate %709, %710, %711, %712 in 1 : vector<2x1x32xf32>, vector<2x1x32xf32>, vector<2x1x32xf32>, vector<2x1x32xf32> -> vector<2x4x32xf32>
    %714 = vector.shape_cast %713 : vector<2x4x32xf32> to vector<8x32xf32>
    %c0_197 = arith.constant 0 : index
    %c0_198 = arith.constant 0 : index
    %715 = vector.load %arg9[%c0_197, %c0_198] : memref<32x8xf32, #tpu.memory_space<vmem>>, vector<32x8xf32>
    %cst_199 = arith.constant dense<0.000000e+00> : vector<8x8xf32>
    %716 = tpu.matmul %714, %715, %cst_199 {dimension_numbers = #tpu.dot_dimension_numbers<[1], [0], [0], [1], [0, 0, 1, 1], [], []>} : vector<8x32xf32>, vector<32x8xf32>, vector<8x8xf32> -> vector<8x8xf32>
    %c0_200 = arith.constant 0 : index
    %c0_201 = arith.constant 0 : index
    %717 = vector.load %arg10[%c0_200, %c0_201] : memref<1x8xf32, #tpu.memory_space<vmem>>, vector<1x8xf32>
    %718 = vector.broadcast %717 : vector<1x8xf32> to vector<8x8xf32>
    %719 = arith.addf %716, %718 : vector<8x8xf32>
    %720 = vector.shape_cast %719 : vector<8x8xf32> to vector<2x4x8xf32>
    %c0_202 = arith.constant 0 : index
    %c0_203 = arith.constant 0 : index
    %c0_204 = arith.constant 0 : index
    %721 = vector.load %arg11[%c0_202, %c0_203, %c0_204] : memref<2x4x8xf32, #tpu.memory_space<vmem>>, vector<2x4x8xf32>
    tpu.vector_store %arg11[%c0_202, %c0_203, %c0_204], %720 {strides = array<i32>} : memref<2x4x8xf32, #tpu.memory_space<vmem>>, vector<2x4x8xf32>,
    return
  }
}

</mosaic_0001>

<llo_original>
// kernel: tpu_custom_call.1
$region0: #{tpu_custom_call.1}
  #allocation0 [shape = 'u32[]', space=smem, size = 0x4, offset = 0x4, fixed_abs, tag = 'smem constant byte address 0x4 - core index']
  #allocation1 [shape = 'u32[144,128]{1,0:T(1,128)}', space=vmem, size = 0x12000, scoped, tag = 'internal scratch']
  %s0 = inlined_call_operand.hbm [shape: f32[2,8,16], index: 0, kind: input, shape index: {}]
  %s1 = inlined_call_operand.hbm [shape: f32[48,128], index: 1, kind: input, shape index: {}]
  %s2 = inlined_call_operand.vmem [shape: f32[1,128], index: 2, kind: input, shape index: {}]
  %s3 = inlined_call_operand.hbm [shape: f32[64,128], index: 3, kind: input, shape index: {}]
  %s4 = inlined_call_operand.vmem [shape: f32[1,128], index: 4, kind: input, shape index: {}]
  %s5 = inlined_call_operand.hbm [shape: f32[48,128], index: 5, kind: input, shape index: {}]
  %s6 = inlined_call_operand.hbm [shape: f32[1,128], index: 6, kind: input, shape index: {}]
  %s7 = inlined_call_operand.vmem [shape: f32[64,128], index: 7, kind: input, shape index: {}]
  %s8 = inlined_call_operand.hbm [shape: f32[1,128], index: 8, kind: input, shape index: {}]
  %s9 = inlined_call_operand.vmem [shape: f32[32,8], index: 9, kind: input, shape index: {}]
  %s10 = inlined_call_operand.vmem [shape: f32[1,8], index: 10, kind: input, shape index: {}]
  %s11 = inlined_call_operand.hbm [shape: f32[2,4,8], index: 11, kind: output, shape index: {}]
  %s12 = sld [smem:[#allocation0]]
  $region78: #{tpu_custom_call.1} parent=0
    _
  %s14 = ssub.s32 1, %s12
  %s15 = scalar_select 0, %s14, %s12
  $region1: #{tpu_custom_call.1} parent=0
    #allocation2 [shape = 'u8[8192]{0}', space=vmem, size = 0x2000, scoped, tag = 'input window, operand 0, single buffered']
    #allocation3 [shape = 's32[1]{0}', space=sflag, size = 0x4, scoped, tag = 'scoped memory for tpu_custom_call.1']
    #allocation4 [shape = 's32[1]{0}', space=sflag, size = 0x4, scoped, tag = 'scoped memory for tpu_custom_call.1']
    #allocation5 [shape = 'u8[24576]{0}', space=vmem, size = 0x6000, scoped, tag = 'input window, operand 1, single buffered']
    #allocation6 [shape = 's32[1]{0}', space=sflag, size = 0x4, scoped, tag = 'scoped memory for tpu_custom_call.1']
    #allocation7 [shape = 'u8[32768]{0}', space=vmem, size = 0x8000, scoped, tag = 'input window, operand 3, single buffered']
    #allocation8 [shape = 'u8[24576]{0}', space=vmem, size = 0x6000, scoped, tag = 'input window, operand 5, single buffered']
    #allocation9 [shape = 's32[1]{0}', space=sflag, size = 0x4, scoped, tag = 'scoped memory for tpu_custom_call.1']
    #allocation10 [shape = 'u8[512]{0}', space=vmem, size = 0x400, scoped, tag = 'input window, operand 6, single buffered']
    #allocation11 [shape = 'u8[512]{0}', space=vmem, size = 0x400, scoped, tag = 'input window, operand 8, single buffered']
    #allocation12 [shape = 's32[1]{0}', space=sflag, size = 0x4, scoped, tag = 'scoped memory for tpu_custom_call.1']
    #allocation13 [shape = 'u8[4096]{0}', space=vmem, size = 0x1000, scoped, tag = 'output window, operand 0, single buffered']
    %16 = vsyncpa [#allocation3], 0
    %17 = vsyncpa [#allocation6], 0
    %18 = vsyncpa [#allocation9], 0
    %19 = vsyncpa [#allocation12], 0
    %20 = vsyncpa [#allocation4], 0
    // Predicated region
    $region2: #{tpu_custom_call.1} parent=1 // pred_check
      _
    $region3: #{tpu_custom_call.1} parent=1 // pred_check_branch
      %22 = sbr.rel (0) target = $region5
    $region4: #{tpu_custom_call.1} parent=1 // pred_region
      %s24 = ssub.s32 256, 256
      %25 = vsyncadd [#allocation3], %s24
      %s26 = sshll.u32 [#allocation2], 4
      %s27 = int_to_ptr.vmem [resolvable:$true] %s26
      %32 = dma.hbm_to_vmem [thread:$0]  %s0, 256, %s27, [#allocation3], 128, 128, 8
    $region5: #{tpu_custom_call.1} parent=1 // pred_fallthru
      _
    // Predicated region
    $region6: #{tpu_custom_call.1} parent=1 // pred_check
      _
    $region7: #{tpu_custom_call.1} parent=1 // pred_check_branch
      %34 = sbr.rel (0) target = $region9
    $region8: #{tpu_custom_call.1} parent=1 // pred_region
      %s36 = ssub.s32 768, 768
      %37 = vsyncadd [#allocation6], %s36
      %s38 = sshll.u32 [#allocation5], 4
      %s39 = int_to_ptr.vmem [resolvable:$true] %s38
      %44 = dma.hbm_to_vmem [thread:$0]  %s1, 768, %s39, [#allocation6], 128, 128, 8
    $region9: #{tpu_custom_call.1} parent=1 // pred_fallthru
      _
    // Predicated region
    $region10: #{tpu_custom_call.1} parent=1 // pred_check
      _
    $region11: #{tpu_custom_call.1} parent=1 // pred_check_branch
      %46 = sbr.rel (0) target = $region13
    $region12: #{tpu_custom_call.1} parent=1 // pred_region
      _
    $region13: #{tpu_custom_call.1} parent=1 // pred_fallthru
      _
    // Predicated region
    $region14: #{tpu_custom_call.1} parent=1 // pred_check
      _
    $region15: #{tpu_custom_call.1} parent=1 // pred_check_branch
      %48 = sbr.rel (0) target = $region17
    $region16: #{tpu_custom_call.1} parent=1 // pred_region
      %s50 = ssub.s32 1024, 1024
      %51 = vsyncadd [#allocation6], %s50
      %s52 = sshll.u32 [#allocation7], 4
      %s53 = int_to_ptr.vmem [resolvable:$true] %s52
      %58 = dma.hbm_to_vmem [thread:$0]  %s3, 1024, %s53, [#allocation6], 128, 128, 8
    $region17: #{tpu_custom_call.1} parent=1 // pred_fallthru
      _
    // Predicated region
    $region18: #{tpu_custom_call.1} parent=1 // pred_check
      _
    $region19: #{tpu_custom_call.1} parent=1 // pred_check_branch
      %60 = sbr.rel (0) target = $region21
    $region20: #{tpu_custom_call.1} parent=1 // pred_region
      _
    $region21: #{tpu_custom_call.1} parent=1 // pred_fallthru
      _
    // Predicated region
    $region22: #{tpu_custom_call.1} parent=1 // pred_check
      _
    $region23: #{tpu_custom_call.1} parent=1 // pred_check_branch
      %62 = sbr.rel (0) target = $region25
    $region24: #{tpu_custom_call.1} parent=1 // pred_region
      %s64 = ssub.s32 768, 768
      %65 = vsyncadd [#allocation9], %s64
      %s66 = sshll.u32 [#allocation8], 4
      %s67 = int_to_ptr.vmem [resolvable:$true] %s66
      %72 = dma.hbm_to_vmem [thread:$0]  %s5, 768, %s67, [#allocation9], 128, 128, 8
    $region25: #{tpu_custom_call.1} parent=1 // pred_fallthru
      _
    // Predicated region
    $region26: #{tpu_custom_call.1} parent=1 // pred_check
      _
    $region27: #{tpu_custom_call.1} parent=1 // pred_check_branch
      %74 = sbr.rel (0) target = $region29
    $region28: #{tpu_custom_call.1} parent=1 // pred_region
      %s76 = ssub.s32 16, 16
      %77 = vsyncadd [#allocation9], %s76
      %s79 = sshll.u32 [#allocation10], 4
      %s80 = int_to_ptr.vmem [resolvable:$true] %s79
      %82 = dma.hbm_to_vmem [thread:$0]  %s6, 16, %s80, [#allocation9]
    $region29: #{tpu_custom_call.1} parent=1 // pred_fallthru
      _
    // Predicated region
    $region30: #{tpu_custom_call.1} parent=1 // pred_check
      _
    $region31: #{tpu_custom_call.1} parent=1 // pred_check_branch
      %84 = sbr.rel (0) target = $region33
    $region32: #{tpu_custom_call.1} parent=1 // pred_region
      _
    $region33: #{tpu_custom_call.1} parent=1 // pred_fallthru
      _
    // Predicated region
    $region34: #{tpu_custom_call.1} parent=1 // pred_check
      _
    $region35: #{tpu_custom_call.1} parent=1 // pred_check_branch
      %86 = sbr.rel (0) target = $region37
    $region36: #{tpu_custom_call.1} parent=1 // pred_region
      %s88 = ssub.s32 16, 16
      %89 = vsyncadd [#allocation12], %s88
      %s91 = sshll.u32 [#allocation11], 4
      %s92 = int_to_ptr.vmem [resolvable:$true] %s91
      %94 = dma.hbm_to_vmem [thread:$0]  %s8, 16, %s92, [#allocation12]
    $region37: #{tpu_custom_call.1} parent=1 // pred_fallthru
      _
    // Predicated region
    $region38: #{tpu_custom_call.1} parent=1 // pred_check
      _
    $region39: #{tpu_custom_call.1} parent=1 // pred_check_branch
      %96 = sbr.rel (0) target = $region41
    $region40: #{tpu_custom_call.1} parent=1 // pred_region
      _
    $region41: #{tpu_custom_call.1} parent=1 // pred_fallthru
      _
    // Predicated region
    $region42: #{tpu_custom_call.1} parent=1 // pred_check
      _
    $region43: #{tpu_custom_call.1} parent=1 // pred_check_branch
      %98 = sbr.rel (0) target = $region45
    $region44: #{tpu_custom_call.1} parent=1 // pred_region
      _
    $region45: #{tpu_custom_call.1} parent=1 // pred_fallthru
      _
    // Predicated region
    $region46: #{tpu_custom_call.1} parent=1 // pred_check
      _
    $region47: #{tpu_custom_call.1} parent=1 // pred_check_branch
      %100 = sbr.rel (0) target = $region49
    $region48: #{tpu_custom_call.1} parent=1 // pred_region
      %101 = dma.done [#allocation3], 256
    $region49: #{tpu_custom_call.1} parent=1 // pred_fallthru
      _
    // Predicated region
    $region50: #{tpu_custom_call.1} parent=1 // pred_check
      _
    $region51: #{tpu_custom_call.1} parent=1 // pred_check_branch
      %103 = sbr.rel (0) target = $region53
    $region52: #{tpu_custom_call.1} parent=1 // pred_region
      %104 = dma.done [#allocation6], 768
    $region53: #{tpu_custom_call.1} parent=1 // pred_fallthru
      _
    // Predicated region
    $region54: #{tpu_custom_call.1} parent=1 // pred_check
      _
    $region55: #{tpu_custom_call.1} parent=1 // pred_check_branch
      %106 = sbr.rel (0) target = $region57
    $region56: #{tpu_custom_call.1} parent=1 // pred_region
      %107 = dma.done [#allocation6], 1024
    $region57: #{tpu_custom_call.1} parent=1 // pred_fallthru
      _
    // Predicated region
    $region58: #{tpu_custom_call.1} parent=1 // pred_check
      _
    $region59: #{tpu_custom_call.1} parent=1 // pred_check_branch
      %109 = sbr.rel (0) target = $region61
    $region60: #{tpu_custom_call.1} parent=1 // pred_region
      %110 = dma.done [#allocation9], 768
    $region61: #{tpu_custom_call.1} parent=1 // pred_fallthru
      _
    // Predicated region
    $region62: #{tpu_custom_call.1} parent=1 // pred_check
      _
    $region63: #{tpu_custom_call.1} parent=1 // pred_check_branch
      %112 = sbr.rel (0) target = $region65
    $region64: #{tpu_custom_call.1} parent=1 // pred_region
      %113 = dma.done [#allocation9], 16
    $region65: #{tpu_custom_call.1} parent=1 // pred_fallthru
      _
    // Predicated region
    $region66: #{tpu_custom_call.1} parent=1 // pred_check
      _
    $region67: #{tpu_custom_call.1} parent=1 // pred_check_branch
      %115 = sbr.rel (0) target = $region69
    $region68: #{tpu_custom_call.1} parent=1 // pred_region
      %116 = dma.done [#allocation12], 16
    $region69: #{tpu_custom_call.1} parent=1 // pred_fallthru
      _
    %v117 = vld [vmem:[#allocation2] sm:$0xff]
    %v118 = vld [vmem:[#allocation2 + $0x8] sm:$0xff]
    %v121 = vrot.slane %v118, 7
    %vm122 = vcmask 1041409
    %v123 = vsel %vm122, %v121, %v117
    %vm125 = vcmask 130048
    %v126 = vsel %vm125, %v123, 0.0
    %v127 = vld [vmem:[#allocation5] sm:$0xff]
    %v128 = vld [vmem:[#allocation5 + $0x8] sm:$0xff]
    %v129 = vld [vmem:[#allocation5 + $0x10] sm:$0xff]
    %v130 = vld [vmem:[#allocation5 + $0x18] sm:$0xff]
    %v131 = vld [vmem:[#allocation5 + $0x20] sm:$0xff]
    %v132 = vld [vmem:[#allocation5 + $0x28] sm:$0xff]
    %v133 = vld [vmem:[%s2] sm:$0x1]
    %v135 = vlaneseq
    %v136 = vshrl.u32 %v135, 7
    %v137 = vsub.s32 0, %v136
    %v138 = vrot.slane %v133, %v137
    %vm140 = vcmask 392192
    %v142 = vsel %vm140, %v126, 0
    %144 = vmatprep.subr.mxu0 0.0
    %145 = vmatpush1.msra.mxu0 %v127
    %146 = vmatprep.subr.mxu0 0.0
    %147 = vmatpush1.msra.mxu0 %v128
    %148 = vmatprep.subr.mxu0 0.0
    %149 = vmatpush1.msra.mxu0 %v129
    %150 = vmatprep.subr.mxu0 0.0
    %151 = vmatpush1.msra.mxu0 %v130
    %152 = vmatprep.subr.mxu0 0.0
    %153 = vmatpush1.msra.mxu0 %v131
    %154 = vmatprep.subr.mxu0 0.0
    %155 = vmatpush1.msra.mxu0 %v132
    %156 = vmatprep.subr.mxu0 0.0
    %157 = vmatpush1.msra.mxu0 0.0
    %158 = vmatprep.subr.mxu0 0.0
    %159 = vmatpush1.msra.mxu0 0.0
    %160 = vmatprep.subr.mxu0 0.0
    %161 = vmatpush1.msra.mxu0 0.0
    %162 = vmatprep.subr.mxu0 0.0
    %163 = vmatpush1.msra.mxu0 0.0
    %164 = vmatprep.subr.mxu0 0.0
    %165 = vmatpush1.msra.mxu0 0.0
    %166 = vmatprep.subr.mxu0 0.0
    %167 = vmatpush1.msra.mxu0 0.0
    %168 = vmatprep.subr.mxu0 0.0
    %169 = vmatpush1.msra.mxu0 0.0
    %170 = vmatprep.subr.mxu0 0.0
    %171 = vmatpush1.msra.mxu0 0.0
    %172 = vmatprep.subr.mxu0 0.0
    %173 = vmatpush1.msra.mxu0 0.0
    %174 = vmatprep.subr.mxu0 0.0
    %175 = vmatpush1.msra.mxu0 0.0
    %176 = vmatprep.subr.mxu0 0.0
    %177 = vmatpush1.msra.mxu0 0.0
    %178 = vmatprep.subr.mxu0 0.0
    %179 = vmatpush1.msra.mxu0 0.0
    %180 = vmatprep.subr.mxu0 0.0
    %181 = vmatpush1.msra.mxu0 0.0
    %182 = vmatprep.subr.mxu0 0.0
    %183 = vmatpush1.msra.mxu0 0.0
    %184 = vmatprep.subr.mxu0 0.0
    %185 = vmatpush1.msra.mxu0 0.0
    %186 = vmatprep.subr.mxu0 0.0
    %187 = vmatpush1.msra.mxu0 0.0
    %188 = vmatprep.subr.mxu0 0.0
    %189 = vmatpush1.msra.mxu0 0.0
    %190 = vmatprep.subr.mxu0 0.0
    %191 = vmatpush1.msra.mxu0 0.0
    %192 = vmatprep.subr.mxu0 0.0
    %193 = vmatpush1.msra.mxu0 0.0
    %194 = vmatprep.subr.mxu0 0.0
    %195 = vmatpush1.msra.mxu0 0.0
    %196 = vmatprep.subr.mxu0 0.0
    %197 = vmatpush1.msra.mxu0 0.0
    %198 = vmatprep.subr.mxu0 0.0
    %199 = vmatpush1.msra.mxu0 0.0
    %200 = vmatprep.subr.mxu0 0.0
    %201 = vmatpush1.msra.mxu0 0.0
    %202 = vmatprep.subr.mxu0 0.0
    %203 = vmatpush1.msra.mxu0 0.0
    %204 = vmatprep.subr.mxu0 0.0
    %205 = vmatpush1.msra.mxu0 0.0
    %206 = vmatprep.subr.mxu0 0.0
    %207 = vmatpush1.msra.mxu0 0.0
    %208 = vmatprep.mubr.f32.mxu0 0.0
    %209 = vmatmul.mubr.f32.gmra.mrb[0].mxu0 %v142
    %v210 = vpop.f32.mrb[0].mxu0
    %v211 = vadd.f32 %v138, %v210
    %v212 = vpop.f32.mrb[0].mxu0
    %213 = vdwg.mxu0
    %v214 = vxor.u32 %v211, 2147483648
    %v215 = vmul.f32 %v214, 1.442695
    %v216 = vpow.pop %v215
    %v217 = vadd.f32 %v216, 1.0
    %v218 = vrcp.pop %v217
    %v219 = vmul.f32 1.0, %v218
    %v220 = vtanh.pop %v211
    %v221 = vmul.f32 %v219, 0.0
    %223 = vrot.lane.b32.xlu0 %v220, 64
    %v224 = vpop.permute.xlu0 %223
    %v226 = vmul.f32 %v219, %v224
    %228 = vrot.lane.b32.xlu0 %v226, 32
    %v229 = vpop.permute.xlu0 %228
    %v231 = vadd.f32 %v221, %v229
    %v232 = vtanh.pop %v231
    %234 = vrot.lane.b32.xlu0 %v232, 64
    %v235 = vpop.permute.xlu0 %234
    %v237 = vmul.f32 %v219, %v235
    %239 = vrot.lane.b32.xlu0 %v237, 32
    %v240 = vpop.permute.xlu0 %239
    %vm242 = vcmask 261120
    %v243 = vsel %vm242, %v240, 0.0
    %v244 = vld [vmem:[#allocation7] sm:$0xff]
    %v245 = vld [vmem:[#allocation7 + $0x8] sm:$0xff]
    %v246 = vld [vmem:[#allocation7 + $0x10] sm:$0xff]
    %v247 = vld [vmem:[#allocation7 + $0x18] sm:$0xff]
    %v248 = vld [vmem:[#allocation7 + $0x20] sm:$0xff]
    %v249 = vld [vmem:[#allocation7 + $0x28] sm:$0xff]
    %v250 = vld [vmem:[#allocation7 + $0x30] sm:$0xff]
    %v251 = vld [vmem:[#allocation7 + $0x38] sm:$0xff]
    %v252 = vld [vmem:[%s4] sm:$0x1]
    %v254 = vlaneseq
    %v255 = vshrl.u32 %v254, 7
    %v256 = vsub.s32 0, %v255
    %v257 = vrot.slane %v252, %v256
    %vm259 = vcmask 523264
    %v261 = vsel %vm259, %v243, 0
    %263 = vmatprep.subr.mxu0 0.0
    %264 = vmatpush1.msra.mxu0 %v244
    %265 = vmatprep.subr.mxu0 0.0
    %266 = vmatpush1.msra.mxu0 %v245
    %267 = vmatprep.subr.mxu0 0.0
    %268 = vmatpush1.msra.mxu0 %v246
    %269 = vmatprep.subr.mxu0 0.0
    %270 = vmatpush1.msra.mxu0 %v247
    %271 = vmatprep.subr.mxu0 0.0
    %272 = vmatpush1.msra.mxu0 %v248
    %273 = vmatprep.subr.mxu0 0.0
    %274 = vmatpush1.msra.mxu0 %v249
    %275 = vmatprep.subr.mxu0 0.0
    %276 = vmatpush1.msra.mxu0 %v250
    %277 = vmatprep.subr.mxu0 0.0
    %278 = vmatpush1.msra.mxu0 %v251
    %279 = vmatprep.subr.mxu0 0.0
    %280 = vmatpush1.msra.mxu0 0.0
    %281 = vmatprep.subr.mxu0 0.0
    %282 = vmatpush1.msra.mxu0 0.0
    %283 = vmatprep.subr.mxu0 0.0
    %284 = vmatpush1.msra.mxu0 0.0
    %285 = vmatprep.subr.mxu0 0.0
    %286 = vmatpush1.msra.mxu0 0.0
    %287 = vmatprep.subr.mxu0 0.0
    %288 = vmatpush1.msra.mxu0 0.0
    %289 = vmatprep.subr.mxu0 0.0
    %290 = vmatpush1.msra.mxu0 0.0
    %291 = vmatprep.subr.mxu0 0.0
    %292 = vmatpush1.msra.mxu0 0.0
    %293 = vmatprep.subr.mxu0 0.0
    %294 = vmatpush1.msra.mxu0 0.0
    %295 = vmatprep.subr.mxu0 0.0
    %296 = vmatpush1.msra.mxu0 0.0
    %297 = vmatprep.subr.mxu0 0.0
    %298 = vmatpush1.msra.mxu0 0.0
    %299 = vmatprep.subr.mxu0 0.0
    %300 = vmatpush1.msra.mxu0 0.0
    %301 = vmatprep.subr.mxu0 0.0
    %302 = vmatpush1.msra.mxu0 0.0
    %303 = vmatprep.subr.mxu0 0.0
    %304 = vmatpush1.msra.mxu0 0.0
    %305 = vmatprep.subr.mxu0 0.0
    %306 = vmatpush1.msra.mxu0 0.0
    %307 = vmatprep.subr.mxu0 0.0
    %308 = vmatpush1.msra.mxu0 0.0
    %309 = vmatprep.subr.mxu0 0.0
    %310 = vmatpush1.msra.mxu0 0.0
    %311 = vmatprep.subr.mxu0 0.0
    %312 = vmatpush1.msra.mxu0 0.0
    %313 = vmatprep.subr.mxu0 0.0
    %314 = vmatpush1.msra.mxu0 0.0
    %315 = vmatprep.subr.mxu0 0.0
    %316 = vmatpush1.msra.mxu0 0.0
    %317 = vmatprep.subr.mxu0 0.0
    %318 = vmatpush1.msra.mxu0 0.0
    %319 = vmatprep.subr.mxu0 0.0
    %320 = vmatpush1.msra.mxu0 0.0
    %321 = vmatprep.subr.mxu0 0.0
    %322 = vmatpush1.msra.mxu0 0.0
    %323 = vmatprep.subr.mxu0 0.0
    %324 = vmatpush1.msra.mxu0 0.0
    %325 = vmatprep.subr.mxu0 0.0
    %326 = vmatpush1.msra.mxu0 0.0
    %327 = vmatprep.mubr.f32.mxu0 0.0
    %328 = vmatmul.mubr.f32.gmra.mrb[0].mxu0 %v261
    %v329 = vpop.f32.mrb[0].mxu0
    %v330 = vadd.f32 %v257, %v329
    %v331 = vpop.f32.mrb[0].mxu0
    %332 = vdwg.mxu0
    %v333 = vxor.u32 %v330, 2147483648
    %v334 = vmul.f32 %v333, 1.442695
    %v335 = vpow.pop %v334
    %v336 = vadd.f32 %v335, 1.0
    %v337 = vrcp.pop %v336
    %v338 = vmul.f32 1.0, %v337
    %v339 = vtanh.pop %v330
    %v340 = vmul.f32 %v338, 0.0
    %342 = vrot.lane.b32.xlu0 %v339, 64
    %v343 = vpop.permute.xlu0 %342
    %v345 = vmul.f32 %v338, %v343
    %347 = vrot.lane.b32.xlu0 %v345, 32
    %v348 = vpop.permute.xlu0 %347
    %v350 = vadd.f32 %v340, %v348
    %v351 = vtanh.pop %v350
    %353 = vrot.lane.b32.xlu0 %v351, 64
    %v354 = vpop.permute.xlu0 %353
    %v356 = vmul.f32 %v338, %v354
    %vm357 = vcmask 1042434
    %v358 = vsel %vm357, %v121, %v117
    %v360 = vrot.slane %v237, 7
    %361 = vrot.lane.b32.xlu0 %v360, 48
    %v362 = vpop.permute.xlu0 %361
    %v364 = vsel %vm125, %v358, %v362
    %v366 = vrot.slane %v364, 1
    %v367 = vsel %vm140, %v366, 0
    %369 = vmatprep.subr.mxu0 0.0
    %370 = vmatpush1.msra.mxu0 %v127
    %371 = vmatprep.subr.mxu0 0.0
    %372 = vmatpush1.msra.mxu0 %v128
    %373 = vmatprep.subr.mxu0 0.0
    %374 = vmatpush1.msra.mxu0 %v129
    %375 = vmatprep.subr.mxu0 0.0
    %376 = vmatpush1.msra.mxu0 %v130
    %377 = vmatprep.subr.mxu0 0.0
    %378 = vmatpush1.msra.mxu0 %v131
    %379 = vmatprep.subr.mxu0 0.0
    %380 = vmatpush1.msra.mxu0 %v132
    %381 = vmatprep.subr.mxu0 0.0
    %382 = vmatpush1.msra.mxu0 0.0
    %383 = vmatprep.subr.mxu0 0.0
    %384 = vmatpush1.msra.mxu0 0.0
    %385 = vmatprep.subr.mxu0 0.0
    %386 = vmatpush1.msra.mxu0 0.0
    %387 = vmatprep.subr.mxu0 0.0
    %388 = vmatpush1.msra.mxu0 0.0
    %389 = vmatprep.subr.mxu0 0.0
    %390 = vmatpush1.msra.mxu0 0.0
    %391 = vmatprep.subr.mxu0 0.0
    %392 = vmatpush1.msra.mxu0 0.0
    %393 = vmatprep.subr.mxu0 0.0
    %394 = vmatpush1.msra.mxu0 0.0
    %395 = vmatprep.subr.mxu0 0.0
    %396 = vmatpush1.msra.mxu0 0.0
    %397 = vmatprep.subr.mxu0 0.0
    %398 = vmatpush1.msra.mxu0 0.0
    %399 = vmatprep.subr.mxu0 0.0
    %400 = vmatpush1.msra.mxu0 0.0
    %401 = vmatprep.subr.mxu0 0.0
    %402 = vmatpush1.msra.mxu0 0.0
    %403 = vmatprep.subr.mxu0 0.0
    %404 = vmatpush1.msra.mxu0 0.0
    %405 = vmatprep.subr.mxu0 0.0
    %406 = vmatpush1.msra.mxu0 0.0
    %407 = vmatprep.subr.mxu0 0.0
    %408 = vmatpush1.msra.mxu0 0.0
    %409 = vmatprep.subr.mxu0 0.0
    %410 = vmatpush1.msra.mxu0 0.0
    %411 = vmatprep.subr.mxu0 0.0
    %412 = vmatpush1.msra.mxu0 0.0
    %413 = vmatprep.subr.mxu0 0.0
    %414 = vmatpush1.msra.mxu0 0.0
    %415 = vmatprep.subr.mxu0 0.0
    %416 = vmatpush1.msra.mxu0 0.0
    %417 = vmatprep.subr.mxu0 0.0
    %418 = vmatpush1.msra.mxu0 0.0
    %419 = vmatprep.subr.mxu0 0.0
    %420 = vmatpush1.msra.mxu0 0.0
    %421 = vmatprep.subr.mxu0 0.0
    %422 = vmatpush1.msra.mxu0 0.0
    %423 = vmatprep.subr.mxu0 0.0
    %424 = vmatpush1.msra.mxu0 0.0
    %425 = vmatprep.subr.mxu0 0.0
    %426 = vmatpush1.msra.mxu0 0.0
    %427 = vmatprep.subr.mxu0 0.0
    %428 = vmatpush1.msra.mxu0 0.0
    %429 = vmatprep.subr.mxu0 0.0
    %430 = vmatpush1.msra.mxu0 0.0
    %431 = vmatprep.subr.mxu0 0.0
    %432 = vmatpush1.msra.mxu0 0.0
    %433 = vmatprep.mubr.f32.mxu0 0.0
    %434 = vmatmul.mubr.f32.gmra.mrb[0].mxu0 %v367
    %v435 = vpop.f32.mrb[0].mxu0
    %v436 = vadd.f32 %v138, %v435
    %v437 = vpop.f32.mrb[0].mxu0
    %438 = vdwg.mxu0
    %v439 = vxor.u32 %v436, 2147483648
    %v440 = vmul.f32 %v439, 1.442695
    %v441 = vpow.pop %v440
    %v442 = vadd.f32 %v441, 1.0
    %v443 = vrcp.pop %v442
    %v444 = vmul.f32 1.0, %v443
    %v445 = vtanh.pop %v436
    %v446 = vmul.f32 %v444, %v231
    %448 = vrot.lane.b32.xlu0 %v445, 64
    %v449 = vpop.permute.xlu0 %448
    %v451 = vmul.f32 %v444, %v449
    %453 = vrot.lane.b32.xlu0 %v451, 32
    %v454 = vpop.permute.xlu0 %453
    %v456 = vadd.f32 %v446, %v454
    %v457 = vtanh.pop %v456
    %459 = vrot.lane.b32.xlu0 %v457, 64
    %v460 = vpop.permute.xlu0 %459
    %v462 = vmul.f32 %v444, %v460
    %464 = vrot.lane.b32.xlu0 %v462, 32
    %v465 = vpop.permute.xlu0 %464
    %468 = vrot.lane.b32.xlu0 %v356, 64
    %v469 = vpop.permute.xlu0 %468
    %v471 = vsel %vm242, %v465, %v469
    %v473 = vsel %vm259, %v471, 0
    %475 = vmatprep.subr.mxu0 0.0
    %476 = vmatpush1.msra.mxu0 %v244
    %477 = vmatprep.subr.mxu0 0.0
    %478 = vmatpush1.msra.mxu0 %v245
    %479 = vmatprep.subr.mxu0 0.0
    %480 = vmatpush1.msra.mxu0 %v246
    %481 = vmatprep.subr.mxu0 0.0
    %482 = vmatpush1.msra.mxu0 %v247
    %483 = vmatprep.subr.mxu0 0.0
    %484 = vmatpush1.msra.mxu0 %v248
    %485 = vmatprep.subr.mxu0 0.0
    %486 = vmatpush1.msra.mxu0 %v249
    %487 = vmatprep.subr.mxu0 0.0
    %488 = vmatpush1.msra.mxu0 %v250
    %489 = vmatprep.subr.mxu0 0.0
    %490 = vmatpush1.msra.mxu0 %v251
    %491 = vmatprep.subr.mxu0 0.0
    %492 = vmatpush1.msra.mxu0 0.0
    %493 = vmatprep.subr.mxu0 0.0
    %494 = vmatpush1.msra.mxu0 0.0
    %495 = vmatprep.subr.mxu0 0.0
    %496 = vmatpush1.msra.mxu0 0.0
    %497 = vmatprep.subr.mxu0 0.0
    %498 = vmatpush1.msra.mxu0 0.0
    %499 = vmatprep.subr.mxu0 0.0
    %500 = vmatpush1.msra.mxu0 0.0
    %501 = vmatprep.subr.mxu0 0.0
    %502 = vmatpush1.msra.mxu0 0.0
    %503 = vmatprep.subr.mxu0 0.0
    %504 = vmatpush1.msra.mxu0 0.0
    %505 = vmatprep.subr.mxu0 0.0
    %506 = vmatpush1.msra.mxu0 0.0
    %507 = vmatprep.subr.mxu0 0.0
    %508 = vmatpush1.msra.mxu0 0.0
    %509 = vmatprep.subr.mxu0 0.0
    %510 = vmatpush1.msra.mxu0 0.0
    %511 = vmatprep.subr.mxu0 0.0
    %512 = vmatpush1.msra.mxu0 0.0
    %513 = vmatprep.subr.mxu0 0.0
    %514 = vmatpush1.msra.mxu0 0.0
    %515 = vmatprep.subr.mxu0 0.0
    %516 = vmatpush1.msra.mxu0 0.0
    %517 = vmatprep.subr.mxu0 0.0
    %518 = vmatpush1.msra.mxu0 0.0
    %519 = vmatprep.subr.mxu0 0.0
    %520 = vmatpush1.msra.mxu0 0.0
    %521 = vmatprep.subr.mxu0 0.0
    %522 = vmatpush1.msra.mxu0 0.0
    %523 = vmatprep.subr.mxu0 0.0
    %524 = vmatpush1.msra.mxu0 0.0
    %525 = vmatprep.subr.mxu0 0.0
    %526 = vmatpush1.msra.mxu0 0.0
    %527 = vmatprep.subr.mxu0 0.0
    %528 = vmatpush1.msra.mxu0 0.0
    %529 = vmatprep.subr.mxu0 0.0
    %530 = vmatpush1.msra.mxu0 0.0
    %531 = vmatprep.subr.mxu0 0.0
    %532 = vmatpush1.msra.mxu0 0.0
    %533 = vmatprep.subr.mxu0 0.0
    %534 = vmatpush1.msra.mxu0 0.0
    %535 = vmatprep.subr.mxu0 0.0
    %536 = vmatpush1.msra.mxu0 0.0
    %537 = vmatprep.subr.mxu0 0.0
    %538 = vmatpush1.msra.mxu0 0.0
    %539 = vmatprep.mubr.f32.mxu0 0.0
    %540 = vmatmul.mubr.f32.gmra.mrb[0].mxu0 %v473
    %v541 = vpop.f32.mrb[0].mxu0
    %v542 = vadd.f32 %v257, %v541
    %v543 = vpop.f32.mrb[0].mxu0
    %544 = vdwg.mxu0
    %v545 = vxor.u32 %v542, 2147483648
    %v546 = vmul.f32 %v545, 1.442695
    %v547 = vpow.pop %v546
    %v548 = vadd.f32 %v547, 1.0
    %v549 = vrcp.pop %v548
    %v550 = vmul.f32 1.0, %v549
    %v551 = vtanh.pop %v542
    %v552 = vmul.f32 %v550, %v350
    %554 = vrot.lane.b32.xlu0 %v551, 64
    %v555 = vpop.permute.xlu0 %554
    %v557 = vmul.f32 %v550, %v555
    %559 = vrot.lane.b32.xlu0 %v557, 32
    %v560 = vpop.permute.xlu0 %559
    %v562 = vadd.f32 %v552, %v560
    %v563 = vtanh.pop %v562
    %565 = vrot.lane.b32.xlu0 %v563, 64
    %v566 = vpop.permute.xlu0 %565
    %v568 = vmul.f32 %v550, %v566
    %vm569 = vcmask 1043459
    %v570 = vsel %vm569, %v121, %v117
    %v572 = vrot.slane %v462, 6
    %573 = vrot.lane.b32.xlu0 %v572, 48
    %v574 = vpop.permute.xlu0 %573
    %v576 = vsel %vm125, %v570, %v574
    %v578 = vrot.slane %v576, 2
    %v579 = vsel %vm140, %v578, 0
    %581 = vmatprep.subr.mxu0 0.0
    %582 = vmatpush1.msra.mxu0 %v127
    %583 = vmatprep.subr.mxu0 0.0
    %584 = vmatpush1.msra.mxu0 %v128
    %585 = vmatprep.subr.mxu0 0.0
    %586 = vmatpush1.msra.mxu0 %v129
    %587 = vmatprep.subr.mxu0 0.0
    %588 = vmatpush1.msra.mxu0 %v130
    %589 = vmatprep.subr.mxu0 0.0
    %590 = vmatpush1.msra.mxu0 %v131
    %591 = vmatprep.subr.mxu0 0.0
    %592 = vmatpush1.msra.mxu0 %v132
    %593 = vmatprep.subr.mxu0 0.0
    %594 = vmatpush1.msra.mxu0 0.0
    %595 = vmatprep.subr.mxu0 0.0
    %596 = vmatpush1.msra.mxu0 0.0
    %597 = vmatprep.subr.mxu0 0.0
    %598 = vmatpush1.msra.mxu0 0.0
    %599 = vmatprep.subr.mxu0 0.0
    %600 = vmatpush1.msra.mxu0 0.0
    %601 = vmatprep.subr.mxu0 0.0
    %602 = vmatpush1.msra.mxu0 0.0
    %603 = vmatprep.subr.mxu0 0.0
    %604 = vmatpush1.msra.mxu0 0.0
    %605 = vmatprep.subr.mxu0 0.0
    %606 = vmatpush1.msra.mxu0 0.0
    %607 = vmatprep.subr.mxu0 0.0
    %608 = vmatpush1.msra.mxu0 0.0
    %609 = vmatprep.subr.mxu0 0.0
    %610 = vmatpush1.msra.mxu0 0.0
    %611 = vmatprep.subr.mxu0 0.0
    %612 = vmatpush1.msra.mxu0 0.0
    %613 = vmatprep.subr.mxu0 0.0
    %614 = vmatpush1.msra.mxu0 0.0
    %615 = vmatprep.subr.mxu0 0.0
    %616 = vmatpush1.msra.mxu0 0.0
    %617 = vmatprep.subr.mxu0 0.0
    %618 = vmatpush1.msra.mxu0 0.0
    %619 = vmatprep.subr.mxu0 0.0
    %620 = vmatpush1.msra.mxu0 0.0
    %621 = vmatprep.subr.mxu0 0.0
    %622 = vmatpush1.msra.mxu0 0.0
    %623 = vmatprep.subr.mxu0 0.0
    %624 = vmatpush1.msra.mxu0 0.0
    %625 = vmatprep.subr.mxu0 0.0
    %626 = vmatpush1.msra.mxu0 0.0
    %627 = vmatprep.subr.mxu0 0.0
    %628 = vmatpush1.msra.mxu0 0.0
    %629 = vmatprep.subr.mxu0 0.0
    %630 = vmatpush1.msra.mxu0 0.0
    %631 = vmatprep.subr.mxu0 0.0
    %632 = vmatpush1.msra.mxu0 0.0
    %633 = vmatprep.subr.mxu0 0.0
    %634 = vmatpush1.msra.mxu0 0.0
    %635 = vmatprep.subr.mxu0 0.0
    %636 = vmatpush1.msra.mxu0 0.0
    %637 = vmatprep.subr.mxu0 0.0
    %638 = vmatpush1.msra.mxu0 0.0
    %639 = vmatprep.subr.mxu0 0.0
    %640 = vmatpush1.msra.mxu0 0.0
    %641 = vmatprep.subr.mxu0 0.0
    %642 = vmatpush1.msra.mxu0 0.0
    %643 = vmatprep.subr.mxu0 0.0
    %644 = vmatpush1.msra.mxu0 0.0
    %645 = vmatprep.mubr.f32.mxu0 0.0
    %646 = vmatmul.mubr.f32.gmra.mrb[0].mxu0 %v579
    %v647 = vpop.f32.mrb[0].mxu0
    %v648 = vadd.f32 %v138, %v647
    %v649 = vpop.f32.mrb[0].mxu0
    %650 = vdwg.mxu0
    %v651 = vxor.u32 %v648, 2147483648
    %v652 = vmul.f32 %v651, 1.442695
    %v653 = vpow.pop %v652
    %v654 = vadd.f32 %v653, 1.0
    %v655 = vrcp.pop %v654
    %v656 = vmul.f32 1.0, %v655
    %v657 = vtanh.pop %v648
    %v658 = vmul.f32 %v656, %v456
    %660 = vrot.lane.b32.xlu0 %v657, 64
    %v661 = vpop.permute.xlu0 %660
    %v663 = vmul.f32 %v656, %v661
    %665 = vrot.lane.b32.xlu0 %v663, 32
    %v666 = vpop.permute.xlu0 %665
    %v668 = vadd.f32 %v658, %v666
    %v669 = vtanh.pop %v668
    %671 = vrot.lane.b32.xlu0 %v669, 64
    %v672 = vpop.permute.xlu0 %671
    %v674 = vmul.f32 %v656, %v672
    %676 = vrot.lane.b32.xlu0 %v674, 32
    %v677 = vpop.permute.xlu0 %676
    %680 = vrot.lane.b32.xlu0 %v568, 64
    %v681 = vpop.permute.xlu0 %680
    %v683 = vsel %vm242, %v677, %v681
    %v685 = vsel %vm259, %v683, 0
    %687 = vmatprep.subr.mxu0 0.0
    %688 = vmatpush1.msra.mxu0 %v244
    %689 = vmatprep.subr.mxu0 0.0
    %690 = vmatpush1.msra.mxu0 %v245
    %691 = vmatprep.subr.mxu0 0.0
    %692 = vmatpush1.msra.mxu0 %v246
    %693 = vmatprep.subr.mxu0 0.0
    %694 = vmatpush1.msra.mxu0 %v247
    %695 = vmatprep.subr.mxu0 0.0
    %696 = vmatpush1.msra.mxu0 %v248
    %697 = vmatprep.subr.mxu0 0.0
    %698 = vmatpush1.msra.mxu0 %v249
    %699 = vmatprep.subr.mxu0 0.0
    %700 = vmatpush1.msra.mxu0 %v250
    %701 = vmatprep.subr.mxu0 0.0
    %702 = vmatpush1.msra.mxu0 %v251
    %703 = vmatprep.subr.mxu0 0.0
    %704 = vmatpush1.msra.mxu0 0.0
    %705 = vmatprep.subr.mxu0 0.0
    %706 = vmatpush1.msra.mxu0 0.0
    %707 = vmatprep.subr.mxu0 0.0
    %708 = vmatpush1.msra.mxu0 0.0
    %709 = vmatprep.subr.mxu0 0.0
    %710 = vmatpush1.msra.mxu0 0.0
    %711 = vmatprep.subr.mxu0 0.0
    %712 = vmatpush1.msra.mxu0 0.0
    %713 = vmatprep.subr.mxu0 0.0
    %714 = vmatpush1.msra.mxu0 0.0
    %715 = vmatprep.subr.mxu0 0.0
    %716 = vmatpush1.msra.mxu0 0.0
    %717 = vmatprep.subr.mxu0 0.0
    %718 = vmatpush1.msra.mxu0 0.0
    %719 = vmatprep.subr.mxu0 0.0
    %720 = vmatpush1.msra.mxu0 0.0
    %721 = vmatprep.subr.mxu0 0.0
    %722 = vmatpush1.msra.mxu0 0.0
    %723 = vmatprep.subr.mxu0 0.0
    %724 = vmatpush1.msra.mxu0 0.0
    %725 = vmatprep.subr.mxu0 0.0
    %726 = vmatpush1.msra.mxu0 0.0
    %727 = vmatprep.subr.mxu0 0.0
    %728 = vmatpush1.msra.mxu0 0.0
    %729 = vmatprep.subr.mxu0 0.0
    %730 = vmatpush1.msra.mxu0 0.0
    %731 = vmatprep.subr.mxu0 0.0
    %732 = vmatpush1.msra.mxu0 0.0
    %733 = vmatprep.subr.mxu0 0.0
    %734 = vmatpush1.msra.mxu0 0.0
    %735 = vmatprep.subr.mxu0 0.0
    %736 = vmatpush1.msra.mxu0 0.0
    %737 = vmatprep.subr.mxu0 0.0
    %738 = vmatpush1.msra.mxu0 0.0
    %739 = vmatprep.subr.mxu0 0.0
    %740 = vmatpush1.msra.mxu0 0.0
    %741 = vmatprep.subr.mxu0 0.0
    %742 = vmatpush1.msra.mxu0 0.0
    %743 = vmatprep.subr.mxu0 0.0
    %744 = vmatpush1.msra.mxu0 0.0
    %745 = vmatprep.subr.mxu0 0.0
    %746 = vmatpush1.msra.mxu0 0.0
    %747 = vmatprep.subr.mxu0 0.0
    %748 = vmatpush1.msra.mxu0 0.0
    %749 = vmatprep.subr.mxu0 0.0
    %750 = vmatpush1.msra.mxu0 0.0
    %751 = vmatprep.mubr.f32.mxu0 0.0
    %752 = vmatmul.mubr.f32.gmra.mrb[0].mxu0 %v685
    %v753 = vpop.f32.mrb[0].mxu0
    %v754 = vadd.f32 %v257, %v753
    %v755 = vpop.f32.mrb[0].mxu0
    %756 = vdwg.mxu0
    %v757 = vxor.u32 %v754, 2147483648
    %v758 = vmul.f32 %v757, 1.442695
    %v759 = vpow.pop %v758
    %v760 = vadd.f32 %v759, 1.0
    %v761 = vrcp.pop %v760
    %v762 = vmul.f32 1.0, %v761
    %v763 = vtanh.pop %v754
    %v764 = vmul.f32 %v762, %v562
    %766 = vrot.lane.b32.xlu0 %v763, 64
    %v767 = vpop.permute.xlu0 %766
    %v769 = vmul.f32 %v762, %v767
    %771 = vrot.lane.b32.xlu0 %v769, 32
    %v772 = vpop.permute.xlu0 %771
    %v774 = vadd.f32 %v764, %v772
    %v775 = vtanh.pop %v774
    %777 = vrot.lane.b32.xlu0 %v775, 64
    %v778 = vpop.permute.xlu0 %777
    %v780 = vmul.f32 %v762, %v778
    %vm781 = vcmask 1044484
    %v782 = vsel %vm781, %v121, %v117
    %v784 = vrot.slane %v674, 5
    %785 = vrot.lane.b32.xlu0 %v784, 48
    %v786 = vpop.permute.xlu0 %785
    %v788 = vsel %vm125, %v782, %v786
    %v790 = vrot.slane %v788, 3
    %v791 = vsel %vm140, %v790, 0
    %793 = vmatprep.subr.mxu0 0.0
    %794 = vmatpush1.msra.mxu0 %v127
    %795 = vmatprep.subr.mxu0 0.0
    %796 = vmatpush1.msra.mxu0 %v128
    %797 = vmatprep.subr.mxu0 0.0
    %798 = vmatpush1.msra.mxu0 %v129
    %799 = vmatprep.subr.mxu0 0.0
    %800 = vmatpush1.msra.mxu0 %v130
    %801 = vmatprep.subr.mxu0 0.0
    %802 = vmatpush1.msra.mxu0 %v131
    %803 = vmatprep.subr.mxu0 0.0
    %804 = vmatpush1.msra.mxu0 %v132
    %805 = vmatprep.subr.mxu0 0.0
    %806 = vmatpush1.msra.mxu0 0.0
    %807 = vmatprep.subr.mxu0 0.0
    %808 = vmatpush1.msra.mxu0 0.0
    %809 = vmatprep.subr.mxu0 0.0
    %810 = vmatpush1.msra.mxu0 0.0
    %811 = vmatprep.subr.mxu0 0.0
    %812 = vmatpush1.msra.mxu0 0.0
    %813 = vmatprep.subr.mxu0 0.0
    %814 = vmatpush1.msra.mxu0 0.0
    %815 = vmatprep.subr.mxu0 0.0
    %816 = vmatpush1.msra.mxu0 0.0
    %817 = vmatprep.subr.mxu0 0.0
    %818 = vmatpush1.msra.mxu0 0.0
    %819 = vmatprep.subr.mxu0 0.0
    %820 = vmatpush1.msra.mxu0 0.0
    %821 = vmatprep.subr.mxu0 0.0
    %822 = vmatpush1.msra.mxu0 0.0
    %823 = vmatprep.subr.mxu0 0.0
    %824 = vmatpush1.msra.mxu0 0.0
    %825 = vmatprep.subr.mxu0 0.0
    %826 = vmatpush1.msra.mxu0 0.0
    %827 = vmatprep.subr.mxu0 0.0
    %828 = vmatpush1.msra.mxu0 0.0
    %829 = vmatprep.subr.mxu0 0.0
    %830 = vmatpush1.msra.mxu0 0.0
    %831 = vmatprep.subr.mxu0 0.0
    %832 = vmatpush1.msra.mxu0 0.0
    %833 = vmatprep.subr.mxu0 0.0
    %834 = vmatpush1.msra.mxu0 0.0
    %835 = vmatprep.subr.mxu0 0.0
    %836 = vmatpush1.msra.mxu0 0.0
    %837 = vmatprep.subr.mxu0 0.0
    %838 = vmatpush1.msra.mxu0 0.0
    %839 = vmatprep.subr.mxu0 0.0
    %840 = vmatpush1.msra.mxu0 0.0
    %841 = vmatprep.subr.mxu0 0.0
    %842 = vmatpush1.msra.mxu0 0.0
    %843 = vmatprep.subr.mxu0 0.0
    %844 = vmatpush1.msra.mxu0 0.0
    %845 = vmatprep.subr.mxu0 0.0
    %846 = vmatpush1.msra.mxu0 0.0
    %847 = vmatprep.subr.mxu0 0.0
    %848 = vmatpush1.msra.mxu0 0.0
    %849 = vmatprep.subr.mxu0 0.0
    %850 = vmatpush1.msra.mxu0 0.0
    %851 = vmatprep.subr.mxu0 0.0
    %852 = vmatpush1.msra.mxu0 0.0
    %853 = vmatprep.subr.mxu0 0.0
    %854 = vmatpush1.msra.mxu0 0.0
    %855 = vmatprep.subr.mxu0 0.0
    %856 = vmatpush1.msra.mxu0 0.0
    %857 = vmatprep.mubr.f32.mxu0 0.0
    %858 = vmatmul.mubr.f32.gmra.mrb[0].mxu0 %v791
    %v859 = vpop.f32.mrb[0].mxu0
    %v860 = vadd.f32 %v138, %v859
    %v861 = vpop.f32.mrb[0].mxu0
    %862 = vdwg.mxu0
    %v863 = vxor.u32 %v860, 2147483648
    %v864 = vmul.f32 %v863, 1.442695
    %v865 = vpow.pop %v864
    %v866 = vadd.f32 %v865, 1.0
    %v867 = vrcp.pop %v866
    %v868 = vmul.f32 1.0, %v867
    %v869 = vtanh.pop %v860
    %v870 = vmul.f32 %v868, %v668
    %872 = vrot.lane.b32.xlu0 %v869, 64
    %v873 = vpop.permute.xlu0 %872
    %v875 = vmul.f32 %v868, %v873
    %877 = vrot.lane.b32.xlu0 %v875, 32
    %v878 = vpop.permute.xlu0 %877
    %v880 = vadd.f32 %v870, %v878
    %v881 = vtanh.pop %v880
    %883 = vrot.lane.b32.xlu0 %v881, 64
    %v884 = vpop.permute.xlu0 %883
    %v886 = vmul.f32 %v868, %v884
    %888 = vrot.lane.b32.xlu0 %v886, 32
    %v889 = vpop.permute.xlu0 %888
    %892 = vrot.lane.b32.xlu0 %v780, 64
    %v893 = vpop.permute.xlu0 %892
    %v895 = vsel %vm242, %v889, %v893
    %v897 = vsel %vm259, %v895, 0
    %899 = vmatprep.subr.mxu0 0.0
    %900 = vmatpush1.msra.mxu0 %v244
    %901 = vmatprep.subr.mxu0 0.0
    %902 = vmatpush1.msra.mxu0 %v245
    %903 = vmatprep.subr.mxu0 0.0
    %904 = vmatpush1.msra.mxu0 %v246
    %905 = vmatprep.subr.mxu0 0.0
    %906 = vmatpush1.msra.mxu0 %v247
    %907 = vmatprep.subr.mxu0 0.0
    %908 = vmatpush1.msra.mxu0 %v248
    %909 = vmatprep.subr.mxu0 0.0
    %910 = vmatpush1.msra.mxu0 %v249
    %911 = vmatprep.subr.mxu0 0.0
    %912 = vmatpush1.msra.mxu0 %v250
    %913 = vmatprep.subr.mxu0 0.0
    %914 = vmatpush1.msra.mxu0 %v251
    %915 = vmatprep.subr.mxu0 0.0
    %916 = vmatpush1.msra.mxu0 0.0
    %917 = vmatprep.subr.mxu0 0.0
    %918 = vmatpush1.msra.mxu0 0.0
    %919 = vmatprep.subr.mxu0 0.0
    %920 = vmatpush1.msra.mxu0 0.0
    %921 = vmatprep.subr.mxu0 0.0
    %922 = vmatpush1.msra.mxu0 0.0
    %923 = vmatprep.subr.mxu0 0.0
    %924 = vmatpush1.msra.mxu0 0.0
    %925 = vmatprep.subr.mxu0 0.0
    %926 = vmatpush1.msra.mxu0 0.0
    %927 = vmatprep.subr.mxu0 0.0
    %928 = vmatpush1.msra.mxu0 0.0
    %929 = vmatprep.subr.mxu0 0.0
    %930 = vmatpush1.msra.mxu0 0.0
    %931 = vmatprep.subr.mxu0 0.0
    %932 = vmatpush1.msra.mxu0 0.0
    %933 = vmatprep.subr.mxu0 0.0
    %934 = vmatpush1.msra.mxu0 0.0
    %935 = vmatprep.subr.mxu0 0.0
    %936 = vmatpush1.msra.mxu0 0.0
    %937 = vmatprep.subr.mxu0 0.0
    %938 = vmatpush1.msra.mxu0 0.0
    %939 = vmatprep.subr.mxu0 0.0
    %940 = vmatpush1.msra.mxu0 0.0
    %941 = vmatprep.subr.mxu0 0.0
    %942 = vmatpush1.msra.mxu0 0.0
    %943 = vmatprep.subr.mxu0 0.0
    %944 = vmatpush1.msra.mxu0 0.0
    %945 = vmatprep.subr.mxu0 0.0
    %946 = vmatpush1.msra.mxu0 0.0
    %947 = vmatprep.subr.mxu0 0.0
    %948 = vmatpush1.msra.mxu0 0.0
    %949 = vmatprep.subr.mxu0 0.0
    %950 = vmatpush1.msra.mxu0 0.0
    %951 = vmatprep.subr.mxu0 0.0
    %952 = vmatpush1.msra.mxu0 0.0
    %953 = vmatprep.subr.mxu0 0.0
    %954 = vmatpush1.msra.mxu0 0.0
    %955 = vmatprep.subr.mxu0 0.0
    %956 = vmatpush1.msra.mxu0 0.0
    %957 = vmatprep.subr.mxu0 0.0
    %958 = vmatpush1.msra.mxu0 0.0
    %959 = vmatprep.subr.mxu0 0.0
    %960 = vmatpush1.msra.mxu0 0.0
    %961 = vmatprep.subr.mxu0 0.0
    %962 = vmatpush1.msra.mxu0 0.0
    %963 = vmatprep.mubr.f32.mxu0 0.0
    %964 = vmatmul.mubr.f32.gmra.mrb[0].mxu0 %v897
    %v965 = vpop.f32.mrb[0].mxu0
    %v966 = vadd.f32 %v257, %v965
    %v967 = vpop.f32.mrb[0].mxu0
    %968 = vdwg.mxu0
    %v969 = vxor.u32 %v966, 2147483648
    %v970 = vmul.f32 %v969, 1.442695
    %v971 = vpow.pop %v970
    %v972 = vadd.f32 %v971, 1.0
    %v973 = vrcp.pop %v972
    %v974 = vmul.f32 1.0, %v973
    %v975 = vtanh.pop %v966
    %v976 = vmul.f32 %v974, %v774
    %978 = vrot.lane.b32.xlu0 %v975, 64
    %v979 = vpop.permute.xlu0 %978
    %v981 = vmul.f32 %v974, %v979
    %983 = vrot.lane.b32.xlu0 %v981, 32
    %v984 = vpop.permute.xlu0 %983
    %v986 = vadd.f32 %v976, %v984
    %v987 = vtanh.pop %v986
    %989 = vrot.lane.b32.xlu0 %v987, 64
    %v990 = vpop.permute.xlu0 %989
    %v992 = vmul.f32 %v974, %v990
    %vm993 = vcmask 1045509
    %v994 = vsel %vm993, %v121, %v117
    %v996 = vrot.slane %v886, 4
    %997 = vrot.lane.b32.xlu0 %v996, 48
    %v998 = vpop.permute.xlu0 %997
    %v1000 = vsel %vm125, %v994, %v998
    %v1002 = vrot.slane %v1000, 4
    %v1003 = vsel %vm140, %v1002, 0
    %1005 = vmatprep.subr.mxu0 0.0
    %1006 = vmatpush1.msra.mxu0 %v127
    %1007 = vmatprep.subr.mxu0 0.0
    %1008 = vmatpush1.msra.mxu0 %v128
    %1009 = vmatprep.subr.mxu0 0.0
    %1010 = vmatpush1.msra.mxu0 %v129
    %1011 = vmatprep.subr.mxu0 0.0
    %1012 = vmatpush1.msra.mxu0 %v130
    %1013 = vmatprep.subr.mxu0 0.0
    %1014 = vmatpush1.msra.mxu0 %v131
    %1015 = vmatprep.subr.mxu0 0.0
    %1016 = vmatpush1.msra.mxu0 %v132
    %1017 = vmatprep.subr.mxu0 0.0
    %1018 = vmatpush1.msra.mxu0 0.0
    %1019 = vmatprep.subr.mxu0 0.0
    %1020 = vmatpush1.msra.mxu0 0.0
    %1021 = vmatprep.subr.mxu0 0.0
    %1022 = vmatpush1.msra.mxu0 0.0
    %1023 = vmatprep.subr.mxu0 0.0
    %1024 = vmatpush1.msra.mxu0 0.0
    %1025 = vmatprep.subr.mxu0 0.0
    %1026 = vmatpush1.msra.mxu0 0.0
    %1027 = vmatprep.subr.mxu0 0.0
    %1028 = vmatpush1.msra.mxu0 0.0
    %1029 = vmatprep.subr.mxu0 0.0
    %1030 = vmatpush1.msra.mxu0 0.0
    %1031 = vmatprep.subr.mxu0 0.0
    %1032 = vmatpush1.msra.mxu0 0.0
    %1033 = vmatprep.subr.mxu0 0.0
    %1034 = vmatpush1.msra.mxu0 0.0
    %1035 = vmatprep.subr.mxu0 0.0
    %1036 = vmatpush1.msra.mxu0 0.0
    %1037 = vmatprep.subr.mxu0 0.0
    %1038 = vmatpush1.msra.mxu0 0.0
    %1039 = vmatprep.subr.mxu0 0.0
    %1040 = vmatpush1.msra.mxu0 0.0
    %1041 = vmatprep.subr.mxu0 0.0
    %1042 = vmatpush1.msra.mxu0 0.0
    %1043 = vmatprep.subr.mxu0 0.0
    %1044 = vmatpush1.msra.mxu0 0.0
    %1045 = vmatprep.subr.mxu0 0.0
    %1046 = vmatpush1.msra.mxu0 0.0
    %1047 = vmatprep.subr.mxu0 0.0
    %1048 = vmatpush1.msra.mxu0 0.0
    %1049 = vmatprep.subr.mxu0 0.0
    %1050 = vmatpush1.msra.mxu0 0.0
    %1051 = vmatprep.subr.mxu0 0.0
    %1052 = vmatpush1.msra.mxu0 0.0
    %1053 = vmatprep.subr.mxu0 0.0
    %1054 = vmatpush1.msra.mxu0 0.0
    %1055 = vmatprep.subr.mxu0 0.0
    %1056 = vmatpush1.msra.mxu0 0.0
    %1057 = vmatprep.subr.mxu0 0.0
    %1058 = vmatpush1.msra.mxu0 0.0
    %1059 = vmatprep.subr.mxu0 0.0
    %1060 = vmatpush1.msra.mxu0 0.0
    %1061 = vmatprep.subr.mxu0 0.0
    %1062 = vmatpush1.msra.mxu0 0.0
    %1063 = vmatprep.subr.mxu0 0.0
    %1064 = vmatpush1.msra.mxu0 0.0
    %1065 = vmatprep.subr.mxu0 0.0
    %1066 = vmatpush1.msra.mxu0 0.0
    %1067 = vmatprep.subr.mxu0 0.0
    %1068 = vmatpush1.msra.mxu0 0.0
    %1069 = vmatprep.mubr.f32.mxu0 0.0
    %1070 = vmatmul.mubr.f32.gmra.mrb[0].mxu0 %v1003
    %v1071 = vpop.f32.mrb[0].mxu0
    %v1072 = vadd.f32 %v138, %v1071
    %v1073 = vpop.f32.mrb[0].mxu0
    %1074 = vdwg.mxu0
    %v1075 = vxor.u32 %v1072, 2147483648
    %v1076 = vmul.f32 %v1075, 1.442695
    %v1077 = vpow.pop %v1076
    %v1078 = vadd.f32 %v1077, 1.0
    %v1079 = vrcp.pop %v1078
    %v1080 = vmul.f32 1.0, %v1079
    %v1081 = vtanh.pop %v1072
    %v1082 = vmul.f32 %v1080, %v880
    %1084 = vrot.lane.b32.xlu0 %v1081, 64
    %v1085 = vpop.permute.xlu0 %1084
    %v1087 = vmul.f32 %v1080, %v1085
    %1089 = vrot.lane.b32.xlu0 %v1087, 32
    %v1090 = vpop.permute.xlu0 %1089
    %v1092 = vadd.f32 %v1082, %v1090
    %v1093 = vtanh.pop %v1092
    %1095 = vrot.lane.b32.xlu0 %v1093, 64
    %v1096 = vpop.permute.xlu0 %1095
    %v1098 = vmul.f32 %v1080, %v1096
    %1100 = vrot.lane.b32.xlu0 %v1098, 32
    %v1101 = vpop.permute.xlu0 %1100
    %1104 = vrot.lane.b32.xlu0 %v992, 64
    %v1105 = vpop.permute.xlu0 %1104
    %v1107 = vsel %vm242, %v1101, %v1105
    %v1109 = vsel %vm259, %v1107, 0
    %1111 = vmatprep.subr.mxu0 0.0
    %1112 = vmatpush1.msra.mxu0 %v244
    %1113 = vmatprep.subr.mxu0 0.0
    %1114 = vmatpush1.msra.mxu0 %v245
    %1115 = vmatprep.subr.mxu0 0.0
    %1116 = vmatpush1.msra.mxu0 %v246
    %1117 = vmatprep.subr.mxu0 0.0
    %1118 = vmatpush1.msra.mxu0 %v247
    %1119 = vmatprep.subr.mxu0 0.0
    %1120 = vmatpush1.msra.mxu0 %v248
    %1121 = vmatprep.subr.mxu0 0.0
    %1122 = vmatpush1.msra.mxu0 %v249
    %1123 = vmatprep.subr.mxu0 0.0
    %1124 = vmatpush1.msra.mxu0 %v250
    %1125 = vmatprep.subr.mxu0 0.0
    %1126 = vmatpush1.msra.mxu0 %v251
    %1127 = vmatprep.subr.mxu0 0.0
    %1128 = vmatpush1.msra.mxu0 0.0
    %1129 = vmatprep.subr.mxu0 0.0
    %1130 = vmatpush1.msra.mxu0 0.0
    %1131 = vmatprep.subr.mxu0 0.0
    %1132 = vmatpush1.msra.mxu0 0.0
    %1133 = vmatprep.subr.mxu0 0.0
    %1134 = vmatpush1.msra.mxu0 0.0
    %1135 = vmatprep.subr.mxu0 0.0
    %1136 = vmatpush1.msra.mxu0 0.0
    %1137 = vmatprep.subr.mxu0 0.0
    %1138 = vmatpush1.msra.mxu0 0.0
    %1139 = vmatprep.subr.mxu0 0.0
    %1140 = vmatpush1.msra.mxu0 0.0
    %1141 = vmatprep.subr.mxu0 0.0
    %1142 = vmatpush1.msra.mxu0 0.0
    %1143 = vmatprep.subr.mxu0 0.0
    %1144 = vmatpush1.msra.mxu0 0.0
    %1145 = vmatprep.subr.mxu0 0.0
    %1146 = vmatpush1.msra.mxu0 0.0
    %1147 = vmatprep.subr.mxu0 0.0
    %1148 = vmatpush1.msra.mxu0 0.0
    %1149 = vmatprep.subr.mxu0 0.0
    %1150 = vmatpush1.msra.mxu0 0.0
    %1151 = vmatprep.subr.mxu0 0.0
    %1152 = vmatpush1.msra.mxu0 0.0
    %1153 = vmatprep.subr.mxu0 0.0
    %1154 = vmatpush1.msra.mxu0 0.0
    %1155 = vmatprep.subr.mxu0 0.0
    %1156 = vmatpush1.msra.mxu0 0.0
    %1157 = vmatprep.subr.mxu0 0.0
    %1158 = vmatpush1.msra.mxu0 0.0
    %1159 = vmatprep.subr.mxu0 0.0
    %1160 = vmatpush1.msra.mxu0 0.0
    %1161 = vmatprep.subr.mxu0 0.0
    %1162 = vmatpush1.msra.mxu0 0.0
    %1163 = vmatprep.subr.mxu0 0.0
    %1164 = vmatpush1.msra.mxu0 0.0
    %1165 = vmatprep.subr.mxu0 0.0
    %1166 = vmatpush1.msra.mxu0 0.0
    %1167 = vmatprep.subr.mxu0 0.0
    %1168 = vmatpush1.msra.mxu0 0.0
    %1169 = vmatprep.subr.mxu0 0.0
    %1170 = vmatpush1.msra.mxu0 0.0
    %1171 = vmatprep.subr.mxu0 0.0
    %1172 = vmatpush1.msra.mxu0 0.0
    %1173 = vmatprep.subr.mxu0 0.0
    %1174 = vmatpush1.msra.mxu0 0.0
    %1175 = vmatprep.mubr.f32.mxu0 0.0
    %1176 = vmatmul.mubr.f32.gmra.mrb[0].mxu0 %v1109
    %v1177 = vpop.f32.mrb[0].mxu0
    %v1178 = vadd.f32 %v257, %v1177
    %v1179 = vpop.f32.mrb[0].mxu0
    %1180 = vdwg.mxu0
    %v1181 = vxor.u32 %v1178, 2147483648
    %v1182 = vmul.f32 %v1181, 1.442695
    %v1183 = vpow.pop %v1182
    %v1184 = vadd.f32 %v1183, 1.0
    %v1185 = vrcp.pop %v1184
    %v1186 = vmul.f32 1.0, %v1185
    %v1187 = vtanh.pop %v1178
    %v1188 = vmul.f32 %v1186, %v986
    %1190 = vrot.lane.b32.xlu0 %v1187, 64
    %v1191 = vpop.permute.xlu0 %1190
    %v1193 = vmul.f32 %v1186, %v1191
    %1195 = vrot.lane.b32.xlu0 %v1193, 32
    %v1196 = vpop.permute.xlu0 %1195
    %v1198 = vadd.f32 %v1188, %v1196
    %v1199 = vtanh.pop %v1198
    %1201 = vrot.lane.b32.xlu0 %v1199, 64
    %v1202 = vpop.permute.xlu0 %1201
    %v1204 = vmul.f32 %v1186, %v1202
    %vm1205 = vcmask 1046534
    %v1206 = vsel %vm1205, %v121, %v117
    %v1208 = vrot.slane %v1098, 3
    %1209 = vrot.lane.b32.xlu0 %v1208, 48
    %v1210 = vpop.permute.xlu0 %1209
    %v1212 = vsel %vm125, %v1206, %v1210
    %v1214 = vrot.slane %v1212, 5
    %v1215 = vsel %vm140, %v1214, 0
    %1217 = vmatprep.subr.mxu0 0.0
    %1218 = vmatpush1.msra.mxu0 %v127
    %1219 = vmatprep.subr.mxu0 0.0
    %1220 = vmatpush1.msra.mxu0 %v128
    %1221 = vmatprep.subr.mxu0 0.0
    %1222 = vmatpush1.msra.mxu0 %v129
    %1223 = vmatprep.subr.mxu0 0.0
    %1224 = vmatpush1.msra.mxu0 %v130
    %1225 = vmatprep.subr.mxu0 0.0
    %1226 = vmatpush1.msra.mxu0 %v131
    %1227 = vmatprep.subr.mxu0 0.0
    %1228 = vmatpush1.msra.mxu0 %v132
    %1229 = vmatprep.subr.mxu0 0.0
    %1230 = vmatpush1.msra.mxu0 0.0
    %1231 = vmatprep.subr.mxu0 0.0
    %1232 = vmatpush1.msra.mxu0 0.0
    %1233 = vmatprep.subr.mxu0 0.0
    %1234 = vmatpush1.msra.mxu0 0.0
    %1235 = vmatprep.subr.mxu0 0.0
    %1236 = vmatpush1.msra.mxu0 0.0
    %1237 = vmatprep.subr.mxu0 0.0
    %1238 = vmatpush1.msra.mxu0 0.0
    %1239 = vmatprep.subr.mxu0 0.0
    %1240 = vmatpush1.msra.mxu0 0.0
    %1241 = vmatprep.subr.mxu0 0.0
    %1242 = vmatpush1.msra.mxu0 0.0
    %1243 = vmatprep.subr.mxu0 0.0
    %1244 = vmatpush1.msra.mxu0 0.0
    %1245 = vmatprep.subr.mxu0 0.0
    %1246 = vmatpush1.msra.mxu0 0.0
    %1247 = vmatprep.subr.mxu0 0.0
    %1248 = vmatpush1.msra.mxu0 0.0
    %1249 = vmatprep.subr.mxu0 0.0
    %1250 = vmatpush1.msra.mxu0 0.0
    %1251 = vmatprep.subr.mxu0 0.0
    %1252 = vmatpush1.msra.mxu0 0.0
    %1253 = vmatprep.subr.mxu0 0.0
    %1254 = vmatpush1.msra.mxu0 0.0
    %1255 = vmatprep.subr.mxu0 0.0
    %1256 = vmatpush1.msra.mxu0 0.0
    %1257 = vmatprep.subr.mxu0 0.0
    %1258 = vmatpush1.msra.mxu0 0.0
    %1259 = vmatprep.subr.mxu0 0.0
    %1260 = vmatpush1.msra.mxu0 0.0
    %1261 = vmatprep.subr.mxu0 0.0
    %1262 = vmatpush1.msra.mxu0 0.0
    %1263 = vmatprep.subr.mxu0 0.0
    %1264 = vmatpush1.msra.mxu0 0.0
    %1265 = vmatprep.subr.mxu0 0.0
    %1266 = vmatpush1.msra.mxu0 0.0
    %1267 = vmatprep.subr.mxu0 0.0
    %1268 = vmatpush1.msra.mxu0 0.0
    %1269 = vmatprep.subr.mxu0 0.0
    %1270 = vmatpush1.msra.mxu0 0.0
    %1271 = vmatprep.subr.mxu0 0.0
    %1272 = vmatpush1.msra.mxu0 0.0
    %1273 = vmatprep.subr.mxu0 0.0
    %1274 = vmatpush1.msra.mxu0 0.0
    %1275 = vmatprep.subr.mxu0 0.0
    %1276 = vmatpush1.msra.mxu0 0.0
    %1277 = vmatprep.subr.mxu0 0.0
    %1278 = vmatpush1.msra.mxu0 0.0
    %1279 = vmatprep.subr.mxu0 0.0
    %1280 = vmatpush1.msra.mxu0 0.0
    %1281 = vmatprep.mubr.f32.mxu0 0.0
    %1282 = vmatmul.mubr.f32.gmra.mrb[0].mxu0 %v1215
    %v1283 = vpop.f32.mrb[0].mxu0
    %v1284 = vadd.f32 %v138, %v1283
    %v1285 = vpop.f32.mrb[0].mxu0
    %1286 = vdwg.mxu0
    %v1287 = vxor.u32 %v1284, 2147483648
    %v1288 = vmul.f32 %v1287, 1.442695
    %v1289 = vpow.pop %v1288
    %v1290 = vadd.f32 %v1289, 1.0
    %v1291 = vrcp.pop %v1290
    %v1292 = vmul.f32 1.0, %v1291
    %v1293 = vtanh.pop %v1284
    %v1294 = vmul.f32 %v1292, %v1092
    %1296 = vrot.lane.b32.xlu0 %v1293, 64
    %v1297 = vpop.permute.xlu0 %1296
    %v1299 = vmul.f32 %v1292, %v1297
    %1301 = vrot.lane.b32.xlu0 %v1299, 32
    %v1302 = vpop.permute.xlu0 %1301
    %v1304 = vadd.f32 %v1294, %v1302
    %v1305 = vtanh.pop %v1304
    %1307 = vrot.lane.b32.xlu0 %v1305, 64
    %v1308 = vpop.permute.xlu0 %1307
    %v1310 = vmul.f32 %v1292, %v1308
    %1312 = vrot.lane.b32.xlu0 %v1310, 32
    %v1313 = vpop.permute.xlu0 %1312
    %1316 = vrot.lane.b32.xlu0 %v1204, 64
    %v1317 = vpop.permute.xlu0 %1316
    %v1319 = vsel %vm242, %v1313, %v1317
    %v1321 = vsel %vm259, %v1319, 0
    %1323 = vmatprep.subr.mxu0 0.0
    %1324 = vmatpush1.msra.mxu0 %v244
    %1325 = vmatprep.subr.mxu0 0.0
    %1326 = vmatpush1.msra.mxu0 %v245
    %1327 = vmatprep.subr.mxu0 0.0
    %1328 = vmatpush1.msra.mxu0 %v246
    %1329 = vmatprep.subr.mxu0 0.0
    %1330 = vmatpush1.msra.mxu0 %v247
    %1331 = vmatprep.subr.mxu0 0.0
    %1332 = vmatpush1.msra.mxu0 %v248
    %1333 = vmatprep.subr.mxu0 0.0
    %1334 = vmatpush1.msra.mxu0 %v249
    %1335 = vmatprep.subr.mxu0 0.0
    %1336 = vmatpush1.msra.mxu0 %v250
    %1337 = vmatprep.subr.mxu0 0.0
    %1338 = vmatpush1.msra.mxu0 %v251
    %1339 = vmatprep.subr.mxu0 0.0
    %1340 = vmatpush1.msra.mxu0 0.0
    %1341 = vmatprep.subr.mxu0 0.0
    %1342 = vmatpush1.msra.mxu0 0.0
    %1343 = vmatprep.subr.mxu0 0.0
    %1344 = vmatpush1.msra.mxu0 0.0
    %1345 = vmatprep.subr.mxu0 0.0
    %1346 = vmatpush1.msra.mxu0 0.0
    %1347 = vmatprep.subr.mxu0 0.0
    %1348 = vmatpush1.msra.mxu0 0.0
    %1349 = vmatprep.subr.mxu0 0.0
    %1350 = vmatpush1.msra.mxu0 0.0
    %1351 = vmatprep.subr.mxu0 0.0
    %1352 = vmatpush1.msra.mxu0 0.0
    %1353 = vmatprep.subr.mxu0 0.0
    %1354 = vmatpush1.msra.mxu0 0.0
    %1355 = vmatprep.subr.mxu0 0.0
    %1356 = vmatpush1.msra.mxu0 0.0
    %1357 = vmatprep.subr.mxu0 0.0
    %1358 = vmatpush1.msra.mxu0 0.0
    %1359 = vmatprep.subr.mxu0 0.0
    %1360 = vmatpush1.msra.mxu0 0.0
    %1361 = vmatprep.subr.mxu0 0.0
    %1362 = vmatpush1.msra.mxu0 0.0
    %1363 = vmatprep.subr.mxu0 0.0
    %1364 = vmatpush1.msra.mxu0 0.0
    %1365 = vmatprep.subr.mxu0 0.0
    %1366 = vmatpush1.msra.mxu0 0.0
    %1367 = vmatprep.subr.mxu0 0.0
    %1368 = vmatpush1.msra.mxu0 0.0
    %1369 = vmatprep.subr.mxu0 0.0
    %1370 = vmatpush1.msra.mxu0 0.0
    %1371 = vmatprep.subr.mxu0 0.0
    %1372 = vmatpush1.msra.mxu0 0.0
    %1373 = vmatprep.subr.mxu0 0.0
    %1374 = vmatpush1.msra.mxu0 0.0
    %1375 = vmatprep.subr.mxu0 0.0
    %1376 = vmatpush1.msra.mxu0 0.0
    %1377 = vmatprep.subr.mxu0 0.0
    %1378 = vmatpush1.msra.mxu0 0.0
    %1379 = vmatprep.subr.mxu0 0.0
    %1380 = vmatpush1.msra.mxu0 0.0
    %1381 = vmatprep.subr.mxu0 0.0
    %1382 = vmatpush1.msra.mxu0 0.0
    %1383 = vmatprep.subr.mxu0 0.0
    %1384 = vmatpush1.msra.mxu0 0.0
    %1385 = vmatprep.subr.mxu0 0.0
    %1386 = vmatpush1.msra.mxu0 0.0
    %1387 = vmatprep.mubr.f32.mxu0 0.0
    %1388 = vmatmul.mubr.f32.gmra.mrb[0].mxu0 %v1321
    %v1389 = vpop.f32.mrb[0].mxu0
    %v1390 = vadd.f32 %v257, %v1389
    %v1391 = vpop.f32.mrb[0].mxu0
    %1392 = vdwg.mxu0
    %v1393 = vxor.u32 %v1390, 2147483648
    %v1394 = vmul.f32 %v1393, 1.442695
    %v1395 = vpow.pop %v1394
    %v1396 = vadd.f32 %v1395, 1.0
    %v1397 = vrcp.pop %v1396
    %v1398 = vmul.f32 1.0, %v1397
    %v1399 = vtanh.pop %v1390
    %v1400 = vmul.f32 %v1398, %v1198
    %1402 = vrot.lane.b32.xlu0 %v1399, 64
    %v1403 = vpop.permute.xlu0 %1402
    %v1405 = vmul.f32 %v1398, %v1403
    %1407 = vrot.lane.b32.xlu0 %v1405, 32
    %v1408 = vpop.permute.xlu0 %1407
    %v1410 = vadd.f32 %v1400, %v1408
    %v1411 = vtanh.pop %v1410
    %1413 = vrot.lane.b32.xlu0 %v1411, 64
    %v1414 = vpop.permute.xlu0 %1413
    %v1416 = vmul.f32 %v1398, %v1414
    %vm1417 = vcmask 1047559
    %v1418 = vsel %vm1417, %v121, %v117
    %v1420 = vrot.slane %v1310, 2
    %1421 = vrot.lane.b32.xlu0 %v1420, 48
    %v1422 = vpop.permute.xlu0 %1421
    %v1424 = vsel %vm125, %v1418, %v1422
    %v1426 = vrot.slane %v1424, 6
    %v1427 = vsel %vm140, %v1426, 0
    %1429 = vmatprep.subr.mxu0 0.0
    %1430 = vmatpush1.msra.mxu0 %v127
    %1431 = vmatprep.subr.mxu0 0.0
    %1432 = vmatpush1.msra.mxu0 %v128
    %1433 = vmatprep.subr.mxu0 0.0
    %1434 = vmatpush1.msra.mxu0 %v129
    %1435 = vmatprep.subr.mxu0 0.0
    %1436 = vmatpush1.msra.mxu0 %v130
    %1437 = vmatprep.subr.mxu0 0.0
    %1438 = vmatpush1.msra.mxu0 %v131
    %1439 = vmatprep.subr.mxu0 0.0
    %1440 = vmatpush1.msra.mxu0 %v132
    %1441 = vmatprep.subr.mxu0 0.0
    %1442 = vmatpush1.msra.mxu0 0.0
    %1443 = vmatprep.subr.mxu0 0.0
    %1444 = vmatpush1.msra.mxu0 0.0
    %1445 = vmatprep.subr.mxu0 0.0
    %1446 = vmatpush1.msra.mxu0 0.0
    %1447 = vmatprep.subr.mxu0 0.0
    %1448 = vmatpush1.msra.mxu0 0.0
    %1449 = vmatprep.subr.mxu0 0.0
    %1450 = vmatpush1.msra.mxu0 0.0
    %1451 = vmatprep.subr.mxu0 0.0
    %1452 = vmatpush1.msra.mxu0 0.0
    %1453 = vmatprep.subr.mxu0 0.0
    %1454 = vmatpush1.msra.mxu0 0.0
    %1455 = vmatprep.subr.mxu0 0.0
    %1456 = vmatpush1.msra.mxu0 0.0
    %1457 = vmatprep.subr.mxu0 0.0
    %1458 = vmatpush1.msra.mxu0 0.0
    %1459 = vmatprep.subr.mxu0 0.0
    %1460 = vmatpush1.msra.mxu0 0.0
    %1461 = vmatprep.subr.mxu0 0.0
    %1462 = vmatpush1.msra.mxu0 0.0
    %1463 = vmatprep.subr.mxu0 0.0
    %1464 = vmatpush1.msra.mxu0 0.0
    %1465 = vmatprep.subr.mxu0 0.0
    %1466 = vmatpush1.msra.mxu0 0.0
    %1467 = vmatprep.subr.mxu0 0.0
    %1468 = vmatpush1.msra.mxu0 0.0
    %1469 = vmatprep.subr.mxu0 0.0
    %1470 = vmatpush1.msra.mxu0 0.0
    %1471 = vmatprep.subr.mxu0 0.0
    %1472 = vmatpush1.msra.mxu0 0.0
    %1473 = vmatprep.subr.mxu0 0.0
    %1474 = vmatpush1.msra.mxu0 0.0
    %1475 = vmatprep.subr.mxu0 0.0
    %1476 = vmatpush1.msra.mxu0 0.0
    %1477 = vmatprep.subr.mxu0 0.0
    %1478 = vmatpush1.msra.mxu0 0.0
    %1479 = vmatprep.subr.mxu0 0.0
    %1480 = vmatpush1.msra.mxu0 0.0
    %1481 = vmatprep.subr.mxu0 0.0
    %1482 = vmatpush1.msra.mxu0 0.0
    %1483 = vmatprep.subr.mxu0 0.0
    %1484 = vmatpush1.msra.mxu0 0.0
    %1485 = vmatprep.subr.mxu0 0.0
    %1486 = vmatpush1.msra.mxu0 0.0
    %1487 = vmatprep.subr.mxu0 0.0
    %1488 = vmatpush1.msra.mxu0 0.0
    %1489 = vmatprep.subr.mxu0 0.0
    %1490 = vmatpush1.msra.mxu0 0.0
    %1491 = vmatprep.subr.mxu0 0.0
    %1492 = vmatpush1.msra.mxu0 0.0
    %1493 = vmatprep.mubr.f32.mxu0 0.0
    %1494 = vmatmul.mubr.f32.gmra.mrb[0].mxu0 %v1427
    %v1495 = vpop.f32.mrb[0].mxu0
    %v1496 = vadd.f32 %v138, %v1495
    %v1497 = vpop.f32.mrb[0].mxu0
    %1498 = vdwg.mxu0
    %v1499 = vxor.u32 %v1496, 2147483648
    %v1500 = vmul.f32 %v1499, 1.442695
    %v1501 = vpow.pop %v1500
    %v1502 = vadd.f32 %v1501, 1.0
    %v1503 = vrcp.pop %v1502
    %v1504 = vmul.f32 1.0, %v1503
    %v1505 = vtanh.pop %v1496
    %v1506 = vmul.f32 %v1504, %v1304
    %1508 = vrot.lane.b32.xlu0 %v1505, 64
    %v1509 = vpop.permute.xlu0 %1508
    %v1511 = vmul.f32 %v1504, %v1509
    %1513 = vrot.lane.b32.xlu0 %v1511, 32
    %v1514 = vpop.permute.xlu0 %1513
    %v1516 = vadd.f32 %v1506, %v1514
    %v1517 = vtanh.pop %v1516
    %1519 = vrot.lane.b32.xlu0 %v1517, 64
    %v1520 = vpop.permute.xlu0 %1519
    %v1522 = vmul.f32 %v1504, %v1520
    %1524 = vrot.lane.b32.xlu0 %v1522, 32
    %v1525 = vpop.permute.xlu0 %1524
    %1528 = vrot.lane.b32.xlu0 %v1416, 64
    %v1529 = vpop.permute.xlu0 %1528
    %v1531 = vsel %vm242, %v1525, %v1529
    %v1533 = vsel %vm259, %v1531, 0
    %1535 = vmatprep.subr.mxu0 0.0
    %1536 = vmatpush1.msra.mxu0 %v244
    %1537 = vmatprep.subr.mxu0 0.0
    %1538 = vmatpush1.msra.mxu0 %v245
    %1539 = vmatprep.subr.mxu0 0.0
    %1540 = vmatpush1.msra.mxu0 %v246
    %1541 = vmatprep.subr.mxu0 0.0
    %1542 = vmatpush1.msra.mxu0 %v247
    %1543 = vmatprep.subr.mxu0 0.0
    %1544 = vmatpush1.msra.mxu0 %v248
    %1545 = vmatprep.subr.mxu0 0.0
    %1546 = vmatpush1.msra.mxu0 %v249
    %1547 = vmatprep.subr.mxu0 0.0
    %1548 = vmatpush1.msra.mxu0 %v250
    %1549 = vmatprep.subr.mxu0 0.0
    %1550 = vmatpush1.msra.mxu0 %v251
    %1551 = vmatprep.subr.mxu0 0.0
    %1552 = vmatpush1.msra.mxu0 0.0
    %1553 = vmatprep.subr.mxu0 0.0
    %1554 = vmatpush1.msra.mxu0 0.0
    %1555 = vmatprep.subr.mxu0 0.0
    %1556 = vmatpush1.msra.mxu0 0.0
    %1557 = vmatprep.subr.mxu0 0.0
    %1558 = vmatpush1.msra.mxu0 0.0
    %1559 = vmatprep.subr.mxu0 0.0
    %1560 = vmatpush1.msra.mxu0 0.0
    %1561 = vmatprep.subr.mxu0 0.0
    %1562 = vmatpush1.msra.mxu0 0.0
    %1563 = vmatprep.subr.mxu0 0.0
    %1564 = vmatpush1.msra.mxu0 0.0
    %1565 = vmatprep.subr.mxu0 0.0
    %1566 = vmatpush1.msra.mxu0 0.0
    %1567 = vmatprep.subr.mxu0 0.0
    %1568 = vmatpush1.msra.mxu0 0.0
    %1569 = vmatprep.subr.mxu0 0.0
    %1570 = vmatpush1.msra.mxu0 0.0
    %1571 = vmatprep.subr.mxu0 0.0
    %1572 = vmatpush1.msra.mxu0 0.0
    %1573 = vmatprep.subr.mxu0 0.0
    %1574 = vmatpush1.msra.mxu0 0.0
    %1575 = vmatprep.subr.mxu0 0.0
    %1576 = vmatpush1.msra.mxu0 0.0
    %1577 = vmatprep.subr.mxu0 0.0
    %1578 = vmatpush1.msra.mxu0 0.0
    %1579 = vmatprep.subr.mxu0 0.0
    %1580 = vmatpush1.msra.mxu0 0.0
    %1581 = vmatprep.subr.mxu0 0.0
    %1582 = vmatpush1.msra.mxu0 0.0
    %1583 = vmatprep.subr.mxu0 0.0
    %1584 = vmatpush1.msra.mxu0 0.0
    %1585 = vmatprep.subr.mxu0 0.0
    %1586 = vmatpush1.msra.mxu0 0.0
    %1587 = vmatprep.subr.mxu0 0.0
    %1588 = vmatpush1.msra.mxu0 0.0
    %1589 = vmatprep.subr.mxu0 0.0
    %1590 = vmatpush1.msra.mxu0 0.0
    %1591 = vmatprep.subr.mxu0 0.0
    %1592 = vmatpush1.msra.mxu0 0.0
    %1593 = vmatprep.subr.mxu0 0.0
    %1594 = vmatpush1.msra.mxu0 0.0
    %1595 = vmatprep.subr.mxu0 0.0
    %1596 = vmatpush1.msra.mxu0 0.0
    %1597 = vmatprep.subr.mxu0 0.0
    %1598 = vmatpush1.msra.mxu0 0.0
    %1599 = vmatprep.mubr.f32.mxu0 0.0
    %1600 = vmatmul.mubr.f32.gmra.mrb[0].mxu0 %v1533
    %v1601 = vpop.f32.mrb[0].mxu0
    %v1602 = vadd.f32 %v257, %v1601
    %v1603 = vpop.f32.mrb[0].mxu0
    %1604 = vdwg.mxu0
    %v1605 = vxor.u32 %v1602, 2147483648
    %v1606 = vmul.f32 %v1605, 1.442695
    %v1607 = vpow.pop %v1606
    %v1608 = vadd.f32 %v1607, 1.0
    %v1609 = vrcp.pop %v1608
    %v1610 = vmul.f32 1.0, %v1609
    %v1611 = vtanh.pop %v1602
    %v1612 = vmul.f32 %v1610, %v1410
    %1614 = vrot.lane.b32.xlu0 %v1611, 64
    %v1615 = vpop.permute.xlu0 %1614
    %v1617 = vmul.f32 %v1610, %v1615
    %1619 = vrot.lane.b32.xlu0 %v1617, 32
    %v1620 = vpop.permute.xlu0 %1619
    %v1622 = vadd.f32 %v1612, %v1620
    %v1623 = vtanh.pop %v1622
    %1625 = vrot.lane.b32.xlu0 %v1623, 64
    %v1626 = vpop.permute.xlu0 %1625
    %v1628 = vmul.f32 %v1610, %v1626
    %v1631 = vrot.slane %v1522, 1
    %1632 = vrot.lane.b32.xlu0 %v1631, 48
    %v1633 = vpop.permute.xlu0 %1632
    %v1635 = vsel %vm125, %v117, %v1633
    %v1636 = vsel %vm125, %v121, %v1633
    %vm1639 = vcmask 1040384
    %v1640 = vrot.slane %v1635, 7
    %v1641 = vrot.slane %v1636, 7
    %v1642 = vsel %vm1639, %v1640, %v1641
    %v1643 = vsel %vm140, %v1642, 0
    %1645 = vmatprep.subr.mxu0 0.0
    %1646 = vmatpush1.msra.mxu0 %v127
    %1647 = vmatprep.subr.mxu0 0.0
    %1648 = vmatpush1.msra.mxu0 %v128
    %1649 = vmatprep.subr.mxu0 0.0
    %1650 = vmatpush1.msra.mxu0 %v129
    %1651 = vmatprep.subr.mxu0 0.0
    %1652 = vmatpush1.msra.mxu0 %v130
    %1653 = vmatprep.subr.mxu0 0.0
    %1654 = vmatpush1.msra.mxu0 %v131
    %1655 = vmatprep.subr.mxu0 0.0
    %1656 = vmatpush1.msra.mxu0 %v132
    %1657 = vmatprep.subr.mxu0 0.0
    %1658 = vmatpush1.msra.mxu0 0.0
    %1659 = vmatprep.subr.mxu0 0.0
    %1660 = vmatpush1.msra.mxu0 0.0
    %1661 = vmatprep.subr.mxu0 0.0
    %1662 = vmatpush1.msra.mxu0 0.0
    %1663 = vmatprep.subr.mxu0 0.0
    %1664 = vmatpush1.msra.mxu0 0.0
    %1665 = vmatprep.subr.mxu0 0.0
    %1666 = vmatpush1.msra.mxu0 0.0
    %1667 = vmatprep.subr.mxu0 0.0
    %1668 = vmatpush1.msra.mxu0 0.0
    %1669 = vmatprep.subr.mxu0 0.0
    %1670 = vmatpush1.msra.mxu0 0.0
    %1671 = vmatprep.subr.mxu0 0.0
    %1672 = vmatpush1.msra.mxu0 0.0
    %1673 = vmatprep.subr.mxu0 0.0
    %1674 = vmatpush1.msra.mxu0 0.0
    %1675 = vmatprep.subr.mxu0 0.0
    %1676 = vmatpush1.msra.mxu0 0.0
    %1677 = vmatprep.subr.mxu0 0.0
    %1678 = vmatpush1.msra.mxu0 0.0
    %1679 = vmatprep.subr.mxu0 0.0
    %1680 = vmatpush1.msra.mxu0 0.0
    %1681 = vmatprep.subr.mxu0 0.0
    %1682 = vmatpush1.msra.mxu0 0.0
    %1683 = vmatprep.subr.mxu0 0.0
    %1684 = vmatpush1.msra.mxu0 0.0
    %1685 = vmatprep.subr.mxu0 0.0
    %1686 = vmatpush1.msra.mxu0 0.0
    %1687 = vmatprep.subr.mxu0 0.0
    %1688 = vmatpush1.msra.mxu0 0.0
    %1689 = vmatprep.subr.mxu0 0.0
    %1690 = vmatpush1.msra.mxu0 0.0
    %1691 = vmatprep.subr.mxu0 0.0
    %1692 = vmatpush1.msra.mxu0 0.0
    %1693 = vmatprep.subr.mxu0 0.0
    %1694 = vmatpush1.msra.mxu0 0.0
    %1695 = vmatprep.subr.mxu0 0.0
    %1696 = vmatpush1.msra.mxu0 0.0
    %1697 = vmatprep.subr.mxu0 0.0
    %1698 = vmatpush1.msra.mxu0 0.0
    %1699 = vmatprep.subr.mxu0 0.0
    %1700 = vmatpush1.msra.mxu0 0.0
    %1701 = vmatprep.subr.mxu0 0.0
    %1702 = vmatpush1.msra.mxu0 0.0
    %1703 = vmatprep.subr.mxu0 0.0
    %1704 = vmatpush1.msra.mxu0 0.0
    %1705 = vmatprep.subr.mxu0 0.0
    %1706 = vmatpush1.msra.mxu0 0.0
    %1707 = vmatprep.subr.mxu0 0.0
    %1708 = vmatpush1.msra.mxu0 0.0
    %1709 = vmatprep.mubr.f32.mxu0 0.0
    %1710 = vmatmul.mubr.f32.gmra.mrb[0].mxu0 %v1643
    %v1711 = vpop.f32.mrb[0].mxu0
    %v1712 = vadd.f32 %v138, %v1711
    %v1713 = vpop.f32.mrb[0].mxu0
    %1714 = vdwg.mxu0
    %v1715 = vxor.u32 %v1712, 2147483648
    %v1716 = vmul.f32 %v1715, 1.442695
    %v1717 = vpow.pop %v1716
    %v1718 = vadd.f32 %v1717, 1.0
    %v1719 = vrcp.pop %v1718
    %v1720 = vmul.f32 1.0, %v1719
    %v1721 = vtanh.pop %v1712
    %v1722 = vmul.f32 %v1720, %v1516
    %1724 = vrot.lane.b32.xlu0 %v1721, 64
    %v1725 = vpop.permute.xlu0 %1724
    %v1727 = vmul.f32 %v1720, %v1725
    %1729 = vrot.lane.b32.xlu0 %v1727, 32
    %v1730 = vpop.permute.xlu0 %1729
    %v1732 = vadd.f32 %v1722, %v1730
    %v1733 = vtanh.pop %v1732
    %1735 = vrot.lane.b32.xlu0 %v1733, 64
    %v1736 = vpop.permute.xlu0 %1735
    %v1738 = vmul.f32 %v1720, %v1736
    %1740 = vrot.lane.b32.xlu0 %v1738, 32
    %v1741 = vpop.permute.xlu0 %1740
    %1744 = vrot.lane.b32.xlu0 %v1628, 64
    %v1745 = vpop.permute.xlu0 %1744
    %v1747 = vsel %vm242, %v1741, %v1745
    %v1749 = vsel %vm259, %v1747, 0
    %1751 = vmatprep.subr.mxu0 0.0
    %1752 = vmatpush1.msra.mxu0 %v244
    %1753 = vmatprep.subr.mxu0 0.0
    %1754 = vmatpush1.msra.mxu0 %v245
    %1755 = vmatprep.subr.mxu0 0.0
    %1756 = vmatpush1.msra.mxu0 %v246
    %1757 = vmatprep.subr.mxu0 0.0
    %1758 = vmatpush1.msra.mxu0 %v247
    %1759 = vmatprep.subr.mxu0 0.0
    %1760 = vmatpush1.msra.mxu0 %v248
    %1761 = vmatprep.subr.mxu0 0.0
    %1762 = vmatpush1.msra.mxu0 %v249
    %1763 = vmatprep.subr.mxu0 0.0
    %1764 = vmatpush1.msra.mxu0 %v250
    %1765 = vmatprep.subr.mxu0 0.0
    %1766 = vmatpush1.msra.mxu0 %v251
    %1767 = vmatprep.subr.mxu0 0.0
    %1768 = vmatpush1.msra.mxu0 0.0
    %1769 = vmatprep.subr.mxu0 0.0
    %1770 = vmatpush1.msra.mxu0 0.0
    %1771 = vmatprep.subr.mxu0 0.0
    %1772 = vmatpush1.msra.mxu0 0.0
    %1773 = vmatprep.subr.mxu0 0.0
    %1774 = vmatpush1.msra.mxu0 0.0
    %1775 = vmatprep.subr.mxu0 0.0
    %1776 = vmatpush1.msra.mxu0 0.0
    %1777 = vmatprep.subr.mxu0 0.0
    %1778 = vmatpush1.msra.mxu0 0.0
    %1779 = vmatprep.subr.mxu0 0.0
    %1780 = vmatpush1.msra.mxu0 0.0
    %1781 = vmatprep.subr.mxu0 0.0
    %1782 = vmatpush1.msra.mxu0 0.0
    %1783 = vmatprep.subr.mxu0 0.0
    %1784 = vmatpush1.msra.mxu0 0.0
    %1785 = vmatprep.subr.mxu0 0.0
    %1786 = vmatpush1.msra.mxu0 0.0
    %1787 = vmatprep.subr.mxu0 0.0
    %1788 = vmatpush1.msra.mxu0 0.0
    %1789 = vmatprep.subr.mxu0 0.0
    %1790 = vmatpush1.msra.mxu0 0.0
    %1791 = vmatprep.subr.mxu0 0.0
    %1792 = vmatpush1.msra.mxu0 0.0
    %1793 = vmatprep.subr.mxu0 0.0
    %1794 = vmatpush1.msra.mxu0 0.0
    %1795 = vmatprep.subr.mxu0 0.0
    %1796 = vmatpush1.msra.mxu0 0.0
    %1797 = vmatprep.subr.mxu0 0.0
    %1798 = vmatpush1.msra.mxu0 0.0
    %1799 = vmatprep.subr.mxu0 0.0
    %1800 = vmatpush1.msra.mxu0 0.0
    %1801 = vmatprep.subr.mxu0 0.0
    %1802 = vmatpush1.msra.mxu0 0.0
    %1803 = vmatprep.subr.mxu0 0.0
    %1804 = vmatpush1.msra.mxu0 0.0
    %1805 = vmatprep.subr.mxu0 0.0
    %1806 = vmatpush1.msra.mxu0 0.0
    %1807 = vmatprep.subr.mxu0 0.0
    %1808 = vmatpush1.msra.mxu0 0.0
    %1809 = vmatprep.subr.mxu0 0.0
    %1810 = vmatpush1.msra.mxu0 0.0
    %1811 = vmatprep.subr.mxu0 0.0
    %1812 = vmatpush1.msra.mxu0 0.0
    %1813 = vmatprep.subr.mxu0 0.0
    %1814 = vmatpush1.msra.mxu0 0.0
    %1815 = vmatprep.mubr.f32.mxu0 0.0
    %1816 = vmatmul.mubr.f32.gmra.mrb[0].mxu0 %v1749
    %v1817 = vpop.f32.mrb[0].mxu0
    %v1818 = vadd.f32 %v257, %v1817
    %v1819 = vpop.f32.mrb[0].mxu0
    %1820 = vdwg.mxu0
    %v1821 = vxor.u32 %v1818, 2147483648
    %v1822 = vmul.f32 %v1821, 1.442695
    %v1823 = vpow.pop %v1822
    %v1824 = vadd.f32 %v1823, 1.0
    %v1825 = vrcp.pop %v1824
    %v1826 = vmul.f32 1.0, %v1825
    %v1827 = vtanh.pop %v1818
    %v1828 = vmul.f32 %v1826, %v1622
    %1830 = vrot.lane.b32.xlu0 %v1827, 64
    %v1831 = vpop.permute.xlu0 %1830
    %v1833 = vmul.f32 %v1826, %v1831
    %1835 = vrot.lane.b32.xlu0 %v1833, 32
    %v1836 = vpop.permute.xlu0 %1835
    %v1838 = vadd.f32 %v1828, %v1836
    %v1839 = vtanh.pop %v1838
    %1841 = vrot.lane.b32.xlu0 %v1839, 64
    %v1842 = vpop.permute.xlu0 %1841
    %v1844 = vmul.f32 %v1826, %v1842
    %1845 = vrot.lane.b32.xlu0 %v1738, 48
    %v1846 = vpop.permute.xlu0 %1845
    %v1848 = vsel %vm125, %v123, %v1846
    %v1849 = vld [vmem:[#allocation8] sm:$0xff]
    %v1850 = vld [vmem:[#allocation8 + $0x8] sm:$0xff]
    %v1851 = vld [vmem:[#allocation8 + $0x10] sm:$0xff]
    %v1852 = vld [vmem:[#allocation8 + $0x18] sm:$0xff]
    %v1853 = vld [vmem:[#allocation8 + $0x20] sm:$0xff]
    %v1854 = vld [vmem:[#allocation8 + $0x28] sm:$0xff]
    %v1855 = vld [vmem:[#allocation10] sm:$0x1]
    %v1857 = vlaneseq
    %v1858 = vshrl.u32 %v1857, 7
    %v1859 = vsub.s32 0, %v1858
    %v1860 = vrot.slane %v1855, %v1859
    %v1863 = vsel %vm140, %v1848, 0
    %1865 = vmatprep.subr.mxu0 0.0
    %1866 = vmatpush1.msra.mxu0 %v1849
    %1867 = vmatprep.subr.mxu0 0.0
    %1868 = vmatpush1.msra.mxu0 %v1850
    %1869 = vmatprep.subr.mxu0 0.0
    %1870 = vmatpush1.msra.mxu0 %v1851
    %1871 = vmatprep.subr.mxu0 0.0
    %1872 = vmatpush1.msra.mxu0 %v1852
    %1873 = vmatprep.subr.mxu0 0.0
    %1874 = vmatpush1.msra.mxu0 %v1853
    %1875 = vmatprep.subr.mxu0 0.0
    %1876 = vmatpush1.msra.mxu0 %v1854
    %1877 = vmatprep.subr.mxu0 0.0
    %1878 = vmatpush1.msra.mxu0 0.0
    %1879 = vmatprep.subr.mxu0 0.0
    %1880 = vmatpush1.msra.mxu0 0.0
    %1881 = vmatprep.subr.mxu0 0.0
    %1882 = vmatpush1.msra.mxu0 0.0
    %1883 = vmatprep.subr.mxu0 0.0
    %1884 = vmatpush1.msra.mxu0 0.0
    %1885 = vmatprep.subr.mxu0 0.0
    %1886 = vmatpush1.msra.mxu0 0.0
    %1887 = vmatprep.subr.mxu0 0.0
    %1888 = vmatpush1.msra.mxu0 0.0
    %1889 = vmatprep.subr.mxu0 0.0
    %1890 = vmatpush1.msra.mxu0 0.0
    %1891 = vmatprep.subr.mxu0 0.0
    %1892 = vmatpush1.msra.mxu0 0.0
    %1893 = vmatprep.subr.mxu0 0.0
    %1894 = vmatpush1.msra.mxu0 0.0
    %1895 = vmatprep.subr.mxu0 0.0
    %1896 = vmatpush1.msra.mxu0 0.0
    %1897 = vmatprep.subr.mxu0 0.0
    %1898 = vmatpush1.msra.mxu0 0.0
    %1899 = vmatprep.subr.mxu0 0.0
    %1900 = vmatpush1.msra.mxu0 0.0
    %1901 = vmatprep.subr.mxu0 0.0
    %1902 = vmatpush1.msra.mxu0 0.0
    %1903 = vmatprep.subr.mxu0 0.0
    %1904 = vmatpush1.msra.mxu0 0.0
    %1905 = vmatprep.subr.mxu0 0.0
    %1906 = vmatpush1.msra.mxu0 0.0
    %1907 = vmatprep.subr.mxu0 0.0
    %1908 = vmatpush1.msra.mxu0 0.0
    %1909 = vmatprep.subr.mxu0 0.0
    %1910 = vmatpush1.msra.mxu0 0.0
    %1911 = vmatprep.subr.mxu0 0.0
    %1912 = vmatpush1.msra.mxu0 0.0
    %1913 = vmatprep.subr.mxu0 0.0
    %1914 = vmatpush1.msra.mxu0 0.0
    %1915 = vmatprep.subr.mxu0 0.0
    %1916 = vmatpush1.msra.mxu0 0.0
    %1917 = vmatprep.subr.mxu0 0.0
    %1918 = vmatpush1.msra.mxu0 0.0
    %1919 = vmatprep.subr.mxu0 0.0
    %1920 = vmatpush1.msra.mxu0 0.0
    %1921 = vmatprep.subr.mxu0 0.0
    %1922 = vmatpush1.msra.mxu0 0.0
    %1923 = vmatprep.subr.mxu0 0.0
    %1924 = vmatpush1.msra.mxu0 0.0
    %1925 = vmatprep.subr.mxu0 0.0
    %1926 = vmatpush1.msra.mxu0 0.0
    %1927 = vmatprep.subr.mxu0 0.0
    %1928 = vmatpush1.msra.mxu0 0.0
    %1929 = vmatprep.mubr.f32.mxu0 0.0
    %1930 = vmatmul.mubr.f32.gmra.mrb[0].mxu0 %v1863
    %v1931 = vpop.f32.mrb[0].mxu0
    %v1932 = vadd.f32 %v1860, %v1931
    %v1933 = vpop.f32.mrb[0].mxu0
    %1934 = vdwg.mxu0
    %v1935 = vxor.u32 %v1932, 2147483648
    %v1936 = vmul.f32 %v1935, 1.442695
    %v1937 = vpow.pop %v1936
    %v1938 = vadd.f32 %v1937, 1.0
    %v1939 = vrcp.pop %v1938
    %v1940 = vmul.f32 1.0, %v1939
    %v1941 = vtanh.pop %v1932
    %v1942 = vmul.f32 %v1940, %v1732
    %1944 = vrot.lane.b32.xlu0 %v1941, 64
    %v1945 = vpop.permute.xlu0 %1944
    %v1947 = vmul.f32 %v1940, %v1945
    %1949 = vrot.lane.b32.xlu0 %v1947, 32
    %v1950 = vpop.permute.xlu0 %1949
    %v1952 = vadd.f32 %v1942, %v1950
    %v1953 = vtanh.pop %v1952
    %1955 = vrot.lane.b32.xlu0 %v1953, 64
    %v1956 = vpop.permute.xlu0 %1955
    %v1958 = vmul.f32 %v1940, %v1956
    %1960 = vrot.lane.b32.xlu0 %v1958, 32
    %v1961 = vpop.permute.xlu0 %1960
    %1964 = vrot.lane.b32.xlu0 %v1844, 64
    %v1965 = vpop.permute.xlu0 %1964
    %v1967 = vsel %vm242, %v1961, %v1965
    %v1968 = vld [vmem:[%s7] sm:$0xff]
    %v1969 = vld [vmem:[%s7 + $0x8] sm:$0xff]
    %v1970 = vld [vmem:[%s7 + $0x10] sm:$0xff]
    %v1971 = vld [vmem:[%s7 + $0x18] sm:$0xff]
    %v1972 = vld [vmem:[%s7 + $0x20] sm:$0xff]
    %v1973 = vld [vmem:[%s7 + $0x28] sm:$0xff]
    %v1974 = vld [vmem:[%s7 + $0x30] sm:$0xff]
    %v1975 = vld [vmem:[%s7 + $0x38] sm:$0xff]
    %v1976 = vld [vmem:[#allocation11] sm:$0x1]
    %v1978 = vlaneseq
    %v1979 = vshrl.u32 %v1978, 7
    %v1980 = vsub.s32 0, %v1979
    %v1981 = vrot.slane %v1976, %v1980
    %v1984 = vsel %vm259, %v1967, 0
    %1986 = vmatprep.subr.mxu0 0.0
    %1987 = vmatpush1.msra.mxu0 %v1968
    %1988 = vmatprep.subr.mxu0 0.0
    %1989 = vmatpush1.msra.mxu0 %v1969
    %1990 = vmatprep.subr.mxu0 0.0
    %1991 = vmatpush1.msra.mxu0 %v1970
    %1992 = vmatprep.subr.mxu0 0.0
    %1993 = vmatpush1.msra.mxu0 %v1971
    %1994 = vmatprep.subr.mxu0 0.0
    %1995 = vmatpush1.msra.mxu0 %v1972
    %1996 = vmatprep.subr.mxu0 0.0
    %1997 = vmatpush1.msra.mxu0 %v1973
    %1998 = vmatprep.subr.mxu0 0.0
    %1999 = vmatpush1.msra.mxu0 %v1974
    %2000 = vmatprep.subr.mxu0 0.0
    %2001 = vmatpush1.msra.mxu0 %v1975
    %2002 = vmatprep.subr.mxu0 0.0
    %2003 = vmatpush1.msra.mxu0 0.0
    %2004 = vmatprep.subr.mxu0 0.0
    %2005 = vmatpush1.msra.mxu0 0.0
    %2006 = vmatprep.subr.mxu0 0.0
    %2007 = vmatpush1.msra.mxu0 0.0
    %2008 = vmatprep.subr.mxu0 0.0
    %2009 = vmatpush1.msra.mxu0 0.0
    %2010 = vmatprep.subr.mxu0 0.0
    %2011 = vmatpush1.msra.mxu0 0.0
    %2012 = vmatprep.subr.mxu0 0.0
    %2013 = vmatpush1.msra.mxu0 0.0
    %2014 = vmatprep.subr.mxu0 0.0
    %2015 = vmatpush1.msra.mxu0 0.0
    %2016 = vmatprep.subr.mxu0 0.0
    %2017 = vmatpush1.msra.mxu0 0.0
    %2018 = vmatprep.subr.mxu0 0.0
    %2019 = vmatpush1.msra.mxu0 0.0
    %2020 = vmatprep.subr.mxu0 0.0
    %2021 = vmatpush1.msra.mxu0 0.0
    %2022 = vmatprep.subr.mxu0 0.0
    %2023 = vmatpush1.msra.mxu0 0.0
    %2024 = vmatprep.subr.mxu0 0.0
    %2025 = vmatpush1.msra.mxu0 0.0
    %2026 = vmatprep.subr.mxu0 0.0
    %2027 = vmatpush1.msra.mxu0 0.0
    %2028 = vmatprep.subr.mxu0 0.0
    %2029 = vmatpush1.msra.mxu0 0.0
    %2030 = vmatprep.subr.mxu0 0.0
    %2031 = vmatpush1.msra.mxu0 0.0
    %2032 = vmatprep.subr.mxu0 0.0
    %2033 = vmatpush1.msra.mxu0 0.0
    %2034 = vmatprep.subr.mxu0 0.0
    %2035 = vmatpush1.msra.mxu0 0.0
    %2036 = vmatprep.subr.mxu0 0.0
    %2037 = vmatpush1.msra.mxu0 0.0
    %2038 = vmatprep.subr.mxu0 0.0
    %2039 = vmatpush1.msra.mxu0 0.0
    %2040 = vmatprep.subr.mxu0 0.0
    %2041 = vmatpush1.msra.mxu0 0.0
    %2042 = vmatprep.subr.mxu0 0.0
    %2043 = vmatpush1.msra.mxu0 0.0
    %2044 = vmatprep.subr.mxu0 0.0
    %2045 = vmatpush1.msra.mxu0 0.0
    %2046 = vmatprep.subr.mxu0 0.0
    %2047 = vmatpush1.msra.mxu0 0.0
    %2048 = vmatprep.subr.mxu0 0.0
    %2049 = vmatpush1.msra.mxu0 0.0
    %2050 = vmatprep.mubr.f32.mxu0 0.0
    %2051 = vmatmul.mubr.f32.gmra.mrb[0].mxu0 %v1984
    %v2052 = vpop.f32.mrb[0].mxu0
    %v2053 = vadd.f32 %v1981, %v2052
    %v2054 = vpop.f32.mrb[0].mxu0
    %2055 = vdwg.mxu0
    %v2056 = vxor.u32 %v2053, 2147483648
    %v2057 = vmul.f32 %v2056, 1.442695
    %v2058 = vpow.pop %v2057
    %v2059 = vadd.f32 %v2058, 1.0
    %v2060 = vrcp.pop %v2059
    %v2061 = vmul.f32 1.0, %v2060
    %v2062 = vtanh.pop %v2053
    %v2063 = vmul.f32 %v2061, %v1838
    %2065 = vrot.lane.b32.xlu0 %v2062, 64
    %v2066 = vpop.permute.xlu0 %2065
    %v2068 = vmul.f32 %v2061, %v2066
    %2070 = vrot.lane.b32.xlu0 %v2068, 32
    %v2071 = vpop.permute.xlu0 %2070
    %v2073 = vadd.f32 %v2063, %v2071
    %v2074 = vtanh.pop %v2073
    %2076 = vrot.lane.b32.xlu0 %v2074, 64
    %v2077 = vpop.permute.xlu0 %2076
    %v2079 = vmul.f32 %v2061, %v2077
    %v2080 = vrot.slane %v1958, 7
    %2081 = vrot.lane.b32.xlu0 %v2080, 48
    %v2082 = vpop.permute.xlu0 %2081
    %v2084 = vsel %vm125, %v358, %v2082
    %v2086 = vrot.slane %v2084, 1
    %v2087 = vsel %vm140, %v2086, 0
    %2089 = vmatprep.subr.mxu0 0.0
    %2090 = vmatpush1.msra.mxu0 %v1849
    %2091 = vmatprep.subr.mxu0 0.0
    %2092 = vmatpush1.msra.mxu0 %v1850
    %2093 = vmatprep.subr.mxu0 0.0
    %2094 = vmatpush1.msra.mxu0 %v1851
    %2095 = vmatprep.subr.mxu0 0.0
    %2096 = vmatpush1.msra.mxu0 %v1852
    %2097 = vmatprep.subr.mxu0 0.0
    %2098 = vmatpush1.msra.mxu0 %v1853
    %2099 = vmatprep.subr.mxu0 0.0
    %2100 = vmatpush1.msra.mxu0 %v1854
    %2101 = vmatprep.subr.mxu0 0.0
    %2102 = vmatpush1.msra.mxu0 0.0
    %2103 = vmatprep.subr.mxu0 0.0
    %2104 = vmatpush1.msra.mxu0 0.0
    %2105 = vmatprep.subr.mxu0 0.0
    %2106 = vmatpush1.msra.mxu0 0.0
    %2107 = vmatprep.subr.mxu0 0.0
    %2108 = vmatpush1.msra.mxu0 0.0
    %2109 = vmatprep.subr.mxu0 0.0
    %2110 = vmatpush1.msra.mxu0 0.0
    %2111 = vmatprep.subr.mxu0 0.0
    %2112 = vmatpush1.msra.mxu0 0.0
    %2113 = vmatprep.subr.mxu0 0.0
    %2114 = vmatpush1.msra.mxu0 0.0
    %2115 = vmatprep.subr.mxu0 0.0
    %2116 = vmatpush1.msra.mxu0 0.0
    %2117 = vmatprep.subr.mxu0 0.0
    %2118 = vmatpush1.msra.mxu0 0.0
    %2119 = vmatprep.subr.mxu0 0.0
    %2120 = vmatpush1.msra.mxu0 0.0
    %2121 = vmatprep.subr.mxu0 0.0
    %2122 = vmatpush1.msra.mxu0 0.0
    %2123 = vmatprep.subr.mxu0 0.0
    %2124 = vmatpush1.msra.mxu0 0.0
    %2125 = vmatprep.subr.mxu0 0.0
    %2126 = vmatpush1.msra.mxu0 0.0
    %2127 = vmatprep.subr.mxu0 0.0
    %2128 = vmatpush1.msra.mxu0 0.0
    %2129 = vmatprep.subr.mxu0 0.0
    %2130 = vmatpush1.msra.mxu0 0.0
    %2131 = vmatprep.subr.mxu0 0.0
    %2132 = vmatpush1.msra.mxu0 0.0
    %2133 = vmatprep.subr.mxu0 0.0
    %2134 = vmatpush1.msra.mxu0 0.0
    %2135 = vmatprep.subr.mxu0 0.0
    %2136 = vmatpush1.msra.mxu0 0.0
    %2137 = vmatprep.subr.mxu0 0.0
    %2138 = vmatpush1.msra.mxu0 0.0
    %2139 = vmatprep.subr.mxu0 0.0
    %2140 = vmatpush1.msra.mxu0 0.0
    %2141 = vmatprep.subr.mxu0 0.0
    %2142 = vmatpush1.msra.mxu0 0.0
    %2143 = vmatprep.subr.mxu0 0.0
    %2144 = vmatpush1.msra.mxu0 0.0
    %2145 = vmatprep.subr.mxu0 0.0
    %2146 = vmatpush1.msra.mxu0 0.0
    %2147 = vmatprep.subr.mxu0 0.0
    %2148 = vmatpush1.msra.mxu0 0.0
    %2149 = vmatprep.subr.mxu0 0.0
    %2150 = vmatpush1.msra.mxu0 0.0
    %2151 = vmatprep.subr.mxu0 0.0
    %2152 = vmatpush1.msra.mxu0 0.0
    %2153 = vmatprep.mubr.f32.mxu0 0.0
    %2154 = vmatmul.mubr.f32.gmra.mrb[0].mxu0 %v2087
    %v2155 = vpop.f32.mrb[0].mxu0
    %v2156 = vadd.f32 %v1860, %v2155
    %v2157 = vpop.f32.mrb[0].mxu0
    %2158 = vdwg.mxu0
    %v2159 = vxor.u32 %v2156, 2147483648
    %v2160 = vmul.f32 %v2159, 1.442695
    %v2161 = vpow.pop %v2160
    %v2162 = vadd.f32 %v2161, 1.0
    %v2163 = vrcp.pop %v2162
    %v2164 = vmul.f32 1.0, %v2163
    %v2165 = vtanh.pop %v2156
    %v2166 = vmul.f32 %v2164, %v1952
    %2168 = vrot.lane.b32.xlu0 %v2165, 64
    %v2169 = vpop.permute.xlu0 %2168
    %v2171 = vmul.f32 %v2164, %v2169
    %2173 = vrot.lane.b32.xlu0 %v2171, 32
    %v2174 = vpop.permute.xlu0 %2173
    %v2176 = vadd.f32 %v2166, %v2174
    %v2177 = vtanh.pop %v2176
    %2179 = vrot.lane.b32.xlu0 %v2177, 64
    %v2180 = vpop.permute.xlu0 %2179
    %v2182 = vmul.f32 %v2164, %v2180
    %2184 = vrot.lane.b32.xlu0 %v2182, 32
    %v2185 = vpop.permute.xlu0 %2184
    %2188 = vrot.lane.b32.xlu0 %v2079, 64
    %v2189 = vpop.permute.xlu0 %2188
    %v2191 = vsel %vm242, %v2185, %v2189
    %v2193 = vsel %vm259, %v2191, 0
    %2195 = vmatprep.subr.mxu0 0.0
    %2196 = vmatpush1.msra.mxu0 %v1968
    %2197 = vmatprep.subr.mxu0 0.0
    %2198 = vmatpush1.msra.mxu0 %v1969
    %2199 = vmatprep.subr.mxu0 0.0
    %2200 = vmatpush1.msra.mxu0 %v1970
    %2201 = vmatprep.subr.mxu0 0.0
    %2202 = vmatpush1.msra.mxu0 %v1971
    %2203 = vmatprep.subr.mxu0 0.0
    %2204 = vmatpush1.msra.mxu0 %v1972
    %2205 = vmatprep.subr.mxu0 0.0
    %2206 = vmatpush1.msra.mxu0 %v1973
    %2207 = vmatprep.subr.mxu0 0.0
    %2208 = vmatpush1.msra.mxu0 %v1974
    %2209 = vmatprep.subr.mxu0 0.0
    %2210 = vmatpush1.msra.mxu0 %v1975
    %2211 = vmatprep.subr.mxu0 0.0
    %2212 = vmatpush1.msra.mxu0 0.0
    %2213 = vmatprep.subr.mxu0 0.0
    %2214 = vmatpush1.msra.mxu0 0.0
    %2215 = vmatprep.subr.mxu0 0.0
    %2216 = vmatpush1.msra.mxu0 0.0
    %2217 = vmatprep.subr.mxu0 0.0
    %2218 = vmatpush1.msra.mxu0 0.0
    %2219 = vmatprep.subr.mxu0 0.0
    %2220 = vmatpush1.msra.mxu0 0.0
    %2221 = vmatprep.subr.mxu0 0.0
    %2222 = vmatpush1.msra.mxu0 0.0
    %2223 = vmatprep.subr.mxu0 0.0
    %2224 = vmatpush1.msra.mxu0 0.0
    %2225 = vmatprep.subr.mxu0 0.0
    %2226 = vmatpush1.msra.mxu0 0.0
    %2227 = vmatprep.subr.mxu0 0.0
    %2228 = vmatpush1.msra.mxu0 0.0
    %2229 = vmatprep.subr.mxu0 0.0
    %2230 = vmatpush1.msra.mxu0 0.0
    %2231 = vmatprep.subr.mxu0 0.0
    %2232 = vmatpush1.msra.mxu0 0.0
    %2233 = vmatprep.subr.mxu0 0.0
    %2234 = vmatpush1.msra.mxu0 0.0
    %2235 = vmatprep.subr.mxu0 0.0
    %2236 = vmatpush1.msra.mxu0 0.0
    %2237 = vmatprep.subr.mxu0 0.0
    %2238 = vmatpush1.msra.mxu0 0.0
    %2239 = vmatprep.subr.mxu0 0.0
    %2240 = vmatpush1.msra.mxu0 0.0
    %2241 = vmatprep.subr.mxu0 0.0
    %2242 = vmatpush1.msra.mxu0 0.0
    %2243 = vmatprep.subr.mxu0 0.0
    %2244 = vmatpush1.msra.mxu0 0.0
    %2245 = vmatprep.subr.mxu0 0.0
    %2246 = vmatpush1.msra.mxu0 0.0
    %2247 = vmatprep.subr.mxu0 0.0
    %2248 = vmatpush1.msra.mxu0 0.0
    %2249 = vmatprep.subr.mxu0 0.0
    %2250 = vmatpush1.msra.mxu0 0.0
    %2251 = vmatprep.subr.mxu0 0.0
    %2252 = vmatpush1.msra.mxu0 0.0
    %2253 = vmatprep.subr.mxu0 0.0
    %2254 = vmatpush1.msra.mxu0 0.0
    %2255 = vmatprep.subr.mxu0 0.0
    %2256 = vmatpush1.msra.mxu0 0.0
    %2257 = vmatprep.subr.mxu0 0.0
    %2258 = vmatpush1.msra.mxu0 0.0
    %2259 = vmatprep.mubr.f32.mxu0 0.0
    %2260 = vmatmul.mubr.f32.gmra.mrb[0].mxu0 %v2193
    %v2261 = vpop.f32.mrb[0].mxu0
    %v2262 = vadd.f32 %v1981, %v2261
    %v2263 = vpop.f32.mrb[0].mxu0
    %2264 = vdwg.mxu0
    %v2265 = vxor.u32 %v2262, 2147483648
    %v2266 = vmul.f32 %v2265, 1.442695
    %v2267 = vpow.pop %v2266
    %v2268 = vadd.f32 %v2267, 1.0
    %v2269 = vrcp.pop %v2268
    %v2270 = vmul.f32 1.0, %v2269
    %v2271 = vtanh.pop %v2262
    %v2272 = vmul.f32 %v2270, %v2073
    %2274 = vrot.lane.b32.xlu0 %v2271, 64
    %v2275 = vpop.permute.xlu0 %2274
    %v2277 = vmul.f32 %v2270, %v2275
    %2279 = vrot.lane.b32.xlu0 %v2277, 32
    %v2280 = vpop.permute.xlu0 %2279
    %v2282 = vadd.f32 %v2272, %v2280
    %v2283 = vtanh.pop %v2282
    %2285 = vrot.lane.b32.xlu0 %v2283, 64
    %v2286 = vpop.permute.xlu0 %2285
    %v2288 = vmul.f32 %v2270, %v2286
    %v2289 = vrot.slane %v2182, 6
    %2290 = vrot.lane.b32.xlu0 %v2289, 48
    %v2291 = vpop.permute.xlu0 %2290
    %v2293 = vsel %vm125, %v570, %v2291
    %v2295 = vrot.slane %v2293, 2
    %v2296 = vsel %vm140, %v2295, 0
    %2298 = vmatprep.subr.mxu0 0.0
    %2299 = vmatpush1.msra.mxu0 %v1849
    %2300 = vmatprep.subr.mxu0 0.0
    %2301 = vmatpush1.msra.mxu0 %v1850
    %2302 = vmatprep.subr.mxu0 0.0
    %2303 = vmatpush1.msra.mxu0 %v1851
    %2304 = vmatprep.subr.mxu0 0.0
    %2305 = vmatpush1.msra.mxu0 %v1852
    %2306 = vmatprep.subr.mxu0 0.0
    %2307 = vmatpush1.msra.mxu0 %v1853
    %2308 = vmatprep.subr.mxu0 0.0
    %2309 = vmatpush1.msra.mxu0 %v1854
    %2310 = vmatprep.subr.mxu0 0.0
    %2311 = vmatpush1.msra.mxu0 0.0
    %2312 = vmatprep.subr.mxu0 0.0
    %2313 = vmatpush1.msra.mxu0 0.0
    %2314 = vmatprep.subr.mxu0 0.0
    %2315 = vmatpush1.msra.mxu0 0.0
    %2316 = vmatprep.subr.mxu0 0.0
    %2317 = vmatpush1.msra.mxu0 0.0
    %2318 = vmatprep.subr.mxu0 0.0
    %2319 = vmatpush1.msra.mxu0 0.0
    %2320 = vmatprep.subr.mxu0 0.0
    %2321 = vmatpush1.msra.mxu0 0.0
    %2322 = vmatprep.subr.mxu0 0.0
    %2323 = vmatpush1.msra.mxu0 0.0
    %2324 = vmatprep.subr.mxu0 0.0
    %2325 = vmatpush1.msra.mxu0 0.0
    %2326 = vmatprep.subr.mxu0 0.0
    %2327 = vmatpush1.msra.mxu0 0.0
    %2328 = vmatprep.subr.mxu0 0.0
    %2329 = vmatpush1.msra.mxu0 0.0
    %2330 = vmatprep.subr.mxu0 0.0
    %2331 = vmatpush1.msra.mxu0 0.0
    %2332 = vmatprep.subr.mxu0 0.0
    %2333 = vmatpush1.msra.mxu0 0.0
    %2334 = vmatprep.subr.mxu0 0.0
    %2335 = vmatpush1.msra.mxu0 0.0
    %2336 = vmatprep.subr.mxu0 0.0
    %2337 = vmatpush1.msra.mxu0 0.0
    %2338 = vmatprep.subr.mxu0 0.0
    %2339 = vmatpush1.msra.mxu0 0.0
    %2340 = vmatprep.subr.mxu0 0.0
    %2341 = vmatpush1.msra.mxu0 0.0
    %2342 = vmatprep.subr.mxu0 0.0
    %2343 = vmatpush1.msra.mxu0 0.0
    %2344 = vmatprep.subr.mxu0 0.0
    %2345 = vmatpush1.msra.mxu0 0.0
    %2346 = vmatprep.subr.mxu0 0.0
    %2347 = vmatpush1.msra.mxu0 0.0
    %2348 = vmatprep.subr.mxu0 0.0
    %2349 = vmatpush1.msra.mxu0 0.0
    %2350 = vmatprep.subr.mxu0 0.0
    %2351 = vmatpush1.msra.mxu0 0.0
    %2352 = vmatprep.subr.mxu0 0.0
    %2353 = vmatpush1.msra.mxu0 0.0
    %2354 = vmatprep.subr.mxu0 0.0
    %2355 = vmatpush1.msra.mxu0 0.0
    %2356 = vmatprep.subr.mxu0 0.0
    %2357 = vmatpush1.msra.mxu0 0.0
    %2358 = vmatprep.subr.mxu0 0.0
    %2359 = vmatpush1.msra.mxu0 0.0
    %2360 = vmatprep.subr.mxu0 0.0
    %2361 = vmatpush1.msra.mxu0 0.0
    %2362 = vmatprep.mubr.f32.mxu0 0.0
    %2363 = vmatmul.mubr.f32.gmra.mrb[0].mxu0 %v2296
    %v2364 = vpop.f32.mrb[0].mxu0
    %v2365 = vadd.f32 %v1860, %v2364
    %v2366 = vpop.f32.mrb[0].mxu0
    %2367 = vdwg.mxu0
    %v2368 = vxor.u32 %v2365, 2147483648
    %v2369 = vmul.f32 %v2368, 1.442695
    %v2370 = vpow.pop %v2369
    %v2371 = vadd.f32 %v2370, 1.0
    %v2372 = vrcp.pop %v2371
    %v2373 = vmul.f32 1.0, %v2372
    %v2374 = vtanh.pop %v2365
    %v2375 = vmul.f32 %v2373, %v2176
    %2377 = vrot.lane.b32.xlu0 %v2374, 64
    %v2378 = vpop.permute.xlu0 %2377
    %v2380 = vmul.f32 %v2373, %v2378
    %2382 = vrot.lane.b32.xlu0 %v2380, 32
    %v2383 = vpop.permute.xlu0 %2382
    %v2385 = vadd.f32 %v2375, %v2383
    %v2386 = vtanh.pop %v2385
    %2388 = vrot.lane.b32.xlu0 %v2386, 64
    %v2389 = vpop.permute.xlu0 %2388
    %v2391 = vmul.f32 %v2373, %v2389
    %2393 = vrot.lane.b32.xlu0 %v2391, 32
    %v2394 = vpop.permute.xlu0 %2393
    %2397 = vrot.lane.b32.xlu0 %v2288, 64
    %v2398 = vpop.permute.xlu0 %2397
    %v2400 = vsel %vm242, %v2394, %v2398
    %v2402 = vsel %vm259, %v2400, 0
    %2404 = vmatprep.subr.mxu0 0.0
    %2405 = vmatpush1.msra.mxu0 %v1968
    %2406 = vmatprep.subr.mxu0 0.0
    %2407 = vmatpush1.msra.mxu0 %v1969
    %2408 = vmatprep.subr.mxu0 0.0
    %2409 = vmatpush1.msra.mxu0 %v1970
    %2410 = vmatprep.subr.mxu0 0.0
    %2411 = vmatpush1.msra.mxu0 %v1971
    %2412 = vmatprep.subr.mxu0 0.0
    %2413 = vmatpush1.msra.mxu0 %v1972
    %2414 = vmatprep.subr.mxu0 0.0
    %2415 = vmatpush1.msra.mxu0 %v1973
    %2416 = vmatprep.subr.mxu0 0.0
    %2417 = vmatpush1.msra.mxu0 %v1974
    %2418 = vmatprep.subr.mxu0 0.0
    %2419 = vmatpush1.msra.mxu0 %v1975
    %2420 = vmatprep.subr.mxu0 0.0
    %2421 = vmatpush1.msra.mxu0 0.0
    %2422 = vmatprep.subr.mxu0 0.0
    %2423 = vmatpush1.msra.mxu0 0.0
    %2424 = vmatprep.subr.mxu0 0.0
    %2425 = vmatpush1.msra.mxu0 0.0
    %2426 = vmatprep.subr.mxu0 0.0
    %2427 = vmatpush1.msra.mxu0 0.0
    %2428 = vmatprep.subr.mxu0 0.0
    %2429 = vmatpush1.msra.mxu0 0.0
    %2430 = vmatprep.subr.mxu0 0.0
    %2431 = vmatpush1.msra.mxu0 0.0
    %2432 = vmatprep.subr.mxu0 0.0
    %2433 = vmatpush1.msra.mxu0 0.0
    %2434 = vmatprep.subr.mxu0 0.0
    %2435 = vmatpush1.msra.mxu0 0.0
    %2436 = vmatprep.subr.mxu0 0.0
    %2437 = vmatpush1.msra.mxu0 0.0
    %2438 = vmatprep.subr.mxu0 0.0
    %2439 = vmatpush1.msra.mxu0 0.0
    %2440 = vmatprep.subr.mxu0 0.0
    %2441 = vmatpush1.msra.mxu0 0.0
    %2442 = vmatprep.subr.mxu0 0.0
    %2443 = vmatpush1.msra.mxu0 0.0
    %2444 = vmatprep.subr.mxu0 0.0
    %2445 = vmatpush1.msra.mxu0 0.0
    %2446 = vmatprep.subr.mxu0 0.0
    %2447 = vmatpush1.msra.mxu0 0.0
    %2448 = vmatprep.subr.mxu0 0.0
    %2449 = vmatpush1.msra.mxu0 0.0
    %2450 = vmatprep.subr.mxu0 0.0
    %2451 = vmatpush1.msra.mxu0 0.0
    %2452 = vmatprep.subr.mxu0 0.0
    %2453 = vmatpush1.msra.mxu0 0.0
    %2454 = vmatprep.subr.mxu0 0.0
    %2455 = vmatpush1.msra.mxu0 0.0
    %2456 = vmatprep.subr.mxu0 0.0
    %2457 = vmatpush1.msra.mxu0 0.0
    %2458 = vmatprep.subr.mxu0 0.0
    %2459 = vmatpush1.msra.mxu0 0.0
    %2460 = vmatprep.subr.mxu0 0.0
    %2461 = vmatpush1.msra.mxu0 0.0
    %2462 = vmatprep.subr.mxu0 0.0
    %2463 = vmatpush1.msra.mxu0 0.0
    %2464 = vmatprep.subr.mxu0 0.0
    %2465 = vmatpush1.msra.mxu0 0.0
    %2466 = vmatprep.subr.mxu0 0.0
    %2467 = vmatpush1.msra.mxu0 0.0
    %2468 = vmatprep.mubr.f32.mxu0 0.0
    %2469 = vmatmul.mubr.f32.gmra.mrb[0].mxu0 %v2402
    %v2470 = vpop.f32.mrb[0].mxu0
    %v2471 = vadd.f32 %v1981, %v2470
    %v2472 = vpop.f32.mrb[0].mxu0
    %2473 = vdwg.mxu0
    %v2474 = vxor.u32 %v2471, 2147483648
    %v2475 = vmul.f32 %v2474, 1.442695
    %v2476 = vpow.pop %v2475
    %v2477 = vadd.f32 %v2476, 1.0
    %v2478 = vrcp.pop %v2477
    %v2479 = vmul.f32 1.0, %v2478
    %v2480 = vtanh.pop %v2471
    %v2481 = vmul.f32 %v2479, %v2282
    %2483 = vrot.lane.b32.xlu0 %v2480, 64
    %v2484 = vpop.permute.xlu0 %2483
    %v2486 = vmul.f32 %v2479, %v2484
    %2488 = vrot.lane.b32.xlu0 %v2486, 32
    %v2489 = vpop.permute.xlu0 %2488
    %v2491 = vadd.f32 %v2481, %v2489
    %v2492 = vtanh.pop %v2491
    %2494 = vrot.lane.b32.xlu0 %v2492, 64
    %v2495 = vpop.permute.xlu0 %2494
    %v2497 = vmul.f32 %v2479, %v2495
    %v2498 = vrot.slane %v2391, 5
    %2499 = vrot.lane.b32.xlu0 %v2498, 48
    %v2500 = vpop.permute.xlu0 %2499
    %v2502 = vsel %vm125, %v782, %v2500
    %v2504 = vrot.slane %v2502, 3
    %v2505 = vsel %vm140, %v2504, 0
    %2507 = vmatprep.subr.mxu0 0.0
    %2508 = vmatpush1.msra.mxu0 %v1849
    %2509 = vmatprep.subr.mxu0 0.0
    %2510 = vmatpush1.msra.mxu0 %v1850
    %2511 = vmatprep.subr.mxu0 0.0
    %2512 = vmatpush1.msra.mxu0 %v1851
    %2513 = vmatprep.subr.mxu0 0.0
    %2514 = vmatpush1.msra.mxu0 %v1852
    %2515 = vmatprep.subr.mxu0 0.0
    %2516 = vmatpush1.msra.mxu0 %v1853
    %2517 = vmatprep.subr.mxu0 0.0
    %2518 = vmatpush1.msra.mxu0 %v1854
    %2519 = vmatprep.subr.mxu0 0.0
    %2520 = vmatpush1.msra.mxu0 0.0
    %2521 = vmatprep.subr.mxu0 0.0
    %2522 = vmatpush1.msra.mxu0 0.0
    %2523 = vmatprep.subr.mxu0 0.0
    %2524 = vmatpush1.msra.mxu0 0.0
    %2525 = vmatprep.subr.mxu0 0.0
    %2526 = vmatpush1.msra.mxu0 0.0
    %2527 = vmatprep.subr.mxu0 0.0
    %2528 = vmatpush1.msra.mxu0 0.0
    %2529 = vmatprep.subr.mxu0 0.0
    %2530 = vmatpush1.msra.mxu0 0.0
    %2531 = vmatprep.subr.mxu0 0.0
    %2532 = vmatpush1.msra.mxu0 0.0
    %2533 = vmatprep.subr.mxu0 0.0
    %2534 = vmatpush1.msra.mxu0 0.0
    %2535 = vmatprep.subr.mxu0 0.0
    %2536 = vmatpush1.msra.mxu0 0.0
    %2537 = vmatprep.subr.mxu0 0.0
    %2538 = vmatpush1.msra.mxu0 0.0
    %2539 = vmatprep.subr.mxu0 0.0
    %2540 = vmatpush1.msra.mxu0 0.0
    %2541 = vmatprep.subr.mxu0 0.0
    %2542 = vmatpush1.msra.mxu0 0.0
    %2543 = vmatprep.subr.mxu0 0.0
    %2544 = vmatpush1.msra.mxu0 0.0
    %2545 = vmatprep.subr.mxu0 0.0
    %2546 = vmatpush1.msra.mxu0 0.0
    %2547 = vmatprep.subr.mxu0 0.0
    %2548 = vmatpush1.msra.mxu0 0.0
    %2549 = vmatprep.subr.mxu0 0.0
    %2550 = vmatpush1.msra.mxu0 0.0
    %2551 = vmatprep.subr.mxu0 0.0
    %2552 = vmatpush1.msra.mxu0 0.0
    %2553 = vmatprep.subr.mxu0 0.0
    %2554 = vmatpush1.msra.mxu0 0.0
    %2555 = vmatprep.subr.mxu0 0.0
    %2556 = vmatpush1.msra.mxu0 0.0
    %2557 = vmatprep.subr.mxu0 0.0
    %2558 = vmatpush1.msra.mxu0 0.0
    %2559 = vmatprep.subr.mxu0 0.0
    %2560 = vmatpush1.msra.mxu0 0.0
    %2561 = vmatprep.subr.mxu0 0.0
    %2562 = vmatpush1.msra.mxu0 0.0
    %2563 = vmatprep.subr.mxu0 0.0
    %2564 = vmatpush1.msra.mxu0 0.0
    %2565 = vmatprep.subr.mxu0 0.0
    %2566 = vmatpush1.msra.mxu0 0.0
    %2567 = vmatprep.subr.mxu0 0.0
    %2568 = vmatpush1.msra.mxu0 0.0
    %2569 = vmatprep.subr.mxu0 0.0
    %2570 = vmatpush1.msra.mxu0 0.0
    %2571 = vmatprep.mubr.f32.mxu0 0.0
    %2572 = vmatmul.mubr.f32.gmra.mrb[0].mxu0 %v2505
    %v2573 = vpop.f32.mrb[0].mxu0
    %v2574 = vadd.f32 %v1860, %v2573
    %v2575 = vpop.f32.mrb[0].mxu0
    %2576 = vdwg.mxu0
    %v2577 = vxor.u32 %v2574, 2147483648
    %v2578 = vmul.f32 %v2577, 1.442695
    %v2579 = vpow.pop %v2578
    %v2580 = vadd.f32 %v2579, 1.0
    %v2581 = vrcp.pop %v2580
    %v2582 = vmul.f32 1.0, %v2581
    %v2583 = vtanh.pop %v2574
    %v2584 = vmul.f32 %v2582, %v2385
    %2586 = vrot.lane.b32.xlu0 %v2583, 64
    %v2587 = vpop.permute.xlu0 %2586
    %v2589 = vmul.f32 %v2582, %v2587
    %2591 = vrot.lane.b32.xlu0 %v2589, 32
    %v2592 = vpop.permute.xlu0 %2591
    %v2594 = vadd.f32 %v2584, %v2592
    %v2595 = vtanh.pop %v2594
    %2597 = vrot.lane.b32.xlu0 %v2595, 64
    %v2598 = vpop.permute.xlu0 %2597
    %v2600 = vmul.f32 %v2582, %v2598
    %2602 = vrot.lane.b32.xlu0 %v2600, 32
    %v2603 = vpop.permute.xlu0 %2602
    %2606 = vrot.lane.b32.xlu0 %v2497, 64
    %v2607 = vpop.permute.xlu0 %2606
    %v2609 = vsel %vm242, %v2603, %v2607
    %v2611 = vsel %vm259, %v2609, 0
    %2613 = vmatprep.subr.mxu0 0.0
    %2614 = vmatpush1.msra.mxu0 %v1968
    %2615 = vmatprep.subr.mxu0 0.0
    %2616 = vmatpush1.msra.mxu0 %v1969
    %2617 = vmatprep.subr.mxu0 0.0
    %2618 = vmatpush1.msra.mxu0 %v1970
    %2619 = vmatprep.subr.mxu0 0.0
    %2620 = vmatpush1.msra.mxu0 %v1971
    %2621 = vmatprep.subr.mxu0 0.0
    %2622 = vmatpush1.msra.mxu0 %v1972
    %2623 = vmatprep.subr.mxu0 0.0
    %2624 = vmatpush1.msra.mxu0 %v1973
    %2625 = vmatprep.subr.mxu0 0.0
    %2626 = vmatpush1.msra.mxu0 %v1974
    %2627 = vmatprep.subr.mxu0 0.0
    %2628 = vmatpush1.msra.mxu0 %v1975
    %2629 = vmatprep.subr.mxu0 0.0
    %2630 = vmatpush1.msra.mxu0 0.0
    %2631 = vmatprep.subr.mxu0 0.0
    %2632 = vmatpush1.msra.mxu0 0.0
    %2633 = vmatprep.subr.mxu0 0.0
    %2634 = vmatpush1.msra.mxu0 0.0
    %2635 = vmatprep.subr.mxu0 0.0
    %2636 = vmatpush1.msra.mxu0 0.0
    %2637 = vmatprep.subr.mxu0 0.0
    %2638 = vmatpush1.msra.mxu0 0.0
    %2639 = vmatprep.subr.mxu0 0.0
    %2640 = vmatpush1.msra.mxu0 0.0
    %2641 = vmatprep.subr.mxu0 0.0
    %2642 = vmatpush1.msra.mxu0 0.0
    %2643 = vmatprep.subr.mxu0 0.0
    %2644 = vmatpush1.msra.mxu0 0.0
    %2645 = vmatprep.subr.mxu0 0.0
    %2646 = vmatpush1.msra.mxu0 0.0
    %2647 = vmatprep.subr.mxu0 0.0
    %2648 = vmatpush1.msra.mxu0 0.0
    %2649 = vmatprep.subr.mxu0 0.0
    %2650 = vmatpush1.msra.mxu0 0.0
    %2651 = vmatprep.subr.mxu0 0.0
    %2652 = vmatpush1.msra.mxu0 0.0
    %2653 = vmatprep.subr.mxu0 0.0
    %2654 = vmatpush1.msra.mxu0 0.0
    %2655 = vmatprep.subr.mxu0 0.0
    %2656 = vmatpush1.msra.mxu0 0.0
    %2657 = vmatprep.subr.mxu0 0.0
    %2658 = vmatpush1.msra.mxu0 0.0
    %2659 = vmatprep.subr.mxu0 0.0
    %2660 = vmatpush1.msra.mxu0 0.0
    %2661 = vmatprep.subr.mxu0 0.0
    %2662 = vmatpush1.msra.mxu0 0.0
    %2663 = vmatprep.subr.mxu0 0.0
    %2664 = vmatpush1.msra.mxu0 0.0
    %2665 = vmatprep.subr.mxu0 0.0
    %2666 = vmatpush1.msra.mxu0 0.0
    %2667 = vmatprep.subr.mxu0 0.0
    %2668 = vmatpush1.msra.mxu0 0.0
    %2669 = vmatprep.subr.mxu0 0.0
    %2670 = vmatpush1.msra.mxu0 0.0
    %2671 = vmatprep.subr.mxu0 0.0
    %2672 = vmatpush1.msra.mxu0 0.0
    %2673 = vmatprep.subr.mxu0 0.0
    %2674 = vmatpush1.msra.mxu0 0.0
    %2675 = vmatprep.subr.mxu0 0.0
    %2676 = vmatpush1.msra.mxu0 0.0
    %2677 = vmatprep.mubr.f32.mxu0 0.0
    %2678 = vmatmul.mubr.f32.gmra.mrb[0].mxu0 %v2611
    %v2679 = vpop.f32.mrb[0].mxu0
    %v2680 = vadd.f32 %v1981, %v2679
    %v2681 = vpop.f32.mrb[0].mxu0
    %2682 = vdwg.mxu0
    %v2683 = vxor.u32 %v2680, 2147483648
    %v2684 = vmul.f32 %v2683, 1.442695
    %v2685 = vpow.pop %v2684
    %v2686 = vadd.f32 %v2685, 1.0
    %v2687 = vrcp.pop %v2686
    %v2688 = vmul.f32 1.0, %v2687
    %v2689 = vtanh.pop %v2680
    %v2690 = vmul.f32 %v2688, %v2491
    %2692 = vrot.lane.b32.xlu0 %v2689, 64
    %v2693 = vpop.permute.xlu0 %2692
    %v2695 = vmul.f32 %v2688, %v2693
    %2697 = vrot.lane.b32.xlu0 %v2695, 32
    %v2698 = vpop.permute.xlu0 %2697
    %v2700 = vadd.f32 %v2690, %v2698
    %v2701 = vtanh.pop %v2700
    %2703 = vrot.lane.b32.xlu0 %v2701, 64
    %v2704 = vpop.permute.xlu0 %2703
    %v2706 = vmul.f32 %v2688, %v2704
    %v2707 = vrot.slane %v2600, 4
    %2708 = vrot.lane.b32.xlu0 %v2707, 48
    %v2709 = vpop.permute.xlu0 %2708
    %v2711 = vsel %vm125, %v994, %v2709
    %v2713 = vrot.slane %v2711, 4
    %v2714 = vsel %vm140, %v2713, 0
    %2716 = vmatprep.subr.mxu0 0.0
    %2717 = vmatpush1.msra.mxu0 %v1849
    %2718 = vmatprep.subr.mxu0 0.0
    %2719 = vmatpush1.msra.mxu0 %v1850
    %2720 = vmatprep.subr.mxu0 0.0
    %2721 = vmatpush1.msra.mxu0 %v1851
    %2722 = vmatprep.subr.mxu0 0.0
    %2723 = vmatpush1.msra.mxu0 %v1852
    %2724 = vmatprep.subr.mxu0 0.0
    %2725 = vmatpush1.msra.mxu0 %v1853
    %2726 = vmatprep.subr.mxu0 0.0
    %2727 = vmatpush1.msra.mxu0 %v1854
    %2728 = vmatprep.subr.mxu0 0.0
    %2729 = vmatpush1.msra.mxu0 0.0
    %2730 = vmatprep.subr.mxu0 0.0
    %2731 = vmatpush1.msra.mxu0 0.0
    %2732 = vmatprep.subr.mxu0 0.0
    %2733 = vmatpush1.msra.mxu0 0.0
    %2734 = vmatprep.subr.mxu0 0.0
    %2735 = vmatpush1.msra.mxu0 0.0
    %2736 = vmatprep.subr.mxu0 0.0
    %2737 = vmatpush1.msra.mxu0 0.0
    %2738 = vmatprep.subr.mxu0 0.0
    %2739 = vmatpush1.msra.mxu0 0.0
    %2740 = vmatprep.subr.mxu0 0.0
    %2741 = vmatpush1.msra.mxu0 0.0
    %2742 = vmatprep.subr.mxu0 0.0
    %2743 = vmatpush1.msra.mxu0 0.0
    %2744 = vmatprep.subr.mxu0 0.0
    %2745 = vmatpush1.msra.mxu0 0.0
    %2746 = vmatprep.subr.mxu0 0.0
    %2747 = vmatpush1.msra.mxu0 0.0
    %2748 = vmatprep.subr.mxu0 0.0
    %2749 = vmatpush1.msra.mxu0 0.0
    %2750 = vmatprep.subr.mxu0 0.0
    %2751 = vmatpush1.msra.mxu0 0.0
    %2752 = vmatprep.subr.mxu0 0.0
    %2753 = vmatpush1.msra.mxu0 0.0
    %2754 = vmatprep.subr.mxu0 0.0
    %2755 = vmatpush1.msra.mxu0 0.0
    %2756 = vmatprep.subr.mxu0 0.0
    %2757 = vmatpush1.msra.mxu0 0.0
    %2758 = vmatprep.subr.mxu0 0.0
    %2759 = vmatpush1.msra.mxu0 0.0
    %2760 = vmatprep.subr.mxu0 0.0
    %2761 = vmatpush1.msra.mxu0 0.0
    %2762 = vmatprep.subr.mxu0 0.0
    %2763 = vmatpush1.msra.mxu0 0.0
    %2764 = vmatprep.subr.mxu0 0.0
    %2765 = vmatpush1.msra.mxu0 0.0
    %2766 = vmatprep.subr.mxu0 0.0
    %2767 = vmatpush1.msra.mxu0 0.0
    %2768 = vmatprep.subr.mxu0 0.0
    %2769 = vmatpush1.msra.mxu0 0.0
    %2770 = vmatprep.subr.mxu0 0.0
    %2771 = vmatpush1.msra.mxu0 0.0
    %2772 = vmatprep.subr.mxu0 0.0
    %2773 = vmatpush1.msra.mxu0 0.0
    %2774 = vmatprep.subr.mxu0 0.0
    %2775 = vmatpush1.msra.mxu0 0.0
    %2776 = vmatprep.subr.mxu0 0.0
    %2777 = vmatpush1.msra.mxu0 0.0
    %2778 = vmatprep.subr.mxu0 0.0
    %2779 = vmatpush1.msra.mxu0 0.0
    %2780 = vmatprep.mubr.f32.mxu0 0.0
    %2781 = vmatmul.mubr.f32.gmra.mrb[0].mxu0 %v2714
    %v2782 = vpop.f32.mrb[0].mxu0
    %v2783 = vadd.f32 %v1860, %v2782
    %v2784 = vpop.f32.mrb[0].mxu0
    %2785 = vdwg.mxu0
    %v2786 = vxor.u32 %v2783, 2147483648
    %v2787 = vmul.f32 %v2786, 1.442695
    %v2788 = vpow.pop %v2787
    %v2789 = vadd.f32 %v2788, 1.0
    %v2790 = vrcp.pop %v2789
    %v2791 = vmul.f32 1.0, %v2790
    %v2792 = vtanh.pop %v2783
    %v2793 = vmul.f32 %v2791, %v2594
    %2795 = vrot.lane.b32.xlu0 %v2792, 64
    %v2796 = vpop.permute.xlu0 %2795
    %v2798 = vmul.f32 %v2791, %v2796
    %2800 = vrot.lane.b32.xlu0 %v2798, 32
    %v2801 = vpop.permute.xlu0 %2800
    %v2803 = vadd.f32 %v2793, %v2801
    %v2804 = vtanh.pop %v2803
    %2806 = vrot.lane.b32.xlu0 %v2804, 64
    %v2807 = vpop.permute.xlu0 %2806
    %v2809 = vmul.f32 %v2791, %v2807
    %2811 = vrot.lane.b32.xlu0 %v2809, 32
    %v2812 = vpop.permute.xlu0 %2811
    %2815 = vrot.lane.b32.xlu0 %v2706, 64
    %v2816 = vpop.permute.xlu0 %2815
    %v2818 = vsel %vm242, %v2812, %v2816
    %v2820 = vsel %vm259, %v2818, 0
    %2822 = vmatprep.subr.mxu0 0.0
    %2823 = vmatpush1.msra.mxu0 %v1968
    %2824 = vmatprep.subr.mxu0 0.0
    %2825 = vmatpush1.msra.mxu0 %v1969
    %2826 = vmatprep.subr.mxu0 0.0
    %2827 = vmatpush1.msra.mxu0 %v1970
    %2828 = vmatprep.subr.mxu0 0.0
    %2829 = vmatpush1.msra.mxu0 %v1971
    %2830 = vmatprep.subr.mxu0 0.0
    %2831 = vmatpush1.msra.mxu0 %v1972
    %2832 = vmatprep.subr.mxu0 0.0
    %2833 = vmatpush1.msra.mxu0 %v1973
    %2834 = vmatprep.subr.mxu0 0.0
    %2835 = vmatpush1.msra.mxu0 %v1974
    %2836 = vmatprep.subr.mxu0 0.0
    %2837 = vmatpush1.msra.mxu0 %v1975
    %2838 = vmatprep.subr.mxu0 0.0
    %2839 = vmatpush1.msra.mxu0 0.0
    %2840 = vmatprep.subr.mxu0 0.0
    %2841 = vmatpush1.msra.mxu0 0.0
    %2842 = vmatprep.subr.mxu0 0.0
    %2843 = vmatpush1.msra.mxu0 0.0
    %2844 = vmatprep.subr.mxu0 0.0
    %2845 = vmatpush1.msra.mxu0 0.0
    %2846 = vmatprep.subr.mxu0 0.0
    %2847 = vmatpush1.msra.mxu0 0.0
    %2848 = vmatprep.subr.mxu0 0.0
    %2849 = vmatpush1.msra.mxu0 0.0
    %2850 = vmatprep.subr.mxu0 0.0
    %2851 = vmatpush1.msra.mxu0 0.0
    %2852 = vmatprep.subr.mxu0 0.0
    %2853 = vmatpush1.msra.mxu0 0.0
    %2854 = vmatprep.subr.mxu0 0.0
    %2855 = vmatpush1.msra.mxu0 0.0
    %2856 = vmatprep.subr.mxu0 0.0
    %2857 = vmatpush1.msra.mxu0 0.0
    %2858 = vmatprep.subr.mxu0 0.0
    %2859 = vmatpush1.msra.mxu0 0.0
    %2860 = vmatprep.subr.mxu0 0.0
    %2861 = vmatpush1.msra.mxu0 0.0
    %2862 = vmatprep.subr.mxu0 0.0
    %2863 = vmatpush1.msra.mxu0 0.0
    %2864 = vmatprep.subr.mxu0 0.0
    %2865 = vmatpush1.msra.mxu0 0.0
    %2866 = vmatprep.subr.mxu0 0.0
    %2867 = vmatpush1.msra.mxu0 0.0
    %2868 = vmatprep.subr.mxu0 0.0
    %2869 = vmatpush1.msra.mxu0 0.0
    %2870 = vmatprep.subr.mxu0 0.0
    %2871 = vmatpush1.msra.mxu0 0.0
    %2872 = vmatprep.subr.mxu0 0.0
    %2873 = vmatpush1.msra.mxu0 0.0
    %2874 = vmatprep.subr.mxu0 0.0
    %2875 = vmatpush1.msra.mxu0 0.0
    %2876 = vmatprep.subr.mxu0 0.0
    %2877 = vmatpush1.msra.mxu0 0.0
    %2878 = vmatprep.subr.mxu0 0.0
    %2879 = vmatpush1.msra.mxu0 0.0
    %2880 = vmatprep.subr.mxu0 0.0
    %2881 = vmatpush1.msra.mxu0 0.0
    %2882 = vmatprep.subr.mxu0 0.0
    %2883 = vmatpush1.msra.mxu0 0.0
    %2884 = vmatprep.subr.mxu0 0.0
    %2885 = vmatpush1.msra.mxu0 0.0
    %2886 = vmatprep.mubr.f32.mxu0 0.0
    %2887 = vmatmul.mubr.f32.gmra.mrb[0].mxu0 %v2820
    %v2888 = vpop.f32.mrb[0].mxu0
    %v2889 = vadd.f32 %v1981, %v2888
    %v2890 = vpop.f32.mrb[0].mxu0
    %2891 = vdwg.mxu0
    %v2892 = vxor.u32 %v2889, 2147483648
    %v2893 = vmul.f32 %v2892, 1.442695
    %v2894 = vpow.pop %v2893
    %v2895 = vadd.f32 %v2894, 1.0
    %v2896 = vrcp.pop %v2895
    %v2897 = vmul.f32 1.0, %v2896
    %v2898 = vtanh.pop %v2889
    %v2899 = vmul.f32 %v2897, %v2700
    %2901 = vrot.lane.b32.xlu0 %v2898, 64
    %v2902 = vpop.permute.xlu0 %2901
    %v2904 = vmul.f32 %v2897, %v2902
    %2906 = vrot.lane.b32.xlu0 %v2904, 32
    %v2907 = vpop.permute.xlu0 %2906
    %v2909 = vadd.f32 %v2899, %v2907
    %v2910 = vtanh.pop %v2909
    %2912 = vrot.lane.b32.xlu0 %v2910, 64
    %v2913 = vpop.permute.xlu0 %2912
    %v2915 = vmul.f32 %v2897, %v2913
    %v2916 = vrot.slane %v2809, 3
    %2917 = vrot.lane.b32.xlu0 %v2916, 48
    %v2918 = vpop.permute.xlu0 %2917
    %v2920 = vsel %vm125, %v1206, %v2918
    %v2922 = vrot.slane %v2920, 5
    %v2923 = vsel %vm140, %v2922, 0
    %2925 = vmatprep.subr.mxu0 0.0
    %2926 = vmatpush1.msra.mxu0 %v1849
    %2927 = vmatprep.subr.mxu0 0.0
    %2928 = vmatpush1.msra.mxu0 %v1850
    %2929 = vmatprep.subr.mxu0 0.0
    %2930 = vmatpush1.msra.mxu0 %v1851
    %2931 = vmatprep.subr.mxu0 0.0
    %2932 = vmatpush1.msra.mxu0 %v1852
    %2933 = vmatprep.subr.mxu0 0.0
    %2934 = vmatpush1.msra.mxu0 %v1853
    %2935 = vmatprep.subr.mxu0 0.0
    %2936 = vmatpush1.msra.mxu0 %v1854
    %2937 = vmatprep.subr.mxu0 0.0
    %2938 = vmatpush1.msra.mxu0 0.0
    %2939 = vmatprep.subr.mxu0 0.0
    %2940 = vmatpush1.msra.mxu0 0.0
    %2941 = vmatprep.subr.mxu0 0.0
    %2942 = vmatpush1.msra.mxu0 0.0
    %2943 = vmatprep.subr.mxu0 0.0
    %2944 = vmatpush1.msra.mxu0 0.0
    %2945 = vmatprep.subr.mxu0 0.0
    %2946 = vmatpush1.msra.mxu0 0.0
    %2947 = vmatprep.subr.mxu0 0.0
    %2948 = vmatpush1.msra.mxu0 0.0
    %2949 = vmatprep.subr.mxu0 0.0
    %2950 = vmatpush1.msra.mxu0 0.0
    %2951 = vmatprep.subr.mxu0 0.0
    %2952 = vmatpush1.msra.mxu0 0.0
    %2953 = vmatprep.subr.mxu0 0.0
    %2954 = vmatpush1.msra.mxu0 0.0
    %2955 = vmatprep.subr.mxu0 0.0
    %2956 = vmatpush1.msra.mxu0 0.0
    %2957 = vmatprep.subr.mxu0 0.0
    %2958 = vmatpush1.msra.mxu0 0.0
    %2959 = vmatprep.subr.mxu0 0.0
    %2960 = vmatpush1.msra.mxu0 0.0
    %2961 = vmatprep.subr.mxu0 0.0
    %2962 = vmatpush1.msra.mxu0 0.0
    %2963 = vmatprep.subr.mxu0 0.0
    %2964 = vmatpush1.msra.mxu0 0.0
    %2965 = vmatprep.subr.mxu0 0.0
    %2966 = vmatpush1.msra.mxu0 0.0
    %2967 = vmatprep.subr.mxu0 0.0
    %2968 = vmatpush1.msra.mxu0 0.0
    %2969 = vmatprep.subr.mxu0 0.0
    %2970 = vmatpush1.msra.mxu0 0.0
    %2971 = vmatprep.subr.mxu0 0.0
    %2972 = vmatpush1.msra.mxu0 0.0
    %2973 = vmatprep.subr.mxu0 0.0
    %2974 = vmatpush1.msra.mxu0 0.0
    %2975 = vmatprep.subr.mxu0 0.0
    %2976 = vmatpush1.msra.mxu0 0.0
    %2977 = vmatprep.subr.mxu0 0.0
    %2978 = vmatpush1.msra.mxu0 0.0
    %2979 = vmatprep.subr.mxu0 0.0
    %2980 = vmatpush1.msra.mxu0 0.0
    %2981 = vmatprep.subr.mxu0 0.0
    %2982 = vmatpush1.msra.mxu0 0.0
    %2983 = vmatprep.subr.mxu0 0.0
    %2984 = vmatpush1.msra.mxu0 0.0
    %2985 = vmatprep.subr.mxu0 0.0
    %2986 = vmatpush1.msra.mxu0 0.0
    %2987 = vmatprep.subr.mxu0 0.0
    %2988 = vmatpush1.msra.mxu0 0.0
    %2989 = vmatprep.mubr.f32.mxu0 0.0
    %2990 = vmatmul.mubr.f32.gmra.mrb[0].mxu0 %v2923
    %v2991 = vpop.f32.mrb[0].mxu0
    %v2992 = vadd.f32 %v1860, %v2991
    %v2993 = vpop.f32.mrb[0].mxu0
    %2994 = vdwg.mxu0
    %v2995 = vxor.u32 %v2992, 2147483648
    %v2996 = vmul.f32 %v2995, 1.442695
    %v2997 = vpow.pop %v2996
    %v2998 = vadd.f32 %v2997, 1.0
    %v2999 = vrcp.pop %v2998
    %v3000 = vmul.f32 1.0, %v2999
    %v3001 = vtanh.pop %v2992
    %v3002 = vmul.f32 %v3000, %v2803
    %3004 = vrot.lane.b32.xlu0 %v3001, 64
    %v3005 = vpop.permute.xlu0 %3004
    %v3007 = vmul.f32 %v3000, %v3005
    %3009 = vrot.lane.b32.xlu0 %v3007, 32
    %v3010 = vpop.permute.xlu0 %3009
    %v3012 = vadd.f32 %v3002, %v3010
    %v3013 = vtanh.pop %v3012
    %3015 = vrot.lane.b32.xlu0 %v3013, 64
    %v3016 = vpop.permute.xlu0 %3015
    %v3018 = vmul.f32 %v3000, %v3016
    %3020 = vrot.lane.b32.xlu0 %v3018, 32
    %v3021 = vpop.permute.xlu0 %3020
    %3024 = vrot.lane.b32.xlu0 %v2915, 64
    %v3025 = vpop.permute.xlu0 %3024
    %v3027 = vsel %vm242, %v3021, %v3025
    %v3029 = vsel %vm259, %v3027, 0
    %3031 = vmatprep.subr.mxu0 0.0
    %3032 = vmatpush1.msra.mxu0 %v1968
    %3033 = vmatprep.subr.mxu0 0.0
    %3034 = vmatpush1.msra.mxu0 %v1969
    %3035 = vmatprep.subr.mxu0 0.0
    %3036 = vmatpush1.msra.mxu0 %v1970
    %3037 = vmatprep.subr.mxu0 0.0
    %3038 = vmatpush1.msra.mxu0 %v1971
    %3039 = vmatprep.subr.mxu0 0.0
    %3040 = vmatpush1.msra.mxu0 %v1972
    %3041 = vmatprep.subr.mxu0 0.0
    %3042 = vmatpush1.msra.mxu0 %v1973
    %3043 = vmatprep.subr.mxu0 0.0
    %3044 = vmatpush1.msra.mxu0 %v1974
    %3045 = vmatprep.subr.mxu0 0.0
    %3046 = vmatpush1.msra.mxu0 %v1975
    %3047 = vmatprep.subr.mxu0 0.0
    %3048 = vmatpush1.msra.mxu0 0.0
    %3049 = vmatprep.subr.mxu0 0.0
    %3050 = vmatpush1.msra.mxu0 0.0
    %3051 = vmatprep.subr.mxu0 0.0
    %3052 = vmatpush1.msra.mxu0 0.0
    %3053 = vmatprep.subr.mxu0 0.0
    %3054 = vmatpush1.msra.mxu0 0.0
    %3055 = vmatprep.subr.mxu0 0.0
    %3056 = vmatpush1.msra.mxu0 0.0
    %3057 = vmatprep.subr.mxu0 0.0
    %3058 = vmatpush1.msra.mxu0 0.0
    %3059 = vmatprep.subr.mxu0 0.0
    %3060 = vmatpush1.msra.mxu0 0.0
    %3061 = vmatprep.subr.mxu0 0.0
    %3062 = vmatpush1.msra.mxu0 0.0
    %3063 = vmatprep.subr.mxu0 0.0
    %3064 = vmatpush1.msra.mxu0 0.0
    %3065 = vmatprep.subr.mxu0 0.0
    %3066 = vmatpush1.msra.mxu0 0.0
    %3067 = vmatprep.subr.mxu0 0.0
    %3068 = vmatpush1.msra.mxu0 0.0
    %3069 = vmatprep.subr.mxu0 0.0
    %3070 = vmatpush1.msra.mxu0 0.0
    %3071 = vmatprep.subr.mxu0 0.0
    %3072 = vmatpush1.msra.mxu0 0.0
    %3073 = vmatprep.subr.mxu0 0.0
    %3074 = vmatpush1.msra.mxu0 0.0
    %3075 = vmatprep.subr.mxu0 0.0
    %3076 = vmatpush1.msra.mxu0 0.0
    %3077 = vmatprep.subr.mxu0 0.0
    %3078 = vmatpush1.msra.mxu0 0.0
    %3079 = vmatprep.subr.mxu0 0.0
    %3080 = vmatpush1.msra.mxu0 0.0
    %3081 = vmatprep.subr.mxu0 0.0
    %3082 = vmatpush1.msra.mxu0 0.0
    %3083 = vmatprep.subr.mxu0 0.0
    %3084 = vmatpush1.msra.mxu0 0.0
    %3085 = vmatprep.subr.mxu0 0.0
    %3086 = vmatpush1.msra.mxu0 0.0
    %3087 = vmatprep.subr.mxu0 0.0
    %3088 = vmatpush1.msra.mxu0 0.0
    %3089 = vmatprep.subr.mxu0 0.0
    %3090 = vmatpush1.msra.mxu0 0.0
    %3091 = vmatprep.subr.mxu0 0.0
    %3092 = vmatpush1.msra.mxu0 0.0
    %3093 = vmatprep.subr.mxu0 0.0
    %3094 = vmatpush1.msra.mxu0 0.0
    %3095 = vmatprep.mubr.f32.mxu0 0.0
    %3096 = vmatmul.mubr.f32.gmra.mrb[0].mxu0 %v3029
    %v3097 = vpop.f32.mrb[0].mxu0
    %v3098 = vadd.f32 %v1981, %v3097
    %v3099 = vpop.f32.mrb[0].mxu0
    %3100 = vdwg.mxu0
    %v3101 = vxor.u32 %v3098, 2147483648
    %v3102 = vmul.f32 %v3101, 1.442695
    %v3103 = vpow.pop %v3102
    %v3104 = vadd.f32 %v3103, 1.0
    %v3105 = vrcp.pop %v3104
    %v3106 = vmul.f32 1.0, %v3105
    %v3107 = vtanh.pop %v3098
    %v3108 = vmul.f32 %v3106, %v2909
    %3110 = vrot.lane.b32.xlu0 %v3107, 64
    %v3111 = vpop.permute.xlu0 %3110
    %v3113 = vmul.f32 %v3106, %v3111
    %3115 = vrot.lane.b32.xlu0 %v3113, 32
    %v3116 = vpop.permute.xlu0 %3115
    %v3118 = vadd.f32 %v3108, %v3116
    %v3119 = vtanh.pop %v3118
    %3121 = vrot.lane.b32.xlu0 %v3119, 64
    %v3122 = vpop.permute.xlu0 %3121
    %v3124 = vmul.f32 %v3106, %v3122
    %v3125 = vrot.slane %v3018, 2
    %3126 = vrot.lane.b32.xlu0 %v3125, 48
    %v3127 = vpop.permute.xlu0 %3126
    %v3129 = vsel %vm125, %v1418, %v3127
    %v3131 = vrot.slane %v3129, 6
    %v3132 = vsel %vm140, %v3131, 0
    %3134 = vmatprep.subr.mxu0 0.0
    %3135 = vmatpush1.msra.mxu0 %v1849
    %3136 = vmatprep.subr.mxu0 0.0
    %3137 = vmatpush1.msra.mxu0 %v1850
    %3138 = vmatprep.subr.mxu0 0.0
    %3139 = vmatpush1.msra.mxu0 %v1851
    %3140 = vmatprep.subr.mxu0 0.0
    %3141 = vmatpush1.msra.mxu0 %v1852
    %3142 = vmatprep.subr.mxu0 0.0
    %3143 = vmatpush1.msra.mxu0 %v1853
    %3144 = vmatprep.subr.mxu0 0.0
    %3145 = vmatpush1.msra.mxu0 %v1854
    %3146 = vmatprep.subr.mxu0 0.0
    %3147 = vmatpush1.msra.mxu0 0.0
    %3148 = vmatprep.subr.mxu0 0.0
    %3149 = vmatpush1.msra.mxu0 0.0
    %3150 = vmatprep.subr.mxu0 0.0
    %3151 = vmatpush1.msra.mxu0 0.0
    %3152 = vmatprep.subr.mxu0 0.0
    %3153 = vmatpush1.msra.mxu0 0.0
    %3154 = vmatprep.subr.mxu0 0.0
    %3155 = vmatpush1.msra.mxu0 0.0
    %3156 = vmatprep.subr.mxu0 0.0
    %3157 = vmatpush1.msra.mxu0 0.0
    %3158 = vmatprep.subr.mxu0 0.0
    %3159 = vmatpush1.msra.mxu0 0.0
    %3160 = vmatprep.subr.mxu0 0.0
    %3161 = vmatpush1.msra.mxu0 0.0
    %3162 = vmatprep.subr.mxu0 0.0
    %3163 = vmatpush1.msra.mxu0 0.0
    %3164 = vmatprep.subr.mxu0 0.0
    %3165 = vmatpush1.msra.mxu0 0.0
    %3166 = vmatprep.subr.mxu0 0.0
    %3167 = vmatpush1.msra.mxu0 0.0
    %3168 = vmatprep.subr.mxu0 0.0
    %3169 = vmatpush1.msra.mxu0 0.0
    %3170 = vmatprep.subr.mxu0 0.0
    %3171 = vmatpush1.msra.mxu0 0.0
    %3172 = vmatprep.subr.mxu0 0.0
    %3173 = vmatpush1.msra.mxu0 0.0
    %3174 = vmatprep.subr.mxu0 0.0
    %3175 = vmatpush1.msra.mxu0 0.0
    %3176 = vmatprep.subr.mxu0 0.0
    %3177 = vmatpush1.msra.mxu0 0.0
    %3178 = vmatprep.subr.mxu0 0.0
    %3179 = vmatpush1.msra.mxu0 0.0
    %3180 = vmatprep.subr.mxu0 0.0
    %3181 = vmatpush1.msra.mxu0 0.0
    %3182 = vmatprep.subr.mxu0 0.0
    %3183 = vmatpush1.msra.mxu0 0.0
    %3184 = vmatprep.subr.mxu0 0.0
    %3185 = vmatpush1.msra.mxu0 0.0
    %3186 = vmatprep.subr.mxu0 0.0
    %3187 = vmatpush1.msra.mxu0 0.0
    %3188 = vmatprep.subr.mxu0 0.0
    %3189 = vmatpush1.msra.mxu0 0.0
    %3190 = vmatprep.subr.mxu0 0.0
    %3191 = vmatpush1.msra.mxu0 0.0
    %3192 = vmatprep.subr.mxu0 0.0
    %3193 = vmatpush1.msra.mxu0 0.0
    %3194 = vmatprep.subr.mxu0 0.0
    %3195 = vmatpush1.msra.mxu0 0.0
    %3196 = vmatprep.subr.mxu0 0.0
    %3197 = vmatpush1.msra.mxu0 0.0
    %3198 = vmatprep.mubr.f32.mxu0 0.0
    %3199 = vmatmul.mubr.f32.gmra.mrb[0].mxu0 %v3132
    %v3200 = vpop.f32.mrb[0].mxu0
    %v3201 = vadd.f32 %v1860, %v3200
    %v3202 = vpop.f32.mrb[0].mxu0
    %3203 = vdwg.mxu0
    %v3204 = vxor.u32 %v3201, 2147483648
    %v3205 = vmul.f32 %v3204, 1.442695
    %v3206 = vpow.pop %v3205
    %v3207 = vadd.f32 %v3206, 1.0
    %v3208 = vrcp.pop %v3207
    %v3209 = vmul.f32 1.0, %v3208
    %v3210 = vtanh.pop %v3201
    %v3211 = vmul.f32 %v3209, %v3012
    %3213 = vrot.lane.b32.xlu0 %v3210, 64
    %v3214 = vpop.permute.xlu0 %3213
    %v3216 = vmul.f32 %v3209, %v3214
    %3218 = vrot.lane.b32.xlu0 %v3216, 32
    %v3219 = vpop.permute.xlu0 %3218
    %v3221 = vadd.f32 %v3211, %v3219
    %v3222 = vtanh.pop %v3221
    %3224 = vrot.lane.b32.xlu0 %v3222, 64
    %v3225 = vpop.permute.xlu0 %3224
    %v3227 = vmul.f32 %v3209, %v3225
    %3229 = vrot.lane.b32.xlu0 %v3227, 32
    %v3230 = vpop.permute.xlu0 %3229
    %3233 = vrot.lane.b32.xlu0 %v3124, 64
    %v3234 = vpop.permute.xlu0 %3233
    %v3236 = vsel %vm242, %v3230, %v3234
    %v3238 = vsel %vm259, %v3236, 0
    %3240 = vmatprep.subr.mxu0 0.0
    %3241 = vmatpush1.msra.mxu0 %v1968
    %3242 = vmatprep.subr.mxu0 0.0
    %3243 = vmatpush1.msra.mxu0 %v1969
    %3244 = vmatprep.subr.mxu0 0.0
    %3245 = vmatpush1.msra.mxu0 %v1970
    %3246 = vmatprep.subr.mxu0 0.0
    %3247 = vmatpush1.msra.mxu0 %v1971
    %3248 = vmatprep.subr.mxu0 0.0
    %3249 = vmatpush1.msra.mxu0 %v1972
    %3250 = vmatprep.subr.mxu0 0.0
    %3251 = vmatpush1.msra.mxu0 %v1973
    %3252 = vmatprep.subr.mxu0 0.0
    %3253 = vmatpush1.msra.mxu0 %v1974
    %3254 = vmatprep.subr.mxu0 0.0
    %3255 = vmatpush1.msra.mxu0 %v1975
    %3256 = vmatprep.subr.mxu0 0.0
    %3257 = vmatpush1.msra.mxu0 0.0
    %3258 = vmatprep.subr.mxu0 0.0
    %3259 = vmatpush1.msra.mxu0 0.0
    %3260 = vmatprep.subr.mxu0 0.0
    %3261 = vmatpush1.msra.mxu0 0.0
    %3262 = vmatprep.subr.mxu0 0.0
    %3263 = vmatpush1.msra.mxu0 0.0
    %3264 = vmatprep.subr.mxu0 0.0
    %3265 = vmatpush1.msra.mxu0 0.0
    %3266 = vmatprep.subr.mxu0 0.0
    %3267 = vmatpush1.msra.mxu0 0.0
    %3268 = vmatprep.subr.mxu0 0.0
    %3269 = vmatpush1.msra.mxu0 0.0
    %3270 = vmatprep.subr.mxu0 0.0
    %3271 = vmatpush1.msra.mxu0 0.0
    %3272 = vmatprep.subr.mxu0 0.0
    %3273 = vmatpush1.msra.mxu0 0.0
    %3274 = vmatprep.subr.mxu0 0.0
    %3275 = vmatpush1.msra.mxu0 0.0
    %3276 = vmatprep.subr.mxu0 0.0
    %3277 = vmatpush1.msra.mxu0 0.0
    %3278 = vmatprep.subr.mxu0 0.0
    %3279 = vmatpush1.msra.mxu0 0.0
    %3280 = vmatprep.subr.mxu0 0.0
    %3281 = vmatpush1.msra.mxu0 0.0
    %3282 = vmatprep.subr.mxu0 0.0
    %3283 = vmatpush1.msra.mxu0 0.0
    %3284 = vmatprep.subr.mxu0 0.0
    %3285 = vmatpush1.msra.mxu0 0.0
    %3286 = vmatprep.subr.mxu0 0.0
    %3287 = vmatpush1.msra.mxu0 0.0
    %3288 = vmatprep.subr.mxu0 0.0
    %3289 = vmatpush1.msra.mxu0 0.0
    %3290 = vmatprep.subr.mxu0 0.0
    %3291 = vmatpush1.msra.mxu0 0.0
    %3292 = vmatprep.subr.mxu0 0.0
    %3293 = vmatpush1.msra.mxu0 0.0
    %3294 = vmatprep.subr.mxu0 0.0
    %3295 = vmatpush1.msra.mxu0 0.0
    %3296 = vmatprep.subr.mxu0 0.0
    %3297 = vmatpush1.msra.mxu0 0.0
    %3298 = vmatprep.subr.mxu0 0.0
    %3299 = vmatpush1.msra.mxu0 0.0
    %3300 = vmatprep.subr.mxu0 0.0
    %3301 = vmatpush1.msra.mxu0 0.0
    %3302 = vmatprep.subr.mxu0 0.0
    %3303 = vmatpush1.msra.mxu0 0.0
    %3304 = vmatprep.mubr.f32.mxu0 0.0
    %3305 = vmatmul.mubr.f32.gmra.mrb[0].mxu0 %v3238
    %v3306 = vpop.f32.mrb[0].mxu0
    %v3307 = vadd.f32 %v1981, %v3306
    %v3308 = vpop.f32.mrb[0].mxu0
    %3309 = vdwg.mxu0
    %v3310 = vxor.u32 %v3307, 2147483648
    %v3311 = vmul.f32 %v3310, 1.442695
    %v3312 = vpow.pop %v3311
    %v3313 = vadd.f32 %v3312, 1.0
    %v3314 = vrcp.pop %v3313
    %v3315 = vmul.f32 1.0, %v3314
    %v3316 = vtanh.pop %v3307
    %v3317 = vmul.f32 %v3315, %v3118
    %3319 = vrot.lane.b32.xlu0 %v3316, 64
    %v3320 = vpop.permute.xlu0 %3319
    %v3322 = vmul.f32 %v3315, %v3320
    %3324 = vrot.lane.b32.xlu0 %v3322, 32
    %v3325 = vpop.permute.xlu0 %3324
    %v3327 = vadd.f32 %v3317, %v3325
    %v3328 = vtanh.pop %v3327
    %3330 = vrot.lane.b32.xlu0 %v3328, 64
    %v3331 = vpop.permute.xlu0 %3330
    %v3333 = vmul.f32 %v3315, %v3331
    %v3334 = vrot.slane %v3227, 1
    %3335 = vrot.lane.b32.xlu0 %v3334, 48
    %v3336 = vpop.permute.xlu0 %3335
    %v3338 = vsel %vm125, %v117, %v3336
    %v3339 = vsel %vm125, %v121, %v3336
    %v3342 = vrot.slane %v3338, 7
    %v3343 = vrot.slane %v3339, 7
    %v3344 = vsel %vm1639, %v3342, %v3343
    %v3345 = vsel %vm140, %v3344, 0
    %3347 = vmatprep.subr.mxu0 0.0
    %3348 = vmatpush1.msra.mxu0 %v1849
    %3349 = vmatprep.subr.mxu0 0.0
    %3350 = vmatpush1.msra.mxu0 %v1850
    %3351 = vmatprep.subr.mxu0 0.0
    %3352 = vmatpush1.msra.mxu0 %v1851
    %3353 = vmatprep.subr.mxu0 0.0
    %3354 = vmatpush1.msra.mxu0 %v1852
    %3355 = vmatprep.subr.mxu0 0.0
    %3356 = vmatpush1.msra.mxu0 %v1853
    %3357 = vmatprep.subr.mxu0 0.0
    %3358 = vmatpush1.msra.mxu0 %v1854
    %3359 = vmatprep.subr.mxu0 0.0
    %3360 = vmatpush1.msra.mxu0 0.0
    %3361 = vmatprep.subr.mxu0 0.0
    %3362 = vmatpush1.msra.mxu0 0.0
    %3363 = vmatprep.subr.mxu0 0.0
    %3364 = vmatpush1.msra.mxu0 0.0
    %3365 = vmatprep.subr.mxu0 0.0
    %3366 = vmatpush1.msra.mxu0 0.0
    %3367 = vmatprep.subr.mxu0 0.0
    %3368 = vmatpush1.msra.mxu0 0.0
    %3369 = vmatprep.subr.mxu0 0.0
    %3370 = vmatpush1.msra.mxu0 0.0
    %3371 = vmatprep.subr.mxu0 0.0
    %3372 = vmatpush1.msra.mxu0 0.0
    %3373 = vmatprep.subr.mxu0 0.0
    %3374 = vmatpush1.msra.mxu0 0.0
    %3375 = vmatprep.subr.mxu0 0.0
    %3376 = vmatpush1.msra.mxu0 0.0
    %3377 = vmatprep.subr.mxu0 0.0
    %3378 = vmatpush1.msra.mxu0 0.0
    %3379 = vmatprep.subr.mxu0 0.0
    %3380 = vmatpush1.msra.mxu0 0.0
    %3381 = vmatprep.subr.mxu0 0.0
    %3382 = vmatpush1.msra.mxu0 0.0
    %3383 = vmatprep.subr.mxu0 0.0
    %3384 = vmatpush1.msra.mxu0 0.0
    %3385 = vmatprep.subr.mxu0 0.0
    %3386 = vmatpush1.msra.mxu0 0.0
    %3387 = vmatprep.subr.mxu0 0.0
    %3388 = vmatpush1.msra.mxu0 0.0
    %3389 = vmatprep.subr.mxu0 0.0
    %3390 = vmatpush1.msra.mxu0 0.0
    %3391 = vmatprep.subr.mxu0 0.0
    %3392 = vmatpush1.msra.mxu0 0.0
    %3393 = vmatprep.subr.mxu0 0.0
    %3394 = vmatpush1.msra.mxu0 0.0
    %3395 = vmatprep.subr.mxu0 0.0
    %3396 = vmatpush1.msra.mxu0 0.0
    %3397 = vmatprep.subr.mxu0 0.0
    %3398 = vmatpush1.msra.mxu0 0.0
    %3399 = vmatprep.subr.mxu0 0.0
    %3400 = vmatpush1.msra.mxu0 0.0
    %3401 = vmatprep.subr.mxu0 0.0
    %3402 = vmatpush1.msra.mxu0 0.0
    %3403 = vmatprep.subr.mxu0 0.0
    %3404 = vmatpush1.msra.mxu0 0.0
    %3405 = vmatprep.subr.mxu0 0.0
    %3406 = vmatpush1.msra.mxu0 0.0
    %3407 = vmatprep.subr.mxu0 0.0
    %3408 = vmatpush1.msra.mxu0 0.0
    %3409 = vmatprep.subr.mxu0 0.0
    %3410 = vmatpush1.msra.mxu0 0.0
    %3411 = vmatprep.mubr.f32.mxu0 0.0
    %3412 = vmatmul.mubr.f32.gmra.mrb[0].mxu0 %v3345
    %v3413 = vpop.f32.mrb[0].mxu0
    %v3414 = vadd.f32 %v1860, %v3413
    %v3415 = vpop.f32.mrb[0].mxu0
    %3416 = vdwg.mxu0
    %v3417 = vxor.u32 %v3414, 2147483648
    %v3418 = vmul.f32 %v3417, 1.442695
    %v3419 = vpow.pop %v3418
    %v3420 = vadd.f32 %v3419, 1.0
    %v3421 = vrcp.pop %v3420
    %v3422 = vmul.f32 1.0, %v3421
    %v3423 = vtanh.pop %v3414
    %v3424 = vmul.f32 %v3422, %v3221
    %3426 = vrot.lane.b32.xlu0 %v3423, 64
    %v3427 = vpop.permute.xlu0 %3426
    %v3429 = vmul.f32 %v3422, %v3427
    %3431 = vrot.lane.b32.xlu0 %v3429, 32
    %v3432 = vpop.permute.xlu0 %3431
    %v3434 = vadd.f32 %v3424, %v3432
    %v3435 = vtanh.pop %v3434
    %3437 = vrot.lane.b32.xlu0 %v3435, 64
    %v3438 = vpop.permute.xlu0 %3437
    %v3440 = vmul.f32 %v3422, %v3438
    %3442 = vrot.lane.b32.xlu0 %v3440, 32
    %v3443 = vpop.permute.xlu0 %3442
    %3446 = vrot.lane.b32.xlu0 %v3333, 64
    %v3447 = vpop.permute.xlu0 %3446
    %v3449 = vsel %vm242, %v3443, %v3447
    %v3451 = vsel %vm259, %v3449, 0
    %3453 = vmatprep.subr.mxu0 0.0
    %3454 = vmatpush1.msra.mxu0 %v1968
    %3455 = vmatprep.subr.mxu0 0.0
    %3456 = vmatpush1.msra.mxu0 %v1969
    %3457 = vmatprep.subr.mxu0 0.0
    %3458 = vmatpush1.msra.mxu0 %v1970
    %3459 = vmatprep.subr.mxu0 0.0
    %3460 = vmatpush1.msra.mxu0 %v1971
    %3461 = vmatprep.subr.mxu0 0.0
    %3462 = vmatpush1.msra.mxu0 %v1972
    %3463 = vmatprep.subr.mxu0 0.0
    %3464 = vmatpush1.msra.mxu0 %v1973
    %3465 = vmatprep.subr.mxu0 0.0
    %3466 = vmatpush1.msra.mxu0 %v1974
    %3467 = vmatprep.subr.mxu0 0.0
    %3468 = vmatpush1.msra.mxu0 %v1975
    %3469 = vmatprep.subr.mxu0 0.0
    %3470 = vmatpush1.msra.mxu0 0.0
    %3471 = vmatprep.subr.mxu0 0.0
    %3472 = vmatpush1.msra.mxu0 0.0
    %3473 = vmatprep.subr.mxu0 0.0
    %3474 = vmatpush1.msra.mxu0 0.0
    %3475 = vmatprep.subr.mxu0 0.0
    %3476 = vmatpush1.msra.mxu0 0.0
    %3477 = vmatprep.subr.mxu0 0.0
    %3478 = vmatpush1.msra.mxu0 0.0
    %3479 = vmatprep.subr.mxu0 0.0
    %3480 = vmatpush1.msra.mxu0 0.0
    %3481 = vmatprep.subr.mxu0 0.0
    %3482 = vmatpush1.msra.mxu0 0.0
    %3483 = vmatprep.subr.mxu0 0.0
    %3484 = vmatpush1.msra.mxu0 0.0
    %3485 = vmatprep.subr.mxu0 0.0
    %3486 = vmatpush1.msra.mxu0 0.0
    %3487 = vmatprep.subr.mxu0 0.0
    %3488 = vmatpush1.msra.mxu0 0.0
    %3489 = vmatprep.subr.mxu0 0.0
    %3490 = vmatpush1.msra.mxu0 0.0
    %3491 = vmatprep.subr.mxu0 0.0
    %3492 = vmatpush1.msra.mxu0 0.0
    %3493 = vmatprep.subr.mxu0 0.0
    %3494 = vmatpush1.msra.mxu0 0.0
    %3495 = vmatprep.subr.mxu0 0.0
    %3496 = vmatpush1.msra.mxu0 0.0
    %3497 = vmatprep.subr.mxu0 0.0
    %3498 = vmatpush1.msra.mxu0 0.0
    %3499 = vmatprep.subr.mxu0 0.0
    %3500 = vmatpush1.msra.mxu0 0.0
    %3501 = vmatprep.subr.mxu0 0.0
    %3502 = vmatpush1.msra.mxu0 0.0
    %3503 = vmatprep.subr.mxu0 0.0
    %3504 = vmatpush1.msra.mxu0 0.0
    %3505 = vmatprep.subr.mxu0 0.0
    %3506 = vmatpush1.msra.mxu0 0.0
    %3507 = vmatprep.subr.mxu0 0.0
    %3508 = vmatpush1.msra.mxu0 0.0
    %3509 = vmatprep.subr.mxu0 0.0
    %3510 = vmatpush1.msra.mxu0 0.0
    %3511 = vmatprep.subr.mxu0 0.0
    %3512 = vmatpush1.msra.mxu0 0.0
    %3513 = vmatprep.subr.mxu0 0.0
    %3514 = vmatpush1.msra.mxu0 0.0
    %3515 = vmatprep.subr.mxu0 0.0
    %3516 = vmatpush1.msra.mxu0 0.0
    %3517 = vmatprep.mubr.f32.mxu0 0.0
    %3518 = vmatmul.mubr.f32.gmra.mrb[0].mxu0 %v3451
    %v3519 = vpop.f32.mrb[0].mxu0
    %v3520 = vadd.f32 %v1981, %v3519
    %v3521 = vpop.f32.mrb[0].mxu0
    %3522 = vdwg.mxu0
    %v3523 = vxor.u32 %v3520, 2147483648
    %v3524 = vmul.f32 %v3523, 1.442695
    %v3525 = vpow.pop %v3524
    %v3526 = vadd.f32 %v3525, 1.0
    %v3527 = vrcp.pop %v3526
    %v3528 = vmul.f32 1.0, %v3527
    %v3529 = vtanh.pop %v3520
    %v3530 = vmul.f32 %v3528, %v3327
    %3532 = vrot.lane.b32.xlu0 %v3529, 64
    %v3533 = vpop.permute.xlu0 %3532
    %v3535 = vmul.f32 %v3528, %v3533
    %3537 = vrot.lane.b32.xlu0 %v3535, 32
    %v3538 = vpop.permute.xlu0 %3537
    %v3540 = vadd.f32 %v3530, %v3538
    %v3541 = vtanh.pop %v3540
    %3543 = vrot.lane.b32.xlu0 %v3541, 64
    %v3544 = vpop.permute.xlu0 %3543
    %v3546 = vmul.f32 %v3528, %v3544
    %v3548 = vunpack.c.l.s4 1966171168
    %v3549 = vunpack.c.0.s8 %v3548
    %v3550 = vlaneseq
    %v3551 = vshrl.u32 %v3550, 7
    %v3552 = vsub.s32 %v3549, %v3551
    %v3553 = vrot.slane %v2915, %v3552
    %v3554 = vcombine.high %v3553, %v3553
    %v3556 = vunpack.c.l.s4 1966171168
    %v3557 = vunpack.c.0.s8 %v3556
    %v3558 = vlaneseq
    %v3559 = vshrl.u32 %v3558, 7
    %v3560 = vsub.s32 %v3557, %v3559
    %v3561 = vrot.slane %v3553, %v3560
    %v3563 = vunpack.c.l.s4 1966171168
    %v3564 = vunpack.c.0.s8 %v3563
    %v3565 = vlaneseq
    %v3566 = vshrl.u32 %v3565, 7
    %v3567 = vsub.s32 %v3564, %v3566
    %v3568 = vrot.slane %v3554, %v3567
    %v3572 = vunpack.c.l.s4 1966171168
    %v3573 = vunpack.c.0.s8 %v3572
    %v3574 = vlaneseq
    %v3575 = vshrl.u32 %v3574, 7
    %v3576 = vsub.s32 %v3573, %v3575
    %v3577 = vrot.slane %v3124, %v3576
    %v3578 = vcombine.high %v3577, %v3577
    %v3580 = vunpack.c.l.s4 1966171168
    %v3581 = vunpack.c.0.s8 %v3580
    %v3582 = vlaneseq
    %v3583 = vshrl.u32 %v3582, 7
    %v3584 = vsub.s32 %v3581, %v3583
    %v3585 = vrot.slane %v3577, %v3584
    %v3587 = vunpack.c.l.s4 1966171168
    %v3588 = vunpack.c.0.s8 %v3587
    %v3589 = vlaneseq
    %v3590 = vshrl.u32 %v3589, 7
    %v3591 = vsub.s32 %v3588, %v3590
    %v3592 = vrot.slane %v3578, %v3591
    %v3594 = vunpack.c.l.s4 1966171168
    %v3595 = vunpack.c.0.s8 %v3594
    %v3596 = vlaneseq
    %v3597 = vshrl.u32 %v3596, 7
    %v3598 = vsub.s32 %v3595, %v3597
    %v3599 = vrot.slane %v3333, %v3598
    %v3600 = vcombine.high %v3599, %v3599
    %v3602 = vunpack.c.l.s4 1966171168
    %v3603 = vunpack.c.0.s8 %v3602
    %v3604 = vlaneseq
    %v3605 = vshrl.u32 %v3604, 7
    %v3606 = vsub.s32 %v3603, %v3605
    %v3607 = vrot.slane %v3599, %v3606
    %v3609 = vunpack.c.l.s4 1966171168
    %v3610 = vunpack.c.0.s8 %v3609
    %v3611 = vlaneseq
    %v3612 = vshrl.u32 %v3611, 7
    %v3613 = vsub.s32 %v3610, %v3612
    %v3614 = vrot.slane %v3600, %v3613
    %v3617 = vunpack.c.l.s4 1966171168
    %v3618 = vunpack.c.0.s8 %v3617
    %v3619 = vlaneseq
    %v3620 = vshrl.u32 %v3619, 7
    %v3621 = vsub.s32 %v3618, %v3620
    %v3622 = vrot.slane %v3546, %v3621
    %v3623 = vcombine.high %v3622, %v3622
    %v3625 = vunpack.c.l.s4 1966171168
    %v3626 = vunpack.c.0.s8 %v3625
    %v3627 = vlaneseq
    %v3628 = vshrl.u32 %v3627, 7
    %v3629 = vsub.s32 %v3626, %v3628
    %v3630 = vrot.slane %v3622, %v3629
    %v3632 = vunpack.c.l.s4 1966171168
    %v3633 = vunpack.c.0.s8 %v3632
    %v3634 = vlaneseq
    %v3635 = vshrl.u32 %v3634, 7
    %v3636 = vsub.s32 %v3633, %v3635
    %v3637 = vrot.slane %v3623, %v3636
    %v3638 = vlaneseq
    %v3639 = vshrl.u32 %v3638, 7
    %v3640 = vsub.s32 0, %v3639
    %v3641 = vrot.slane %v3585, %v3640
    %v3642 = vlaneseq
    %v3643 = vshrl.u32 %v3642, 7
    %v3644 = vsub.s32 0, %v3643
    %v3645 = vrot.slane %v3592, %v3644
    %v3648 = vlaneseq
    %v3649 = vshrl.u32 %v3648, 7
    %v3650 = vsub.s32 0, %v3649
    %v3651 = vrot.slane %v3607, %v3650
    %v3652 = vlaneseq
    %v3653 = vshrl.u32 %v3652, 7
    %v3654 = vsub.s32 0, %v3653
    %v3655 = vrot.slane %v3614, %v3654
    %v3658 = vlaneseq
    %v3659 = vshrl.u32 %v3658, 7
    %v3660 = vsub.s32 0, %v3659
    %v3661 = vrot.slane %v3630, %v3660
    %v3662 = vlaneseq
    %v3663 = vshrl.u32 %v3662, 7
    %v3664 = vsub.s32 0, %v3663
    %v3665 = vrot.slane %v3637, %v3664
    %v3668 = vsel %vm1639, %v3561, %v3641
    %v3669 = vsel %vm1639, %v3568, %v3645
    %vm3670 = vcmask 1041408
    %v3671 = vsel %vm3670, %v3668, %v3651
    %v3672 = vsel %vm3670, %v3669, %v3655
    %vm3673 = vcmask 1042432
    %v3674 = vsel %vm3673, %v3671, %v3661
    %v3675 = vsel %vm3673, %v3672, %v3665
    %v3676 = vld [vmem:[%s9] sm:$0xff]
    %v3677 = vld [vmem:[%s9 + $0x8] sm:$0xff]
    %v3678 = vld [vmem:[%s9 + $0x10] sm:$0xff]
    %v3679 = vld [vmem:[%s9 + $0x18] sm:$0xff]
    %v3680 = vld [vmem:[%s10] sm:$0x1]
    %v3682 = vlaneseq
    %v3683 = vshrl.u32 %v3682, 7
    %v3684 = vsub.s32 0, %v3683
    %v3685 = vrot.slane %v3680, %v3684
    %v3689 = vcombine.low %v3674, %v3675
    %3690 = vrot.lane.b32.xlu0 %v3689, 32
    %v3691 = vpop.permute.xlu0 %3690
    %v3692 = vsel %vm242, %v3691, 0
    %3694 = vmatprep.subr.mxu0 0.0
    %3695 = vmatpush1.msra.mxu0 %v3676
    %3696 = vmatprep.subr.mxu0 0.0
    %3697 = vmatpush1.msra.mxu0 %v3677
    %3698 = vmatprep.subr.mxu0 0.0
    %3699 = vmatpush1.msra.mxu0 %v3678
    %3700 = vmatprep.subr.mxu0 0.0
    %3701 = vmatpush1.msra.mxu0 %v3679
    %3702 = vmatprep.subr.mxu0 0.0
    %3703 = vmatpush1.msra.mxu0 0.0
    %3704 = vmatprep.subr.mxu0 0.0
    %3705 = vmatpush1.msra.mxu0 0.0
    %3706 = vmatprep.subr.mxu0 0.0
    %3707 = vmatpush1.msra.mxu0 0.0
    %3708 = vmatprep.subr.mxu0 0.0
    %3709 = vmatpush1.msra.mxu0 0.0
    %3710 = vmatprep.subr.mxu0 0.0
    %3711 = vmatpush1.msra.mxu0 0.0
    %3712 = vmatprep.subr.mxu0 0.0
    %3713 = vmatpush1.msra.mxu0 0.0
    %3714 = vmatprep.subr.mxu0 0.0
    %3715 = vmatpush1.msra.mxu0 0.0
    %3716 = vmatprep.subr.mxu0 0.0
    %3717 = vmatpush1.msra.mxu0 0.0
    %3718 = vmatprep.subr.mxu0 0.0
    %3719 = vmatpush1.msra.mxu0 0.0
    %3720 = vmatprep.subr.mxu0 0.0
    %3721 = vmatpush1.msra.mxu0 0.0
    %3722 = vmatprep.subr.mxu0 0.0
    %3723 = vmatpush1.msra.mxu0 0.0
    %3724 = vmatprep.subr.mxu0 0.0
    %3725 = vmatpush1.msra.mxu0 0.0
    %3726 = vmatprep.subr.mxu0 0.0
    %3727 = vmatpush1.msra.mxu0 0.0
    %3728 = vmatprep.subr.mxu0 0.0
    %3729 = vmatpush1.msra.mxu0 0.0
    %3730 = vmatprep.subr.mxu0 0.0
    %3731 = vmatpush1.msra.mxu0 0.0
    %3732 = vmatprep.subr.mxu0 0.0
    %3733 = vmatpush1.msra.mxu0 0.0
    %3734 = vmatprep.subr.mxu0 0.0
    %3735 = vmatpush1.msra.mxu0 0.0
    %3736 = vmatprep.subr.mxu0 0.0
    %3737 = vmatpush1.msra.mxu0 0.0
    %3738 = vmatprep.subr.mxu0 0.0
    %3739 = vmatpush1.msra.mxu0 0.0
    %3740 = vmatprep.subr.mxu0 0.0
    %3741 = vmatpush1.msra.mxu0 0.0
    %3742 = vmatprep.subr.mxu0 0.0
    %3743 = vmatpush1.msra.mxu0 0.0
    %3744 = vmatprep.subr.mxu0 0.0
    %3745 = vmatpush1.msra.mxu0 0.0
    %3746 = vmatprep.subr.mxu0 0.0
    %3747 = vmatpush1.msra.mxu0 0.0
    %3748 = vmatprep.subr.mxu0 0.0
    %3749 = vmatpush1.msra.mxu0 0.0
    %3750 = vmatprep.subr.mxu0 0.0
    %3751 = vmatpush1.msra.mxu0 0.0
    %3752 = vmatprep.subr.mxu0 0.0
    %3753 = vmatpush1.msra.mxu0 0.0
    %3754 = vmatprep.subr.mxu0 0.0
    %3755 = vmatpush1.msra.mxu0 0.0
    %3756 = vmatprep.subr.mxu0 0.0
    %3757 = vmatpush1.msra.mxu0 0.0
    %3758 = vmatprep.mubr.f32.mxu0 0.0
    %3759 = vmatmul.mubr.f32.gmra.mrb[0].mxu0 %v3692
    %v3760 = vpop.f32.mrb[0].mxu0
    %v3761 = vadd.f32 %v3685, %v3760
    %v3762 = vpop.f32.mrb[0].mxu0
    %3763 = vdwg.mxu0
    %v3765 = vcombine.high %v3761, %v3761
    %vm3767 = vcmask 60416
    %3768 = vst.msk [vmem:[#allocation13] sm:$0xf] %vm3767, %v3761
    %3769 = vst.msk [vmem:[#allocation13 + $0x4] sm:$0xf] %vm3767, %v3765
    // Predicated region
    $region70: #{tpu_custom_call.1} parent=1 // pred_check
      _
    $region71: #{tpu_custom_call.1} parent=1 // pred_check_branch
      %3771 = sbr.rel (0) target = $region73
    $region72: #{tpu_custom_call.1} parent=1 // pred_region
      %s3773 = ssub.s32 128, 128
      %3774 = vsyncadd [#allocation4], %s3773
      %s3775 = sshll.u32 [#allocation13], 4
      %s3776 = int_to_ptr.vmem [resolvable:$true] %s3775
      %3781 = dma.vmem_to_hbm [thread:$0]  %s3776, 128, %s11, [#allocation4], 64, 64, 4
    $region73: #{tpu_custom_call.1} parent=1 // pred_fallthru
      _
    // Predicated region
    $region74: #{tpu_custom_call.1} parent=1 // pred_check
      _
    $region75: #{tpu_custom_call.1} parent=1 // pred_check_branch
      %3783 = sbr.rel (0) target = $region77
    $region76: #{tpu_custom_call.1} parent=1 // pred_region
      %3784 = dma.done [#allocation4], 128
    $region77: #{tpu_custom_call.1} parent=1 // pred_fallthru
      _
    %3785 = vsyncpa [#allocation3], 1
    %3786 = vsyncpa [#allocation6], 1
    %3787 = vsyncpa [#allocation9], 1
    %3788 = vsyncpa [#allocation12], 1
    %3789 = vsyncpa [#allocation4], 1

</llo_original>
